<compile_context>
chip_gen: v7x
topology: tpu7x:2x2x1
jax: 0.10.0
libtpu: 0.0.40
codegen_flags: <defaults>
</compile_context>

<pallas_src>
import math

import numpy as np
import jax
import jax.numpy as jnp
from jax import lax
from jax.experimental import pallas as pl
from jax.experimental.pallas import tpu as pltpu

# ---------------- static model configuration ----------------
D = 4            # number_variables
M1 = 10          # degree_transformations
M2 = 12          # degree_decorrelation
L = 3            # num_decorr_layers
SPAN_FACTOR = 0.1
POLY_MIN, POLY_MAX = -6.0, 6.0          # polynomial_range
INPUT_MIN, INPUT_MAX = -3.0, 3.0        # data range

_SPAN = POLY_MAX - POLY_MIN
PMIN = float(POLY_MIN - _SPAN * SPAN_FACTOR)
PMAX = float(POLY_MAX + _SPAN * SPAN_FACTOR)
PINV = float(1.0 / (PMAX - PMIN))

# lower-triangular pairs (row j, source col k), grouped by source column.
PAIRS = [(1, 0), (2, 0), (3, 0), (2, 1), (3, 1), (3, 2)]
P = len(PAIRS)                                            # D*(D-1)/2 = 6
PAIR_IDX = {pair: idx for idx, pair in enumerate(PAIRS)}
# (source col k, start pair index, end pair index) — contiguous by construction
GROUPS = [(0, 0, 3), (1, 3, 5), (2, 5, 6)]

SUB = 8          # sublane rows per inner iteration -> one full f32 vreg per tile
LANES = 128


# ---------------- sparse row algebra helpers (trace-time only) ----------------
def _mul(a, b):
    """a, b in {None (zero), python float (constant), (SUB, 128) array}."""
    if a is None or b is None:
        return None
    if isinstance(a, float) and isinstance(b, float):
        return a * b
    if isinstance(a, float):
        return b if a == 1.0 else a * b
    if isinstance(b, float):
        return a if b == 1.0 else a * b
    return a * b


def _add(a, b):
    if a is None:
        return b
    if b is None:
        return a
    return a + b


# ---------------- Pallas kernel ----------------
def nf_mctm_kernel(ta_ref, da_ref, dc_ref, y_ref, out_ref, logd_ref, lam_ref):
    # ta_ref: SMEM (D*(M1+1),)    comb-folded transformation coeffs
    # da_ref: SMEM (D*M1,)        comb * M1 * pinv-folded derivative coeffs
    # dc_ref: SMEM (L*P*(M2+1),)  comb-folded decorrelation coeffs
    # y_ref / out_ref / logd_ref: VMEM (D, R, 128); lam_ref: VMEM (D*D, R, 128)
    n_sub = y_ref.shape[1] // SUB

    def ta(i, m):                         # scalar SMEM read
        return ta_ref[i * (M1 + 1) + m]

    def da(i, m):
        return da_ref[i * M1 + m]

    def dcf(l, p, m):
        return dc_ref[(l * P + p) * (M2 + 1) + m]

    def sub_body(s, carry):
        r0 = pl.multiple_of(s * SUB, SUB)
        y = y_ref[:, pl.ds(r0, SUB), :]                    # (D, SUB, 128)

        # ---------- Transformation: monotone Bernstein spline (shared ladder) ----------
        out = []
        logd_rows = []
        for i in range(D):
            t = jnp.clip((y[i] - PMIN) * PINV, 0.0, 1.0)   # (SUB, 128)
            u = 1.0 - t
            # interleaved homogeneous Horner for value (deg M1) and derivative (deg M1-1)
            h = ta(i, M1) * t + ta(i, M1 - 1) * u
            dh = da(i, M1 - 1) * t + da(i, M1 - 2) * u
            up = u
            for j in range(2, M1 + 1):
                up = up * u
                h = h * t + ta(i, M1 - j) * up
                if j <= M1 - 1:
                    dh = dh * t + da(i, M1 - 1 - j) * up
            out.append(h)
            # TODO(synk): no epsilon inside log(); matches the reconstructed reference
            # (softplus-cumsum keeps dh > 0 analytically).
            logd_rows.append(jnp.log(dh))

        # store log_d early (dense (D, SUB, 128) tile) to free its vregs
        logd_ref[:, pl.ds(r0, SUB), :] = jnp.stack(logd_rows, axis=0)

        # global lambda entries: None (zero) / python float / (SUB, 128) tile
        lam_g = [1.0 if i == j else None for i in range(D) for j in range(D)]

        # ---------- Decorrelation layers with interleaved flips ----------
        for l in range(L):
            pred = [None] * P
            for (k, p0, p1) in GROUPS:
                sk = jnp.clip((out[k] - PMIN) * PINV, 0.0, 1.0)   # (SUB, 128)
                uk = 1.0 - sk
                # one shared u-power ladder per source column; per-pair scalar coeffs
                accs = [dcf(l, p, M2) * sk + dcf(l, p, M2 - 1) * uk
                        for p in range(p0, p1)]
                up = uk
                for j in range(2, M2 + 1):
                    up = up * uk
                    for idx, p in enumerate(range(p0, p1)):
                        accs[idx] = accs[idx] * sk + dcf(l, p, M2 - j) * up
                for idx, p in enumerate(range(p0, p1)):
                    pred[p] = accs[idx]

            # output <- Lambda @ output  (unit lower triangular)
            new_out = []
            for i in range(D):
                row = out[i]
                for jj in range(i):
                    row = row + pred[PAIR_IDX[(i, jj)]] * out[jj]
                new_out.append(row)
            out = new_out

            # lambda used in the global product (row-flipped on even layers)
            def lam_used_entry(r, c, _l=l, _pred=pred):
                a = (D - 1 - r) if (_l % 2 == 0) else r
                if a == c:
                    return 1.0
                if (a, c) in PAIR_IDX:
                    return _pred[PAIR_IDX[(a, c)]]
                return None

            new_g = []
            for i in range(D):
                for c in range(D):
                    acc_e = None
                    for r in range(D):
                        acc_e = _add(acc_e, _mul(lam_g[i * D + r], lam_used_entry(r, c)))
                    new_g.append(acc_e)
            lam_g = new_g

            # flip variable order of the output (torch.flip along dim 1)
            out = out[::-1]

        # ---------- consolidated dense stores ----------
        out_ref[:, pl.ds(r0, SUB), :] = jnp.stack(out, axis=0)

        lam_rows = []
        for e in lam_g:
            if e is None:
                lam_rows.append(jnp.zeros((SUB, LANES), jnp.float32))
            elif isinstance(e, float):
                lam_rows.append(jnp.full((SUB, LANES), e, jnp.float32))
            else:
                lam_rows.append(e)
        lam_ref[:, pl.ds(r0, SUB), :] = jnp.stack(lam_rows, axis=0)

        return carry

    lax.fori_loop(0, n_sub, sub_body, 0)


# ---------------- wrapper (layout plumbing + param folding + pallas_call) ----------------
def nf_mctm_forward(y, trans_raw, dec_raw, block_rows=64):
    n, d = y.shape
    assert d == D

    # monotone restriction of transformation params: cumsum([p0, softplus(p1:)])
    pr = jnp.concatenate([trans_raw[:1], jax.nn.softplus(trans_raw[1:])], axis=0)
    pr = jnp.cumsum(pr, axis=0).astype(jnp.float32)                       # (M1+1, D)

    comb_t = jnp.asarray([math.comb(M1, m) for m in range(M1 + 1)], jnp.float32)
    ta = (pr * comb_t[:, None]).T.reshape(-1).astype(jnp.float32)         # (D*(M1+1),)

    dpr = pr[1:] - pr[:-1]                                                # (M1, D)
    comb_td = jnp.asarray([math.comb(M1 - 1, m) for m in range(M1)], jnp.float32)
    da = ((dpr * comb_td[:, None]).T * (float(M1) * PINV)).reshape(-1)
    da = da.astype(jnp.float32)                                           # (D*M1,)

    comb_d = jnp.asarray([math.comb(M2, m) for m in range(M2 + 1)], jnp.float32)
    dc = (dec_raw.astype(jnp.float32) * comb_d[None, :, None])            # (L, M2+1, P)
    dc = dc.transpose(0, 2, 1).reshape(-1).astype(jnp.float32)            # (L*P*(M2+1),)

    # layout plumbing: batch fills sublanes AND lanes -> (D, rows, 128)
    block_rows = max(SUB, (block_rows // SUB) * SUB)
    n_rows = pl.cdiv(n, LANES)
    n_rows8 = ((n_rows + SUB - 1) // SUB) * SUB
    R = min(block_rows, n_rows8)
    n_rows_pad = ((n_rows8 + R - 1) // R) * R
    n_pad = n_rows_pad * LANES

    y_t = jnp.pad(y.astype(jnp.float32).T, ((0, 0), (0, n_pad - n)))      # (D, n_pad)
    y_t = y_t.reshape(D, n_rows_pad, LANES)

    out_shapes = (
        jax.ShapeDtypeStruct((D, n_rows_pad, LANES), jnp.float32),        # latent output
        jax.ShapeDtypeStruct((D, n_rows_pad, LANES), jnp.float32),        # log_d
        jax.ShapeDtypeStruct((D * D, n_rows_pad, LANES), jnp.float32),    # lambda_global
    )

    smem_spec = pl.BlockSpec(memory_space=pltpu.MemorySpace.SMEM)

    out_t, logd_t, lam_t = pl.pallas_call(
        nf_mctm_kernel,
        out_shape=out_shapes,
        grid=(n_rows_pad // R,),
        in_specs=[
            smem_spec,                                      # transformation coeffs
            smem_spec,                                      # derivative coeffs
            smem_spec,                                      # decorrelation coeffs
            pl.BlockSpec((D, R, LANES), lambda i: (0, i, 0)),
        ],
        out_specs=(
            pl.BlockSpec((D, R, LANES), lambda i: (0, i, 0)),
            pl.BlockSpec((D, R, LANES), lambda i: (0, i, 0)),
            pl.BlockSpec((D * D, R, LANES), lambda i: (0, i, 0)),
        ),
        compiler_params=pltpu.CompilerParams(dimension_semantics=("parallel",)),
    )(ta, da, dc, y_t)

    out = out_t.reshape(D, n_pad)[:, :n].T
    log_d = logd_t.reshape(D, n_pad)[:, :n].T
    lam_global = lam_t.reshape(D * D, n_pad)[:, :n].T.reshape(n, D, D)

    # parameter-only ridge penalties (data independent -> plain JAX glue)
    # TODO(synk): exact penalty definitions of the original Decorrelation not verified.
    d1 = dec_raw[:, 1:, :] - dec_raw[:, :-1, :]
    d2 = dec_raw[:, 2:, :] - 2.0 * dec_raw[:, 1:-1, :] + dec_raw[:, :-2, :]
    second_order = (d2 ** 2).sum()
    first_order = (d1 ** 2).sum()
    param_ridge = (dec_raw ** 2).sum()

    return out, log_d, second_order, first_order, param_ridge, lam_global


# ---------------- pure-JAX reference (for correctness check) ----------------
def _bernstein_basis(t, deg):
    cols = [float(math.comb(deg, m)) * (t ** m) * ((1.0 - t) ** (deg - m))
            for m in range(deg + 1)]
    return jnp.stack(cols, axis=-1)


def reference_forward(y, trans_raw, dec_raw):
    n = y.shape[0]
    pr = jnp.concatenate([trans_raw[:1], jax.nn.softplus(trans_raw[1:])], axis=0)
    pr = jnp.cumsum(pr, axis=0)

    t = jnp.clip((y - PMIN) * PINV, 0.0, 1.0)
    B = _bernstein_basis(t, M1)                                 # (n, D, M1+1)
    h = jnp.einsum('ndm,md->nd', B, pr)
    Bd = _bernstein_basis(t, M1 - 1)
    dpr = pr[1:] - pr[:-1]
    dh = float(M1) * jnp.einsum('ndm,md->nd', Bd, dpr) * PINV
    log_d = jnp.log(dh)

    out = h
    lam_g = jnp.tile(jnp.eye(D, dtype=jnp.float32)[None], (n, 1, 1))
    for l in range(L):
        s = jnp.clip((out - PMIN) * PINV, 0.0, 1.0)
        Bs = _bernstein_basis(s, M2)                            # (n, D, M2+1)
        lam = jnp.tile(jnp.eye(D, dtype=jnp.float32)[None], (n, 1, 1))
        for p, (j, k) in enumerate(PAIRS):
            pred = Bs[:, k, :] @ dec_raw[l, :, p]
            lam = lam.at[:, j, k].set(pred)
        out = jnp.einsum('nij,nj->ni', lam, out)
        lam_used = lam[:, ::-1, :] if l % 2 == 0 else lam
        lam_g = jnp.einsum('nij,njk->nik', lam_g, lam_used)
        out = out[:, ::-1]
    return out, log_d, lam_g


# ---------------- main ----------------
if __name__ == "__main__":
    key = jax.random.PRNGKey(0)
    k1, k2, k3 = jax.random.split(key, 3)

    # n=8192 -> 64 sublane-rows; block_rows=16 -> grid of 4 parallel blocks
    # (>= 2 steps per TensorCore on v7x) with a 2-iteration inner 8-row loop.
    n = 8192
    y = jax.random.uniform(k1, (n, D), minval=INPUT_MIN, maxval=INPUT_MAX,
                           dtype=jnp.float32)
    trans_raw = 0.5 * jax.random.normal(k2, (M1 + 1, D), dtype=jnp.float32)
    dec_raw = 0.1 * jax.random.normal(k3, (L, M2 + 1, P), dtype=jnp.float32)

    outs = nf_mctm_forward(y, trans_raw, dec_raw, block_rows=16)
    outs = jax.block_until_ready(outs)
    out, log_d, p2, p1, p0, lam_global = outs

    ref_out, ref_logd, ref_lam = reference_forward(y, trans_raw, dec_raw)
    np.testing.assert_allclose(np.asarray(out), np.asarray(ref_out),
                               rtol=1e-3, atol=1e-3)
    np.testing.assert_allclose(np.asarray(log_d), np.asarray(ref_logd),
                               rtol=1e-3, atol=1e-3)
    np.testing.assert_allclose(np.asarray(lam_global), np.asarray(ref_lam),
                               rtol=1e-3, atol=1e-3)

    print("KERNEL_OK")
</pallas_src>

<mosaic_0001>
module attributes {stable_mosaic.version = 11 : i64} {
  func.func @nf_mctm_kernel(%arg0: i32, %arg1: memref<44xf32, #tpu.memory_space<smem>>, %arg2: memref<40xf32, #tpu.memory_space<smem>>, %arg3: memref<234xf32, #tpu.memory_space<smem>>, %arg4: memref<4x16x128xf32, #tpu.memory_space<vmem>>, %arg5: memref<4x16x128xf32, #tpu.memory_space<vmem>>, %arg6: memref<4x16x128xf32, #tpu.memory_space<vmem>>, %arg7: memref<16x16x128xf32, #tpu.memory_space<vmem>>) attributes {dimension_semantics = [#tpu.dimension_semantics<parallel>], iteration_bounds = array<i64: 4>, scalar_prefetch = 0 : i64, scratch_operands = 0 : i64, tpu.core_type = #tpu.core_type<tc>, window_params = [{transform_indices = @transform_0, window_bounds = array<i64: 44>}, {transform_indices = @transform_1, window_bounds = array<i64: 40>}, {transform_indices = @transform_2, window_bounds = array<i64: 234>}, {transform_indices = @transform_3, window_bounds = array<i64: 4, 16, 128>}, {transform_indices = @transform_4, window_bounds = array<i64: 4, 16, 128>}, {transform_indices = @transform_5, window_bounds = array<i64: 4, 16, 128>}, {transform_indices = @transform_6, window_bounds = array<i64: 16, 16, 128>}]} {
    %c0_i32 = arith.constant 0 : i32
    %c2_i32 = arith.constant 2 : i32
    %0 = arith.addi %c0_i32, %c2_i32 : i32
    %c1_i32 = arith.constant 1 : i32
    scf.for %arg8 = %c0_i32 to %0 step %c1_i32  : i32 {
      %c8_i32 = arith.constant 8 : i32
      %1 = arith.muli %arg8, %c8_i32 : i32
      %2 = tpu.assume_multiple %1, 8 : i32
      %c0 = arith.constant 0 : index
      %3 = arith.index_cast %2 : i32 to index
      %c0_1 = arith.constant 0 : index
      %4 = vector.load %arg4[%c0, %3, %c0_1] : memref<4x16x128xf32, #tpu.memory_space<vmem>>, vector<4x8x128xf32>
      %5 = vector.extract_strided_slice %4 {offsets = [0, 0, 0], sizes = [1, 8, 128], strides = [1, 1, 1]} : vector<4x8x128xf32> to vector<1x8x128xf32>
      %6 = vector.shape_cast %5 : vector<1x8x128xf32> to vector<8x128xf32>
      %cst = arith.constant -7.1999998 : f32
      %7 = vector.broadcast %cst : f32 to vector<8x128xf32>
      %8 = arith.subf %6, %7 : vector<8x128xf32>
      %cst_2 = arith.constant 0.0694444477 : f32
      %9 = vector.broadcast %cst_2 : f32 to vector<8x128xf32>
      %10 = arith.mulf %8, %9 : vector<8x128xf32>
      %cst_3 = arith.constant 0.000000e+00 : f32
      %cst_4 = arith.constant 1.000000e+00 : f32
      %11 = vector.broadcast %cst_3 : f32 to vector<8x128xf32>
      %12 = arith.maximumf %11, %10 : vector<8x128xf32>
      %13 = vector.broadcast %cst_4 : f32 to vector<8x128xf32>
      %14 = arith.minimumf %13, %12 : vector<8x128xf32>
      %cst_5 = arith.constant 1.000000e+00 : f32
      %15 = vector.broadcast %cst_5 : f32 to vector<8x128xf32>
      %16 = arith.subf %15, %14 : vector<8x128xf32>
      %c10 = arith.constant 10 : index
      %17 = memref.load %arg1[%c10] : memref<44xf32, #tpu.memory_space<smem>>
      %18 = vector.broadcast %17 : f32 to vector<8x128xf32>
      %19 = arith.mulf %18, %14 : vector<8x128xf32>
      %c9 = arith.constant 9 : index
      %20 = memref.load %arg1[%c9] : memref<44xf32, #tpu.memory_space<smem>>
      %21 = vector.broadcast %20 : f32 to vector<8x128xf32>
      %22 = arith.mulf %21, %16 : vector<8x128xf32>
      %23 = arith.addf %19, %22 : vector<8x128xf32>
      %c9_6 = arith.constant 9 : index
      %24 = memref.load %arg2[%c9_6] : memref<40xf32, #tpu.memory_space<smem>>
      %25 = vector.broadcast %24 : f32 to vector<8x128xf32>
      %26 = arith.mulf %25, %14 : vector<8x128xf32>
      %c8 = arith.constant 8 : index
      %27 = memref.load %arg2[%c8] : memref<40xf32, #tpu.memory_space<smem>>
      %28 = vector.broadcast %27 : f32 to vector<8x128xf32>
      %29 = arith.mulf %28, %16 : vector<8x128xf32>
      %30 = arith.addf %26, %29 : vector<8x128xf32>
      %31 = arith.mulf %16, %16 : vector<8x128xf32>
      %32 = arith.mulf %23, %14 : vector<8x128xf32>
      %c8_7 = arith.constant 8 : index
      %33 = memref.load %arg1[%c8_7] : memref<44xf32, #tpu.memory_space<smem>>
      %34 = vector.broadcast %33 : f32 to vector<8x128xf32>
      %35 = arith.mulf %34, %31 : vector<8x128xf32>
      %36 = arith.addf %32, %35 : vector<8x128xf32>
      %37 = arith.mulf %30, %14 : vector<8x128xf32>
      %c7 = arith.constant 7 : index
      %38 = memref.load %arg2[%c7] : memref<40xf32, #tpu.memory_space<smem>>
      %39 = vector.broadcast %38 : f32 to vector<8x128xf32>
      %40 = arith.mulf %39, %31 : vector<8x128xf32>
      %41 = arith.addf %37, %40 : vector<8x128xf32>
      %42 = arith.mulf %31, %16 : vector<8x128xf32>
      %43 = arith.mulf %36, %14 : vector<8x128xf32>
      %c7_8 = arith.constant 7 : index
      %44 = memref.load %arg1[%c7_8] : memref<44xf32, #tpu.memory_space<smem>>
      %45 = vector.broadcast %44 : f32 to vector<8x128xf32>
      %46 = arith.mulf %45, %42 : vector<8x128xf32>
      %47 = arith.addf %43, %46 : vector<8x128xf32>
      %48 = arith.mulf %41, %14 : vector<8x128xf32>
      %c6 = arith.constant 6 : index
      %49 = memref.load %arg2[%c6] : memref<40xf32, #tpu.memory_space<smem>>
      %50 = vector.broadcast %49 : f32 to vector<8x128xf32>
      %51 = arith.mulf %50, %42 : vector<8x128xf32>
      %52 = arith.addf %48, %51 : vector<8x128xf32>
      %53 = arith.mulf %42, %16 : vector<8x128xf32>
      %54 = arith.mulf %47, %14 : vector<8x128xf32>
      %c6_9 = arith.constant 6 : index
      %55 = memref.load %arg1[%c6_9] : memref<44xf32, #tpu.memory_space<smem>>
      %56 = vector.broadcast %55 : f32 to vector<8x128xf32>
      %57 = arith.mulf %56, %53 : vector<8x128xf32>
      %58 = arith.addf %54, %57 : vector<8x128xf32>
      %59 = arith.mulf %52, %14 : vector<8x128xf32>
      %c5 = arith.constant 5 : index
      %60 = memref.load %arg2[%c5] : memref<40xf32, #tpu.memory_space<smem>>
      %61 = vector.broadcast %60 : f32 to vector<8x128xf32>
      %62 = arith.mulf %61, %53 : vector<8x128xf32>
      %63 = arith.addf %59, %62 : vector<8x128xf32>
      %64 = arith.mulf %53, %16 : vector<8x128xf32>
      %65 = arith.mulf %58, %14 : vector<8x128xf32>
      %c5_10 = arith.constant 5 : index
      %66 = memref.load %arg1[%c5_10] : memref<44xf32, #tpu.memory_space<smem>>
      %67 = vector.broadcast %66 : f32 to vector<8x128xf32>
      %68 = arith.mulf %67, %64 : vector<8x128xf32>
      %69 = arith.addf %65, %68 : vector<8x128xf32>
      %70 = arith.mulf %63, %14 : vector<8x128xf32>
      %c4 = arith.constant 4 : index
      %71 = memref.load %arg2[%c4] : memref<40xf32, #tpu.memory_space<smem>>
      %72 = vector.broadcast %71 : f32 to vector<8x128xf32>
      %73 = arith.mulf %72, %64 : vector<8x128xf32>
      %74 = arith.addf %70, %73 : vector<8x128xf32>
      %75 = arith.mulf %64, %16 : vector<8x128xf32>
      %76 = arith.mulf %69, %14 : vector<8x128xf32>
      %c4_11 = arith.constant 4 : index
      %77 = memref.load %arg1[%c4_11] : memref<44xf32, #tpu.memory_space<smem>>
      %78 = vector.broadcast %77 : f32 to vector<8x128xf32>
      %79 = arith.mulf %78, %75 : vector<8x128xf32>
      %80 = arith.addf %76, %79 : vector<8x128xf32>
      %81 = arith.mulf %74, %14 : vector<8x128xf32>
      %c3 = arith.constant 3 : index
      %82 = memref.load %arg2[%c3] : memref<40xf32, #tpu.memory_space<smem>>
      %83 = vector.broadcast %82 : f32 to vector<8x128xf32>
      %84 = arith.mulf %83, %75 : vector<8x128xf32>
      %85 = arith.addf %81, %84 : vector<8x128xf32>
      %86 = arith.mulf %75, %16 : vector<8x128xf32>
      %87 = arith.mulf %80, %14 : vector<8x128xf32>
      %c3_12 = arith.constant 3 : index
      %88 = memref.load %arg1[%c3_12] : memref<44xf32, #tpu.memory_space<smem>>
      %89 = vector.broadcast %88 : f32 to vector<8x128xf32>
      %90 = arith.mulf %89, %86 : vector<8x128xf32>
      %91 = arith.addf %87, %90 : vector<8x128xf32>
      %92 = arith.mulf %85, %14 : vector<8x128xf32>
      %c2 = arith.constant 2 : index
      %93 = memref.load %arg2[%c2] : memref<40xf32, #tpu.memory_space<smem>>
      %94 = vector.broadcast %93 : f32 to vector<8x128xf32>
      %95 = arith.mulf %94, %86 : vector<8x128xf32>
      %96 = arith.addf %92, %95 : vector<8x128xf32>
      %97 = arith.mulf %86, %16 : vector<8x128xf32>
      %98 = arith.mulf %91, %14 : vector<8x128xf32>
      %c2_13 = arith.constant 2 : index
      %99 = memref.load %arg1[%c2_13] : memref<44xf32, #tpu.memory_space<smem>>
      %100 = vector.broadcast %99 : f32 to vector<8x128xf32>
      %101 = arith.mulf %100, %97 : vector<8x128xf32>
      %102 = arith.addf %98, %101 : vector<8x128xf32>
      %103 = arith.mulf %96, %14 : vector<8x128xf32>
      %c1 = arith.constant 1 : index
      %104 = memref.load %arg2[%c1] : memref<40xf32, #tpu.memory_space<smem>>
      %105 = vector.broadcast %104 : f32 to vector<8x128xf32>
      %106 = arith.mulf %105, %97 : vector<8x128xf32>
      %107 = arith.addf %103, %106 : vector<8x128xf32>
      %108 = arith.mulf %97, %16 : vector<8x128xf32>
      %109 = arith.mulf %102, %14 : vector<8x128xf32>
      %c1_14 = arith.constant 1 : index
      %110 = memref.load %arg1[%c1_14] : memref<44xf32, #tpu.memory_space<smem>>
      %111 = vector.broadcast %110 : f32 to vector<8x128xf32>
      %112 = arith.mulf %111, %108 : vector<8x128xf32>
      %113 = arith.addf %109, %112 : vector<8x128xf32>
      %114 = arith.mulf %107, %14 : vector<8x128xf32>
      %c0_15 = arith.constant 0 : index
      %115 = memref.load %arg2[%c0_15] : memref<40xf32, #tpu.memory_space<smem>>
      %116 = vector.broadcast %115 : f32 to vector<8x128xf32>
      %117 = arith.mulf %116, %108 : vector<8x128xf32>
      %118 = arith.addf %114, %117 : vector<8x128xf32>
      %119 = arith.mulf %108, %16 : vector<8x128xf32>
      %120 = arith.mulf %113, %14 : vector<8x128xf32>
      %c0_16 = arith.constant 0 : index
      %121 = memref.load %arg1[%c0_16] : memref<44xf32, #tpu.memory_space<smem>>
      %122 = vector.broadcast %121 : f32 to vector<8x128xf32>
      %123 = arith.mulf %122, %119 : vector<8x128xf32>
      %124 = arith.addf %120, %123 : vector<8x128xf32>
      %125 = math.log %118 : vector<8x128xf32>
      %126 = vector.extract_strided_slice %4 {offsets = [1, 0, 0], sizes = [1, 8, 128], strides = [1, 1, 1]} : vector<4x8x128xf32> to vector<1x8x128xf32>
      %127 = vector.shape_cast %126 : vector<1x8x128xf32> to vector<8x128xf32>
      %cst_17 = arith.constant -7.1999998 : f32
      %128 = vector.broadcast %cst_17 : f32 to vector<8x128xf32>
      %129 = arith.subf %127, %128 : vector<8x128xf32>
      %cst_18 = arith.constant 0.0694444477 : f32
      %130 = vector.broadcast %cst_18 : f32 to vector<8x128xf32>
      %131 = arith.mulf %129, %130 : vector<8x128xf32>
      %cst_19 = arith.constant 0.000000e+00 : f32
      %cst_20 = arith.constant 1.000000e+00 : f32
      %132 = vector.broadcast %cst_19 : f32 to vector<8x128xf32>
      %133 = arith.maximumf %132, %131 : vector<8x128xf32>
      %134 = vector.broadcast %cst_20 : f32 to vector<8x128xf32>
      %135 = arith.minimumf %134, %133 : vector<8x128xf32>
      %cst_21 = arith.constant 1.000000e+00 : f32
      %136 = vector.broadcast %cst_21 : f32 to vector<8x128xf32>
      %137 = arith.subf %136, %135 : vector<8x128xf32>
      %c21 = arith.constant 21 : index
      %138 = memref.load %arg1[%c21] : memref<44xf32, #tpu.memory_space<smem>>
      %139 = vector.broadcast %138 : f32 to vector<8x128xf32>
      %140 = arith.mulf %139, %135 : vector<8x128xf32>
      %c20 = arith.constant 20 : index
      %141 = memref.load %arg1[%c20] : memref<44xf32, #tpu.memory_space<smem>>
      %142 = vector.broadcast %141 : f32 to vector<8x128xf32>
      %143 = arith.mulf %142, %137 : vector<8x128xf32>
      %144 = arith.addf %140, %143 : vector<8x128xf32>
      %c19 = arith.constant 19 : index
      %145 = memref.load %arg2[%c19] : memref<40xf32, #tpu.memory_space<smem>>
      %146 = vector.broadcast %145 : f32 to vector<8x128xf32>
      %147 = arith.mulf %146, %135 : vector<8x128xf32>
      %c18 = arith.constant 18 : index
      %148 = memref.load %arg2[%c18] : memref<40xf32, #tpu.memory_space<smem>>
      %149 = vector.broadcast %148 : f32 to vector<8x128xf32>
      %150 = arith.mulf %149, %137 : vector<8x128xf32>
      %151 = arith.addf %147, %150 : vector<8x128xf32>
      %152 = arith.mulf %137, %137 : vector<8x128xf32>
      %153 = arith.mulf %144, %135 : vector<8x128xf32>
      %c19_22 = arith.constant 19 : index
      %154 = memref.load %arg1[%c19_22] : memref<44xf32, #tpu.memory_space<smem>>
      %155 = vector.broadcast %154 : f32 to vector<8x128xf32>
      %156 = arith.mulf %155, %152 : vector<8x128xf32>
      %157 = arith.addf %153, %156 : vector<8x128xf32>
      %158 = arith.mulf %151, %135 : vector<8x128xf32>
      %c17 = arith.constant 17 : index
      %159 = memref.load %arg2[%c17] : memref<40xf32, #tpu.memory_space<smem>>
      %160 = vector.broadcast %159 : f32 to vector<8x128xf32>
      %161 = arith.mulf %160, %152 : vector<8x128xf32>
      %162 = arith.addf %158, %161 : vector<8x128xf32>
      %163 = arith.mulf %152, %137 : vector<8x128xf32>
      %164 = arith.mulf %157, %135 : vector<8x128xf32>
      %c18_23 = arith.constant 18 : index
      %165 = memref.load %arg1[%c18_23] : memref<44xf32, #tpu.memory_space<smem>>
      %166 = vector.broadcast %165 : f32 to vector<8x128xf32>
      %167 = arith.mulf %166, %163 : vector<8x128xf32>
      %168 = arith.addf %164, %167 : vector<8x128xf32>
      %169 = arith.mulf %162, %135 : vector<8x128xf32>
      %c16 = arith.constant 16 : index
      %170 = memref.load %arg2[%c16] : memref<40xf32, #tpu.memory_space<smem>>
      %171 = vector.broadcast %170 : f32 to vector<8x128xf32>
      %172 = arith.mulf %171, %163 : vector<8x128xf32>
      %173 = arith.addf %169, %172 : vector<8x128xf32>
      %174 = arith.mulf %163, %137 : vector<8x128xf32>
      %175 = arith.mulf %168, %135 : vector<8x128xf32>
      %c17_24 = arith.constant 17 : index
      %176 = memref.load %arg1[%c17_24] : memref<44xf32, #tpu.memory_space<smem>>
      %177 = vector.broadcast %176 : f32 to vector<8x128xf32>
      %178 = arith.mulf %177, %174 : vector<8x128xf32>
      %179 = arith.addf %175, %178 : vector<8x128xf32>
      %180 = arith.mulf %173, %135 : vector<8x128xf32>
      %c15 = arith.constant 15 : index
      %181 = memref.load %arg2[%c15] : memref<40xf32, #tpu.memory_space<smem>>
      %182 = vector.broadcast %181 : f32 to vector<8x128xf32>
      %183 = arith.mulf %182, %174 : vector<8x128xf32>
      %184 = arith.addf %180, %183 : vector<8x128xf32>
      %185 = arith.mulf %174, %137 : vector<8x128xf32>
      %186 = arith.mulf %179, %135 : vector<8x128xf32>
      %c16_25 = arith.constant 16 : index
      %187 = memref.load %arg1[%c16_25] : memref<44xf32, #tpu.memory_space<smem>>
      %188 = vector.broadcast %187 : f32 to vector<8x128xf32>
      %189 = arith.mulf %188, %185 : vector<8x128xf32>
      %190 = arith.addf %186, %189 : vector<8x128xf32>
      %191 = arith.mulf %184, %135 : vector<8x128xf32>
      %c14 = arith.constant 14 : index
      %192 = memref.load %arg2[%c14] : memref<40xf32, #tpu.memory_space<smem>>
      %193 = vector.broadcast %192 : f32 to vector<8x128xf32>
      %194 = arith.mulf %193, %185 : vector<8x128xf32>
      %195 = arith.addf %191, %194 : vector<8x128xf32>
      %196 = arith.mulf %185, %137 : vector<8x128xf32>
      %197 = arith.mulf %190, %135 : vector<8x128xf32>
      %c15_26 = arith.constant 15 : index
      %198 = memref.load %arg1[%c15_26] : memref<44xf32, #tpu.memory_space<smem>>
      %199 = vector.broadcast %198 : f32 to vector<8x128xf32>
      %200 = arith.mulf %199, %196 : vector<8x128xf32>
      %201 = arith.addf %197, %200 : vector<8x128xf32>
      %202 = arith.mulf %195, %135 : vector<8x128xf32>
      %c13 = arith.constant 13 : index
      %203 = memref.load %arg2[%c13] : memref<40xf32, #tpu.memory_space<smem>>
      %204 = vector.broadcast %203 : f32 to vector<8x128xf32>
      %205 = arith.mulf %204, %196 : vector<8x128xf32>
      %206 = arith.addf %202, %205 : vector<8x128xf32>
      %207 = arith.mulf %196, %137 : vector<8x128xf32>
      %208 = arith.mulf %201, %135 : vector<8x128xf32>
      %c14_27 = arith.constant 14 : index
      %209 = memref.load %arg1[%c14_27] : memref<44xf32, #tpu.memory_space<smem>>
      %210 = vector.broadcast %209 : f32 to vector<8x128xf32>
      %211 = arith.mulf %210, %207 : vector<8x128xf32>
      %212 = arith.addf %208, %211 : vector<8x128xf32>
      %213 = arith.mulf %206, %135 : vector<8x128xf32>
      %c12 = arith.constant 12 : index
      %214 = memref.load %arg2[%c12] : memref<40xf32, #tpu.memory_space<smem>>
      %215 = vector.broadcast %214 : f32 to vector<8x128xf32>
      %216 = arith.mulf %215, %207 : vector<8x128xf32>
      %217 = arith.addf %213, %216 : vector<8x128xf32>
      %218 = arith.mulf %207, %137 : vector<8x128xf32>
      %219 = arith.mulf %212, %135 : vector<8x128xf32>
      %c13_28 = arith.constant 13 : index
      %220 = memref.load %arg1[%c13_28] : memref<44xf32, #tpu.memory_space<smem>>
      %221 = vector.broadcast %220 : f32 to vector<8x128xf32>
      %222 = arith.mulf %221, %218 : vector<8x128xf32>
      %223 = arith.addf %219, %222 : vector<8x128xf32>
      %224 = arith.mulf %217, %135 : vector<8x128xf32>
      %c11 = arith.constant 11 : index
      %225 = memref.load %arg2[%c11] : memref<40xf32, #tpu.memory_space<smem>>
      %226 = vector.broadcast %225 : f32 to vector<8x128xf32>
      %227 = arith.mulf %226, %218 : vector<8x128xf32>
      %228 = arith.addf %224, %227 : vector<8x128xf32>
      %229 = arith.mulf %218, %137 : vector<8x128xf32>
      %230 = arith.mulf %223, %135 : vector<8x128xf32>
      %c12_29 = arith.constant 12 : index
      %231 = memref.load %arg1[%c12_29] : memref<44xf32, #tpu.memory_space<smem>>
      %232 = vector.broadcast %231 : f32 to vector<8x128xf32>
      %233 = arith.mulf %232, %229 : vector<8x128xf32>
      %234 = arith.addf %230, %233 : vector<8x128xf32>
      %235 = arith.mulf %228, %135 : vector<8x128xf32>
      %c10_30 = arith.constant 10 : index
      %236 = memref.load %arg2[%c10_30] : memref<40xf32, #tpu.memory_space<smem>>
      %237 = vector.broadcast %236 : f32 to vector<8x128xf32>
      %238 = arith.mulf %237, %229 : vector<8x128xf32>
      %239 = arith.addf %235, %238 : vector<8x128xf32>
      %240 = arith.mulf %229, %137 : vector<8x128xf32>
      %241 = arith.mulf %234, %135 : vector<8x128xf32>
      %c11_31 = arith.constant 11 : index
      %242 = memref.load %arg1[%c11_31] : memref<44xf32, #tpu.memory_space<smem>>
      %243 = vector.broadcast %242 : f32 to vector<8x128xf32>
      %244 = arith.mulf %243, %240 : vector<8x128xf32>
      %245 = arith.addf %241, %244 : vector<8x128xf32>
      %246 = math.log %239 : vector<8x128xf32>
      %247 = vector.extract_strided_slice %4 {offsets = [2, 0, 0], sizes = [1, 8, 128], strides = [1, 1, 1]} : vector<4x8x128xf32> to vector<1x8x128xf32>
      %248 = vector.shape_cast %247 : vector<1x8x128xf32> to vector<8x128xf32>
      %cst_32 = arith.constant -7.1999998 : f32
      %249 = vector.broadcast %cst_32 : f32 to vector<8x128xf32>
      %250 = arith.subf %248, %249 : vector<8x128xf32>
      %cst_33 = arith.constant 0.0694444477 : f32
      %251 = vector.broadcast %cst_33 : f32 to vector<8x128xf32>
      %252 = arith.mulf %250, %251 : vector<8x128xf32>
      %cst_34 = arith.constant 0.000000e+00 : f32
      %cst_35 = arith.constant 1.000000e+00 : f32
      %253 = vector.broadcast %cst_34 : f32 to vector<8x128xf32>
      %254 = arith.maximumf %253, %252 : vector<8x128xf32>
      %255 = vector.broadcast %cst_35 : f32 to vector<8x128xf32>
      %256 = arith.minimumf %255, %254 : vector<8x128xf32>
      %cst_36 = arith.constant 1.000000e+00 : f32
      %257 = vector.broadcast %cst_36 : f32 to vector<8x128xf32>
      %258 = arith.subf %257, %256 : vector<8x128xf32>
      %c32 = arith.constant 32 : index
      %259 = memref.load %arg1[%c32] : memref<44xf32, #tpu.memory_space<smem>>
      %260 = vector.broadcast %259 : f32 to vector<8x128xf32>
      %261 = arith.mulf %260, %256 : vector<8x128xf32>
      %c31 = arith.constant 31 : index
      %262 = memref.load %arg1[%c31] : memref<44xf32, #tpu.memory_space<smem>>
      %263 = vector.broadcast %262 : f32 to vector<8x128xf32>
      %264 = arith.mulf %263, %258 : vector<8x128xf32>
      %265 = arith.addf %261, %264 : vector<8x128xf32>
      %c29 = arith.constant 29 : index
      %266 = memref.load %arg2[%c29] : memref<40xf32, #tpu.memory_space<smem>>
      %267 = vector.broadcast %266 : f32 to vector<8x128xf32>
      %268 = arith.mulf %267, %256 : vector<8x128xf32>
      %c28 = arith.constant 28 : index
      %269 = memref.load %arg2[%c28] : memref<40xf32, #tpu.memory_space<smem>>
      %270 = vector.broadcast %269 : f32 to vector<8x128xf32>
      %271 = arith.mulf %270, %258 : vector<8x128xf32>
      %272 = arith.addf %268, %271 : vector<8x128xf32>
      %273 = arith.mulf %258, %258 : vector<8x128xf32>
      %274 = arith.mulf %265, %256 : vector<8x128xf32>
      %c30 = arith.constant 30 : index
      %275 = memref.load %arg1[%c30] : memref<44xf32, #tpu.memory_space<smem>>
      %276 = vector.broadcast %275 : f32 to vector<8x128xf32>
      %277 = arith.mulf %276, %273 : vector<8x128xf32>
      %278 = arith.addf %274, %277 : vector<8x128xf32>
      %279 = arith.mulf %272, %256 : vector<8x128xf32>
      %c27 = arith.constant 27 : index
      %280 = memref.load %arg2[%c27] : memref<40xf32, #tpu.memory_space<smem>>
      %281 = vector.broadcast %280 : f32 to vector<8x128xf32>
      %282 = arith.mulf %281, %273 : vector<8x128xf32>
      %283 = arith.addf %279, %282 : vector<8x128xf32>
      %284 = arith.mulf %273, %258 : vector<8x128xf32>
      %285 = arith.mulf %278, %256 : vector<8x128xf32>
      %c29_37 = arith.constant 29 : index
      %286 = memref.load %arg1[%c29_37] : memref<44xf32, #tpu.memory_space<smem>>
      %287 = vector.broadcast %286 : f32 to vector<8x128xf32>
      %288 = arith.mulf %287, %284 : vector<8x128xf32>
      %289 = arith.addf %285, %288 : vector<8x128xf32>
      %290 = arith.mulf %283, %256 : vector<8x128xf32>
      %c26 = arith.constant 26 : index
      %291 = memref.load %arg2[%c26] : memref<40xf32, #tpu.memory_space<smem>>
      %292 = vector.broadcast %291 : f32 to vector<8x128xf32>
      %293 = arith.mulf %292, %284 : vector<8x128xf32>
      %294 = arith.addf %290, %293 : vector<8x128xf32>
      %295 = arith.mulf %284, %258 : vector<8x128xf32>
      %296 = arith.mulf %289, %256 : vector<8x128xf32>
      %c28_38 = arith.constant 28 : index
      %297 = memref.load %arg1[%c28_38] : memref<44xf32, #tpu.memory_space<smem>>
      %298 = vector.broadcast %297 : f32 to vector<8x128xf32>
      %299 = arith.mulf %298, %295 : vector<8x128xf32>
      %300 = arith.addf %296, %299 : vector<8x128xf32>
      %301 = arith.mulf %294, %256 : vector<8x128xf32>
      %c25 = arith.constant 25 : index
      %302 = memref.load %arg2[%c25] : memref<40xf32, #tpu.memory_space<smem>>
      %303 = vector.broadcast %302 : f32 to vector<8x128xf32>
      %304 = arith.mulf %303, %295 : vector<8x128xf32>
      %305 = arith.addf %301, %304 : vector<8x128xf32>
      %306 = arith.mulf %295, %258 : vector<8x128xf32>
      %307 = arith.mulf %300, %256 : vector<8x128xf32>
      %c27_39 = arith.constant 27 : index
      %308 = memref.load %arg1[%c27_39] : memref<44xf32, #tpu.memory_space<smem>>
      %309 = vector.broadcast %308 : f32 to vector<8x128xf32>
      %310 = arith.mulf %309, %306 : vector<8x128xf32>
      %311 = arith.addf %307, %310 : vector<8x128xf32>
      %312 = arith.mulf %305, %256 : vector<8x128xf32>
      %c24 = arith.constant 24 : index
      %313 = memref.load %arg2[%c24] : memref<40xf32, #tpu.memory_space<smem>>
      %314 = vector.broadcast %313 : f32 to vector<8x128xf32>
      %315 = arith.mulf %314, %306 : vector<8x128xf32>
      %316 = arith.addf %312, %315 : vector<8x128xf32>
      %317 = arith.mulf %306, %258 : vector<8x128xf32>
      %318 = arith.mulf %311, %256 : vector<8x128xf32>
      %c26_40 = arith.constant 26 : index
      %319 = memref.load %arg1[%c26_40] : memref<44xf32, #tpu.memory_space<smem>>
      %320 = vector.broadcast %319 : f32 to vector<8x128xf32>
      %321 = arith.mulf %320, %317 : vector<8x128xf32>
      %322 = arith.addf %318, %321 : vector<8x128xf32>
      %323 = arith.mulf %316, %256 : vector<8x128xf32>
      %c23 = arith.constant 23 : index
      %324 = memref.load %arg2[%c23] : memref<40xf32, #tpu.memory_space<smem>>
      %325 = vector.broadcast %324 : f32 to vector<8x128xf32>
      %326 = arith.mulf %325, %317 : vector<8x128xf32>
      %327 = arith.addf %323, %326 : vector<8x128xf32>
      %328 = arith.mulf %317, %258 : vector<8x128xf32>
      %329 = arith.mulf %322, %256 : vector<8x128xf32>
      %c25_41 = arith.constant 25 : index
      %330 = memref.load %arg1[%c25_41] : memref<44xf32, #tpu.memory_space<smem>>
      %331 = vector.broadcast %330 : f32 to vector<8x128xf32>
      %332 = arith.mulf %331, %328 : vector<8x128xf32>
      %333 = arith.addf %329, %332 : vector<8x128xf32>
      %334 = arith.mulf %327, %256 : vector<8x128xf32>
      %c22 = arith.constant 22 : index
      %335 = memref.load %arg2[%c22] : memref<40xf32, #tpu.memory_space<smem>>
      %336 = vector.broadcast %335 : f32 to vector<8x128xf32>
      %337 = arith.mulf %336, %328 : vector<8x128xf32>
      %338 = arith.addf %334, %337 : vector<8x128xf32>
      %339 = arith.mulf %328, %258 : vector<8x128xf32>
      %340 = arith.mulf %333, %256 : vector<8x128xf32>
      %c24_42 = arith.constant 24 : index
      %341 = memref.load %arg1[%c24_42] : memref<44xf32, #tpu.memory_space<smem>>
      %342 = vector.broadcast %341 : f32 to vector<8x128xf32>
      %343 = arith.mulf %342, %339 : vector<8x128xf32>
      %344 = arith.addf %340, %343 : vector<8x128xf32>
      %345 = arith.mulf %338, %256 : vector<8x128xf32>
      %c21_43 = arith.constant 21 : index
      %346 = memref.load %arg2[%c21_43] : memref<40xf32, #tpu.memory_space<smem>>
      %347 = vector.broadcast %346 : f32 to vector<8x128xf32>
      %348 = arith.mulf %347, %339 : vector<8x128xf32>
      %349 = arith.addf %345, %348 : vector<8x128xf32>
      %350 = arith.mulf %339, %258 : vector<8x128xf32>
      %351 = arith.mulf %344, %256 : vector<8x128xf32>
      %c23_44 = arith.constant 23 : index
      %352 = memref.load %arg1[%c23_44] : memref<44xf32, #tpu.memory_space<smem>>
      %353 = vector.broadcast %352 : f32 to vector<8x128xf32>
      %354 = arith.mulf %353, %350 : vector<8x128xf32>
      %355 = arith.addf %351, %354 : vector<8x128xf32>
      %356 = arith.mulf %349, %256 : vector<8x128xf32>
      %c20_45 = arith.constant 20 : index
      %357 = memref.load %arg2[%c20_45] : memref<40xf32, #tpu.memory_space<smem>>
      %358 = vector.broadcast %357 : f32 to vector<8x128xf32>
      %359 = arith.mulf %358, %350 : vector<8x128xf32>
      %360 = arith.addf %356, %359 : vector<8x128xf32>
      %361 = arith.mulf %350, %258 : vector<8x128xf32>
      %362 = arith.mulf %355, %256 : vector<8x128xf32>
      %c22_46 = arith.constant 22 : index
      %363 = memref.load %arg1[%c22_46] : memref<44xf32, #tpu.memory_space<smem>>
      %364 = vector.broadcast %363 : f32 to vector<8x128xf32>
      %365 = arith.mulf %364, %361 : vector<8x128xf32>
      %366 = arith.addf %362, %365 : vector<8x128xf32>
      %367 = math.log %360 : vector<8x128xf32>
      %368 = vector.extract_strided_slice %4 {offsets = [3, 0, 0], sizes = [1, 8, 128], strides = [1, 1, 1]} : vector<4x8x128xf32> to vector<1x8x128xf32>
      %369 = vector.shape_cast %368 : vector<1x8x128xf32> to vector<8x128xf32>
      %cst_47 = arith.constant -7.1999998 : f32
      %370 = vector.broadcast %cst_47 : f32 to vector<8x128xf32>
      %371 = arith.subf %369, %370 : vector<8x128xf32>
      %cst_48 = arith.constant 0.0694444477 : f32
      %372 = vector.broadcast %cst_48 : f32 to vector<8x128xf32>
      %373 = arith.mulf %371, %372 : vector<8x128xf32>
      %cst_49 = arith.constant 0.000000e+00 : f32
      %cst_50 = arith.constant 1.000000e+00 : f32
      %374 = vector.broadcast %cst_49 : f32 to vector<8x128xf32>
      %375 = arith.maximumf %374, %373 : vector<8x128xf32>
      %376 = vector.broadcast %cst_50 : f32 to vector<8x128xf32>
      %377 = arith.minimumf %376, %375 : vector<8x128xf32>
      %cst_51 = arith.constant 1.000000e+00 : f32
      %378 = vector.broadcast %cst_51 : f32 to vector<8x128xf32>
      %379 = arith.subf %378, %377 : vector<8x128xf32>
      %c43 = arith.constant 43 : index
      %380 = memref.load %arg1[%c43] : memref<44xf32, #tpu.memory_space<smem>>
      %381 = vector.broadcast %380 : f32 to vector<8x128xf32>
      %382 = arith.mulf %381, %377 : vector<8x128xf32>
      %c42 = arith.constant 42 : index
      %383 = memref.load %arg1[%c42] : memref<44xf32, #tpu.memory_space<smem>>
      %384 = vector.broadcast %383 : f32 to vector<8x128xf32>
      %385 = arith.mulf %384, %379 : vector<8x128xf32>
      %386 = arith.addf %382, %385 : vector<8x128xf32>
      %c39 = arith.constant 39 : index
      %387 = memref.load %arg2[%c39] : memref<40xf32, #tpu.memory_space<smem>>
      %388 = vector.broadcast %387 : f32 to vector<8x128xf32>
      %389 = arith.mulf %388, %377 : vector<8x128xf32>
      %c38 = arith.constant 38 : index
      %390 = memref.load %arg2[%c38] : memref<40xf32, #tpu.memory_space<smem>>
      %391 = vector.broadcast %390 : f32 to vector<8x128xf32>
      %392 = arith.mulf %391, %379 : vector<8x128xf32>
      %393 = arith.addf %389, %392 : vector<8x128xf32>
      %394 = arith.mulf %379, %379 : vector<8x128xf32>
      %395 = arith.mulf %386, %377 : vector<8x128xf32>
      %c41 = arith.constant 41 : index
      %396 = memref.load %arg1[%c41] : memref<44xf32, #tpu.memory_space<smem>>
      %397 = vector.broadcast %396 : f32 to vector<8x128xf32>
      %398 = arith.mulf %397, %394 : vector<8x128xf32>
      %399 = arith.addf %395, %398 : vector<8x128xf32>
      %400 = arith.mulf %393, %377 : vector<8x128xf32>
      %c37 = arith.constant 37 : index
      %401 = memref.load %arg2[%c37] : memref<40xf32, #tpu.memory_space<smem>>
      %402 = vector.broadcast %401 : f32 to vector<8x128xf32>
      %403 = arith.mulf %402, %394 : vector<8x128xf32>
      %404 = arith.addf %400, %403 : vector<8x128xf32>
      %405 = arith.mulf %394, %379 : vector<8x128xf32>
      %406 = arith.mulf %399, %377 : vector<8x128xf32>
      %c40 = arith.constant 40 : index
      %407 = memref.load %arg1[%c40] : memref<44xf32, #tpu.memory_space<smem>>
      %408 = vector.broadcast %407 : f32 to vector<8x128xf32>
      %409 = arith.mulf %408, %405 : vector<8x128xf32>
      %410 = arith.addf %406, %409 : vector<8x128xf32>
      %411 = arith.mulf %404, %377 : vector<8x128xf32>
      %c36 = arith.constant 36 : index
      %412 = memref.load %arg2[%c36] : memref<40xf32, #tpu.memory_space<smem>>
      %413 = vector.broadcast %412 : f32 to vector<8x128xf32>
      %414 = arith.mulf %413, %405 : vector<8x128xf32>
      %415 = arith.addf %411, %414 : vector<8x128xf32>
      %416 = arith.mulf %405, %379 : vector<8x128xf32>
      %417 = arith.mulf %410, %377 : vector<8x128xf32>
      %c39_52 = arith.constant 39 : index
      %418 = memref.load %arg1[%c39_52] : memref<44xf32, #tpu.memory_space<smem>>
      %419 = vector.broadcast %418 : f32 to vector<8x128xf32>
      %420 = arith.mulf %419, %416 : vector<8x128xf32>
      %421 = arith.addf %417, %420 : vector<8x128xf32>
      %422 = arith.mulf %415, %377 : vector<8x128xf32>
      %c35 = arith.constant 35 : index
      %423 = memref.load %arg2[%c35] : memref<40xf32, #tpu.memory_space<smem>>
      %424 = vector.broadcast %423 : f32 to vector<8x128xf32>
      %425 = arith.mulf %424, %416 : vector<8x128xf32>
      %426 = arith.addf %422, %425 : vector<8x128xf32>
      %427 = arith.mulf %416, %379 : vector<8x128xf32>
      %428 = arith.mulf %421, %377 : vector<8x128xf32>
      %c38_53 = arith.constant 38 : index
      %429 = memref.load %arg1[%c38_53] : memref<44xf32, #tpu.memory_space<smem>>
      %430 = vector.broadcast %429 : f32 to vector<8x128xf32>
      %431 = arith.mulf %430, %427 : vector<8x128xf32>
      %432 = arith.addf %428, %431 : vector<8x128xf32>
      %433 = arith.mulf %426, %377 : vector<8x128xf32>
      %c34 = arith.constant 34 : index
      %434 = memref.load %arg2[%c34] : memref<40xf32, #tpu.memory_space<smem>>
      %435 = vector.broadcast %434 : f32 to vector<8x128xf32>
      %436 = arith.mulf %435, %427 : vector<8x128xf32>
      %437 = arith.addf %433, %436 : vector<8x128xf32>
      %438 = arith.mulf %427, %379 : vector<8x128xf32>
      %439 = arith.mulf %432, %377 : vector<8x128xf32>
      %c37_54 = arith.constant 37 : index
      %440 = memref.load %arg1[%c37_54] : memref<44xf32, #tpu.memory_space<smem>>
      %441 = vector.broadcast %440 : f32 to vector<8x128xf32>
      %442 = arith.mulf %441, %438 : vector<8x128xf32>
      %443 = arith.addf %439, %442 : vector<8x128xf32>
      %444 = arith.mulf %437, %377 : vector<8x128xf32>
      %c33 = arith.constant 33 : index
      %445 = memref.load %arg2[%c33] : memref<40xf32, #tpu.memory_space<smem>>
      %446 = vector.broadcast %445 : f32 to vector<8x128xf32>
      %447 = arith.mulf %446, %438 : vector<8x128xf32>
      %448 = arith.addf %444, %447 : vector<8x128xf32>
      %449 = arith.mulf %438, %379 : vector<8x128xf32>
      %450 = arith.mulf %443, %377 : vector<8x128xf32>
      %c36_55 = arith.constant 36 : index
      %451 = memref.load %arg1[%c36_55] : memref<44xf32, #tpu.memory_space<smem>>
      %452 = vector.broadcast %451 : f32 to vector<8x128xf32>
      %453 = arith.mulf %452, %449 : vector<8x128xf32>
      %454 = arith.addf %450, %453 : vector<8x128xf32>
      %455 = arith.mulf %448, %377 : vector<8x128xf32>
      %c32_56 = arith.constant 32 : index
      %456 = memref.load %arg2[%c32_56] : memref<40xf32, #tpu.memory_space<smem>>
      %457 = vector.broadcast %456 : f32 to vector<8x128xf32>
      %458 = arith.mulf %457, %449 : vector<8x128xf32>
      %459 = arith.addf %455, %458 : vector<8x128xf32>
      %460 = arith.mulf %449, %379 : vector<8x128xf32>
      %461 = arith.mulf %454, %377 : vector<8x128xf32>
      %c35_57 = arith.constant 35 : index
      %462 = memref.load %arg1[%c35_57] : memref<44xf32, #tpu.memory_space<smem>>
      %463 = vector.broadcast %462 : f32 to vector<8x128xf32>
      %464 = arith.mulf %463, %460 : vector<8x128xf32>
      %465 = arith.addf %461, %464 : vector<8x128xf32>
      %466 = arith.mulf %459, %377 : vector<8x128xf32>
      %c31_58 = arith.constant 31 : index
      %467 = memref.load %arg2[%c31_58] : memref<40xf32, #tpu.memory_space<smem>>
      %468 = vector.broadcast %467 : f32 to vector<8x128xf32>
      %469 = arith.mulf %468, %460 : vector<8x128xf32>
      %470 = arith.addf %466, %469 : vector<8x128xf32>
      %471 = arith.mulf %460, %379 : vector<8x128xf32>
      %472 = arith.mulf %465, %377 : vector<8x128xf32>
      %c34_59 = arith.constant 34 : index
      %473 = memref.load %arg1[%c34_59] : memref<44xf32, #tpu.memory_space<smem>>
      %474 = vector.broadcast %473 : f32 to vector<8x128xf32>
      %475 = arith.mulf %474, %471 : vector<8x128xf32>
      %476 = arith.addf %472, %475 : vector<8x128xf32>
      %477 = arith.mulf %470, %377 : vector<8x128xf32>
      %c30_60 = arith.constant 30 : index
      %478 = memref.load %arg2[%c30_60] : memref<40xf32, #tpu.memory_space<smem>>
      %479 = vector.broadcast %478 : f32 to vector<8x128xf32>
      %480 = arith.mulf %479, %471 : vector<8x128xf32>
      %481 = arith.addf %477, %480 : vector<8x128xf32>
      %482 = arith.mulf %471, %379 : vector<8x128xf32>
      %483 = arith.mulf %476, %377 : vector<8x128xf32>
      %c33_61 = arith.constant 33 : index
      %484 = memref.load %arg1[%c33_61] : memref<44xf32, #tpu.memory_space<smem>>
      %485 = vector.broadcast %484 : f32 to vector<8x128xf32>
      %486 = arith.mulf %485, %482 : vector<8x128xf32>
      %487 = arith.addf %483, %486 : vector<8x128xf32>
      %488 = math.log %481 : vector<8x128xf32>
      %489 = vector.shape_cast %125 : vector<8x128xf32> to vector<1x8x128xf32>
      %490 = vector.shape_cast %246 : vector<8x128xf32> to vector<1x8x128xf32>
      %491 = vector.shape_cast %367 : vector<8x128xf32> to vector<1x8x128xf32>
      %492 = vector.shape_cast %488 : vector<8x128xf32> to vector<1x8x128xf32>
      %493 = tpu.concatenate %489, %490, %491, %492 in 0 : vector<1x8x128xf32>, vector<1x8x128xf32>, vector<1x8x128xf32>, vector<1x8x128xf32> -> vector<4x8x128xf32>
      %c0_62 = arith.constant 0 : index
      %494 = arith.index_cast %2 : i32 to index
      %c0_63 = arith.constant 0 : index
      %495 = vector.load %arg6[%c0_62, %494, %c0_63] : memref<4x16x128xf32, #tpu.memory_space<vmem>>, vector<4x8x128xf32>
      tpu.vector_store %arg6[%c0_62, %494, %c0_63], %493 {strides = array<i32>} : memref<4x16x128xf32, #tpu.memory_space<vmem>>, vector<4x8x128xf32>,
      %cst_64 = arith.constant -7.1999998 : f32
      %496 = vector.broadcast %cst_64 : f32 to vector<8x128xf32>
      %497 = arith.subf %124, %496 : vector<8x128xf32>
      %cst_65 = arith.constant 0.0694444477 : f32
      %498 = vector.broadcast %cst_65 : f32 to vector<8x128xf32>
      %499 = arith.mulf %497, %498 : vector<8x128xf32>
      %cst_66 = arith.constant 0.000000e+00 : f32
      %cst_67 = arith.constant 1.000000e+00 : f32
      %500 = vector.broadcast %cst_66 : f32 to vector<8x128xf32>
      %501 = arith.maximumf %500, %499 : vector<8x128xf32>
      %502 = vector.broadcast %cst_67 : f32 to vector<8x128xf32>
      %503 = arith.minimumf %502, %501 : vector<8x128xf32>
      %cst_68 = arith.constant 1.000000e+00 : f32
      %504 = vector.broadcast %cst_68 : f32 to vector<8x128xf32>
      %505 = arith.subf %504, %503 : vector<8x128xf32>
      %c12_69 = arith.constant 12 : index
      %506 = memref.load %arg3[%c12_69] : memref<234xf32, #tpu.memory_space<smem>>
      %507 = vector.broadcast %506 : f32 to vector<8x128xf32>
      %508 = arith.mulf %507, %503 : vector<8x128xf32>
      %c11_70 = arith.constant 11 : index
      %509 = memref.load %arg3[%c11_70] : memref<234xf32, #tpu.memory_space<smem>>
      %510 = vector.broadcast %509 : f32 to vector<8x128xf32>
      %511 = arith.mulf %510, %505 : vector<8x128xf32>
      %512 = arith.addf %508, %511 : vector<8x128xf32>
      %c25_71 = arith.constant 25 : index
      %513 = memref.load %arg3[%c25_71] : memref<234xf32, #tpu.memory_space<smem>>
      %514 = vector.broadcast %513 : f32 to vector<8x128xf32>
      %515 = arith.mulf %514, %503 : vector<8x128xf32>
      %c24_72 = arith.constant 24 : index
      %516 = memref.load %arg3[%c24_72] : memref<234xf32, #tpu.memory_space<smem>>
      %517 = vector.broadcast %516 : f32 to vector<8x128xf32>
      %518 = arith.mulf %517, %505 : vector<8x128xf32>
      %519 = arith.addf %515, %518 : vector<8x128xf32>
      %c38_73 = arith.constant 38 : index
      %520 = memref.load %arg3[%c38_73] : memref<234xf32, #tpu.memory_space<smem>>
      %521 = vector.broadcast %520 : f32 to vector<8x128xf32>
      %522 = arith.mulf %521, %503 : vector<8x128xf32>
      %c37_74 = arith.constant 37 : index
      %523 = memref.load %arg3[%c37_74] : memref<234xf32, #tpu.memory_space<smem>>
      %524 = vector.broadcast %523 : f32 to vector<8x128xf32>
      %525 = arith.mulf %524, %505 : vector<8x128xf32>
      %526 = arith.addf %522, %525 : vector<8x128xf32>
      %527 = arith.mulf %505, %505 : vector<8x128xf32>
      %528 = arith.mulf %512, %503 : vector<8x128xf32>
      %c10_75 = arith.constant 10 : index
      %529 = memref.load %arg3[%c10_75] : memref<234xf32, #tpu.memory_space<smem>>
      %530 = vector.broadcast %529 : f32 to vector<8x128xf32>
      %531 = arith.mulf %530, %527 : vector<8x128xf32>
      %532 = arith.addf %528, %531 : vector<8x128xf32>
      %533 = arith.mulf %519, %503 : vector<8x128xf32>
      %c23_76 = arith.constant 23 : index
      %534 = memref.load %arg3[%c23_76] : memref<234xf32, #tpu.memory_space<smem>>
      %535 = vector.broadcast %534 : f32 to vector<8x128xf32>
      %536 = arith.mulf %535, %527 : vector<8x128xf32>
      %537 = arith.addf %533, %536 : vector<8x128xf32>
      %538 = arith.mulf %526, %503 : vector<8x128xf32>
      %c36_77 = arith.constant 36 : index
      %539 = memref.load %arg3[%c36_77] : memref<234xf32, #tpu.memory_space<smem>>
      %540 = vector.broadcast %539 : f32 to vector<8x128xf32>
      %541 = arith.mulf %540, %527 : vector<8x128xf32>
      %542 = arith.addf %538, %541 : vector<8x128xf32>
      %543 = arith.mulf %527, %505 : vector<8x128xf32>
      %544 = arith.mulf %532, %503 : vector<8x128xf32>
      %c9_78 = arith.constant 9 : index
      %545 = memref.load %arg3[%c9_78] : memref<234xf32, #tpu.memory_space<smem>>
      %546 = vector.broadcast %545 : f32 to vector<8x128xf32>
      %547 = arith.mulf %546, %543 : vector<8x128xf32>
      %548 = arith.addf %544, %547 : vector<8x128xf32>
      %549 = arith.mulf %537, %503 : vector<8x128xf32>
      %c22_79 = arith.constant 22 : index
      %550 = memref.load %arg3[%c22_79] : memref<234xf32, #tpu.memory_space<smem>>
      %551 = vector.broadcast %550 : f32 to vector<8x128xf32>
      %552 = arith.mulf %551, %543 : vector<8x128xf32>
      %553 = arith.addf %549, %552 : vector<8x128xf32>
      %554 = arith.mulf %542, %503 : vector<8x128xf32>
      %c35_80 = arith.constant 35 : index
      %555 = memref.load %arg3[%c35_80] : memref<234xf32, #tpu.memory_space<smem>>
      %556 = vector.broadcast %555 : f32 to vector<8x128xf32>
      %557 = arith.mulf %556, %543 : vector<8x128xf32>
      %558 = arith.addf %554, %557 : vector<8x128xf32>
      %559 = arith.mulf %543, %505 : vector<8x128xf32>
      %560 = arith.mulf %548, %503 : vector<8x128xf32>
      %c8_81 = arith.constant 8 : index
      %561 = memref.load %arg3[%c8_81] : memref<234xf32, #tpu.memory_space<smem>>
      %562 = vector.broadcast %561 : f32 to vector<8x128xf32>
      %563 = arith.mulf %562, %559 : vector<8x128xf32>
      %564 = arith.addf %560, %563 : vector<8x128xf32>
      %565 = arith.mulf %553, %503 : vector<8x128xf32>
      %c21_82 = arith.constant 21 : index
      %566 = memref.load %arg3[%c21_82] : memref<234xf32, #tpu.memory_space<smem>>
      %567 = vector.broadcast %566 : f32 to vector<8x128xf32>
      %568 = arith.mulf %567, %559 : vector<8x128xf32>
      %569 = arith.addf %565, %568 : vector<8x128xf32>
      %570 = arith.mulf %558, %503 : vector<8x128xf32>
      %c34_83 = arith.constant 34 : index
      %571 = memref.load %arg3[%c34_83] : memref<234xf32, #tpu.memory_space<smem>>
      %572 = vector.broadcast %571 : f32 to vector<8x128xf32>
      %573 = arith.mulf %572, %559 : vector<8x128xf32>
      %574 = arith.addf %570, %573 : vector<8x128xf32>
      %575 = arith.mulf %559, %505 : vector<8x128xf32>
      %576 = arith.mulf %564, %503 : vector<8x128xf32>
      %c7_84 = arith.constant 7 : index
      %577 = memref.load %arg3[%c7_84] : memref<234xf32, #tpu.memory_space<smem>>
      %578 = vector.broadcast %577 : f32 to vector<8x128xf32>
      %579 = arith.mulf %578, %575 : vector<8x128xf32>
      %580 = arith.addf %576, %579 : vector<8x128xf32>
      %581 = arith.mulf %569, %503 : vector<8x128xf32>
      %c20_85 = arith.constant 20 : index
      %582 = memref.load %arg3[%c20_85] : memref<234xf32, #tpu.memory_space<smem>>
      %583 = vector.broadcast %582 : f32 to vector<8x128xf32>
      %584 = arith.mulf %583, %575 : vector<8x128xf32>
      %585 = arith.addf %581, %584 : vector<8x128xf32>
      %586 = arith.mulf %574, %503 : vector<8x128xf32>
      %c33_86 = arith.constant 33 : index
      %587 = memref.load %arg3[%c33_86] : memref<234xf32, #tpu.memory_space<smem>>
      %588 = vector.broadcast %587 : f32 to vector<8x128xf32>
      %589 = arith.mulf %588, %575 : vector<8x128xf32>
      %590 = arith.addf %586, %589 : vector<8x128xf32>
      %591 = arith.mulf %575, %505 : vector<8x128xf32>
      %592 = arith.mulf %580, %503 : vector<8x128xf32>
      %c6_87 = arith.constant 6 : index
      %593 = memref.load %arg3[%c6_87] : memref<234xf32, #tpu.memory_space<smem>>
      %594 = vector.broadcast %593 : f32 to vector<8x128xf32>
      %595 = arith.mulf %594, %591 : vector<8x128xf32>
      %596 = arith.addf %592, %595 : vector<8x128xf32>
      %597 = arith.mulf %585, %503 : vector<8x128xf32>
      %c19_88 = arith.constant 19 : index
      %598 = memref.load %arg3[%c19_88] : memref<234xf32, #tpu.memory_space<smem>>
      %599 = vector.broadcast %598 : f32 to vector<8x128xf32>
      %600 = arith.mulf %599, %591 : vector<8x128xf32>
      %601 = arith.addf %597, %600 : vector<8x128xf32>
      %602 = arith.mulf %590, %503 : vector<8x128xf32>
      %c32_89 = arith.constant 32 : index
      %603 = memref.load %arg3[%c32_89] : memref<234xf32, #tpu.memory_space<smem>>
      %604 = vector.broadcast %603 : f32 to vector<8x128xf32>
      %605 = arith.mulf %604, %591 : vector<8x128xf32>
      %606 = arith.addf %602, %605 : vector<8x128xf32>
      %607 = arith.mulf %591, %505 : vector<8x128xf32>
      %608 = arith.mulf %596, %503 : vector<8x128xf32>
      %c5_90 = arith.constant 5 : index
      %609 = memref.load %arg3[%c5_90] : memref<234xf32, #tpu.memory_space<smem>>
      %610 = vector.broadcast %609 : f32 to vector<8x128xf32>
      %611 = arith.mulf %610, %607 : vector<8x128xf32>
      %612 = arith.addf %608, %611 : vector<8x128xf32>
      %613 = arith.mulf %601, %503 : vector<8x128xf32>
      %c18_91 = arith.constant 18 : index
      %614 = memref.load %arg3[%c18_91] : memref<234xf32, #tpu.memory_space<smem>>
      %615 = vector.broadcast %614 : f32 to vector<8x128xf32>
      %616 = arith.mulf %615, %607 : vector<8x128xf32>
      %617 = arith.addf %613, %616 : vector<8x128xf32>
      %618 = arith.mulf %606, %503 : vector<8x128xf32>
      %c31_92 = arith.constant 31 : index
      %619 = memref.load %arg3[%c31_92] : memref<234xf32, #tpu.memory_space<smem>>
      %620 = vector.broadcast %619 : f32 to vector<8x128xf32>
      %621 = arith.mulf %620, %607 : vector<8x128xf32>
      %622 = arith.addf %618, %621 : vector<8x128xf32>
      %623 = arith.mulf %607, %505 : vector<8x128xf32>
      %624 = arith.mulf %612, %503 : vector<8x128xf32>
      %c4_93 = arith.constant 4 : index
      %625 = memref.load %arg3[%c4_93] : memref<234xf32, #tpu.memory_space<smem>>
      %626 = vector.broadcast %625 : f32 to vector<8x128xf32>
      %627 = arith.mulf %626, %623 : vector<8x128xf32>
      %628 = arith.addf %624, %627 : vector<8x128xf32>
      %629 = arith.mulf %617, %503 : vector<8x128xf32>
      %c17_94 = arith.constant 17 : index
      %630 = memref.load %arg3[%c17_94] : memref<234xf32, #tpu.memory_space<smem>>
      %631 = vector.broadcast %630 : f32 to vector<8x128xf32>
      %632 = arith.mulf %631, %623 : vector<8x128xf32>
      %633 = arith.addf %629, %632 : vector<8x128xf32>
      %634 = arith.mulf %622, %503 : vector<8x128xf32>
      %c30_95 = arith.constant 30 : index
      %635 = memref.load %arg3[%c30_95] : memref<234xf32, #tpu.memory_space<smem>>
      %636 = vector.broadcast %635 : f32 to vector<8x128xf32>
      %637 = arith.mulf %636, %623 : vector<8x128xf32>
      %638 = arith.addf %634, %637 : vector<8x128xf32>
      %639 = arith.mulf %623, %505 : vector<8x128xf32>
      %640 = arith.mulf %628, %503 : vector<8x128xf32>
      %c3_96 = arith.constant 3 : index
      %641 = memref.load %arg3[%c3_96] : memref<234xf32, #tpu.memory_space<smem>>
      %642 = vector.broadcast %641 : f32 to vector<8x128xf32>
      %643 = arith.mulf %642, %639 : vector<8x128xf32>
      %644 = arith.addf %640, %643 : vector<8x128xf32>
      %645 = arith.mulf %633, %503 : vector<8x128xf32>
      %c16_97 = arith.constant 16 : index
      %646 = memref.load %arg3[%c16_97] : memref<234xf32, #tpu.memory_space<smem>>
      %647 = vector.broadcast %646 : f32 to vector<8x128xf32>
      %648 = arith.mulf %647, %639 : vector<8x128xf32>
      %649 = arith.addf %645, %648 : vector<8x128xf32>
      %650 = arith.mulf %638, %503 : vector<8x128xf32>
      %c29_98 = arith.constant 29 : index
      %651 = memref.load %arg3[%c29_98] : memref<234xf32, #tpu.memory_space<smem>>
      %652 = vector.broadcast %651 : f32 to vector<8x128xf32>
      %653 = arith.mulf %652, %639 : vector<8x128xf32>
      %654 = arith.addf %650, %653 : vector<8x128xf32>
      %655 = arith.mulf %639, %505 : vector<8x128xf32>
      %656 = arith.mulf %644, %503 : vector<8x128xf32>
      %c2_99 = arith.constant 2 : index
      %657 = memref.load %arg3[%c2_99] : memref<234xf32, #tpu.memory_space<smem>>
      %658 = vector.broadcast %657 : f32 to vector<8x128xf32>
      %659 = arith.mulf %658, %655 : vector<8x128xf32>
      %660 = arith.addf %656, %659 : vector<8x128xf32>
      %661 = arith.mulf %649, %503 : vector<8x128xf32>
      %c15_100 = arith.constant 15 : index
      %662 = memref.load %arg3[%c15_100] : memref<234xf32, #tpu.memory_space<smem>>
      %663 = vector.broadcast %662 : f32 to vector<8x128xf32>
      %664 = arith.mulf %663, %655 : vector<8x128xf32>
      %665 = arith.addf %661, %664 : vector<8x128xf32>
      %666 = arith.mulf %654, %503 : vector<8x128xf32>
      %c28_101 = arith.constant 28 : index
      %667 = memref.load %arg3[%c28_101] : memref<234xf32, #tpu.memory_space<smem>>
      %668 = vector.broadcast %667 : f32 to vector<8x128xf32>
      %669 = arith.mulf %668, %655 : vector<8x128xf32>
      %670 = arith.addf %666, %669 : vector<8x128xf32>
      %671 = arith.mulf %655, %505 : vector<8x128xf32>
      %672 = arith.mulf %660, %503 : vector<8x128xf32>
      %c1_102 = arith.constant 1 : index
      %673 = memref.load %arg3[%c1_102] : memref<234xf32, #tpu.memory_space<smem>>
      %674 = vector.broadcast %673 : f32 to vector<8x128xf32>
      %675 = arith.mulf %674, %671 : vector<8x128xf32>
      %676 = arith.addf %672, %675 : vector<8x128xf32>
      %677 = arith.mulf %665, %503 : vector<8x128xf32>
      %c14_103 = arith.constant 14 : index
      %678 = memref.load %arg3[%c14_103] : memref<234xf32, #tpu.memory_space<smem>>
      %679 = vector.broadcast %678 : f32 to vector<8x128xf32>
      %680 = arith.mulf %679, %671 : vector<8x128xf32>
      %681 = arith.addf %677, %680 : vector<8x128xf32>
      %682 = arith.mulf %670, %503 : vector<8x128xf32>
      %c27_104 = arith.constant 27 : index
      %683 = memref.load %arg3[%c27_104] : memref<234xf32, #tpu.memory_space<smem>>
      %684 = vector.broadcast %683 : f32 to vector<8x128xf32>
      %685 = arith.mulf %684, %671 : vector<8x128xf32>
      %686 = arith.addf %682, %685 : vector<8x128xf32>
      %687 = arith.mulf %671, %505 : vector<8x128xf32>
      %688 = arith.mulf %676, %503 : vector<8x128xf32>
      %c0_105 = arith.constant 0 : index
      %689 = memref.load %arg3[%c0_105] : memref<234xf32, #tpu.memory_space<smem>>
      %690 = vector.broadcast %689 : f32 to vector<8x128xf32>
      %691 = arith.mulf %690, %687 : vector<8x128xf32>
      %692 = arith.addf %688, %691 : vector<8x128xf32>
      %693 = arith.mulf %681, %503 : vector<8x128xf32>
      %c13_106 = arith.constant 13 : index
      %694 = memref.load %arg3[%c13_106] : memref<234xf32, #tpu.memory_space<smem>>
      %695 = vector.broadcast %694 : f32 to vector<8x128xf32>
      %696 = arith.mulf %695, %687 : vector<8x128xf32>
      %697 = arith.addf %693, %696 : vector<8x128xf32>
      %698 = arith.mulf %686, %503 : vector<8x128xf32>
      %c26_107 = arith.constant 26 : index
      %699 = memref.load %arg3[%c26_107] : memref<234xf32, #tpu.memory_space<smem>>
      %700 = vector.broadcast %699 : f32 to vector<8x128xf32>
      %701 = arith.mulf %700, %687 : vector<8x128xf32>
      %702 = arith.addf %698, %701 : vector<8x128xf32>
      %cst_108 = arith.constant -7.1999998 : f32
      %703 = vector.broadcast %cst_108 : f32 to vector<8x128xf32>
      %704 = arith.subf %245, %703 : vector<8x128xf32>
      %cst_109 = arith.constant 0.0694444477 : f32
      %705 = vector.broadcast %cst_109 : f32 to vector<8x128xf32>
      %706 = arith.mulf %704, %705 : vector<8x128xf32>
      %cst_110 = arith.constant 0.000000e+00 : f32
      %cst_111 = arith.constant 1.000000e+00 : f32
      %707 = vector.broadcast %cst_110 : f32 to vector<8x128xf32>
      %708 = arith.maximumf %707, %706 : vector<8x128xf32>
      %709 = vector.broadcast %cst_111 : f32 to vector<8x128xf32>
      %710 = arith.minimumf %709, %708 : vector<8x128xf32>
      %cst_112 = arith.constant 1.000000e+00 : f32
      %711 = vector.broadcast %cst_112 : f32 to vector<8x128xf32>
      %712 = arith.subf %711, %710 : vector<8x128xf32>
      %c51 = arith.constant 51 : index
      %713 = memref.load %arg3[%c51] : memref<234xf32, #tpu.memory_space<smem>>
      %714 = vector.broadcast %713 : f32 to vector<8x128xf32>
      %715 = arith.mulf %714, %710 : vector<8x128xf32>
      %c50 = arith.constant 50 : index
      %716 = memref.load %arg3[%c50] : memref<234xf32, #tpu.memory_space<smem>>
      %717 = vector.broadcast %716 : f32 to vector<8x128xf32>
      %718 = arith.mulf %717, %712 : vector<8x128xf32>
      %719 = arith.addf %715, %718 : vector<8x128xf32>
      %c64 = arith.constant 64 : index
      %720 = memref.load %arg3[%c64] : memref<234xf32, #tpu.memory_space<smem>>
      %721 = vector.broadcast %720 : f32 to vector<8x128xf32>
      %722 = arith.mulf %721, %710 : vector<8x128xf32>
      %c63 = arith.constant 63 : index
      %723 = memref.load %arg3[%c63] : memref<234xf32, #tpu.memory_space<smem>>
      %724 = vector.broadcast %723 : f32 to vector<8x128xf32>
      %725 = arith.mulf %724, %712 : vector<8x128xf32>
      %726 = arith.addf %722, %725 : vector<8x128xf32>
      %727 = arith.mulf %712, %712 : vector<8x128xf32>
      %728 = arith.mulf %719, %710 : vector<8x128xf32>
      %c49 = arith.constant 49 : index
      %729 = memref.load %arg3[%c49] : memref<234xf32, #tpu.memory_space<smem>>
      %730 = vector.broadcast %729 : f32 to vector<8x128xf32>
      %731 = arith.mulf %730, %727 : vector<8x128xf32>
      %732 = arith.addf %728, %731 : vector<8x128xf32>
      %733 = arith.mulf %726, %710 : vector<8x128xf32>
      %c62 = arith.constant 62 : index
      %734 = memref.load %arg3[%c62] : memref<234xf32, #tpu.memory_space<smem>>
      %735 = vector.broadcast %734 : f32 to vector<8x128xf32>
      %736 = arith.mulf %735, %727 : vector<8x128xf32>
      %737 = arith.addf %733, %736 : vector<8x128xf32>
      %738 = arith.mulf %727, %712 : vector<8x128xf32>
      %739 = arith.mulf %732, %710 : vector<8x128xf32>
      %c48 = arith.constant 48 : index
      %740 = memref.load %arg3[%c48] : memref<234xf32, #tpu.memory_space<smem>>
      %741 = vector.broadcast %740 : f32 to vector<8x128xf32>
      %742 = arith.mulf %741, %738 : vector<8x128xf32>
      %743 = arith.addf %739, %742 : vector<8x128xf32>
      %744 = arith.mulf %737, %710 : vector<8x128xf32>
      %c61 = arith.constant 61 : index
      %745 = memref.load %arg3[%c61] : memref<234xf32, #tpu.memory_space<smem>>
      %746 = vector.broadcast %745 : f32 to vector<8x128xf32>
      %747 = arith.mulf %746, %738 : vector<8x128xf32>
      %748 = arith.addf %744, %747 : vector<8x128xf32>
      %749 = arith.mulf %738, %712 : vector<8x128xf32>
      %750 = arith.mulf %743, %710 : vector<8x128xf32>
      %c47 = arith.constant 47 : index
      %751 = memref.load %arg3[%c47] : memref<234xf32, #tpu.memory_space<smem>>
      %752 = vector.broadcast %751 : f32 to vector<8x128xf32>
      %753 = arith.mulf %752, %749 : vector<8x128xf32>
      %754 = arith.addf %750, %753 : vector<8x128xf32>
      %755 = arith.mulf %748, %710 : vector<8x128xf32>
      %c60 = arith.constant 60 : index
      %756 = memref.load %arg3[%c60] : memref<234xf32, #tpu.memory_space<smem>>
      %757 = vector.broadcast %756 : f32 to vector<8x128xf32>
      %758 = arith.mulf %757, %749 : vector<8x128xf32>
      %759 = arith.addf %755, %758 : vector<8x128xf32>
      %760 = arith.mulf %749, %712 : vector<8x128xf32>
      %761 = arith.mulf %754, %710 : vector<8x128xf32>
      %c46 = arith.constant 46 : index
      %762 = memref.load %arg3[%c46] : memref<234xf32, #tpu.memory_space<smem>>
      %763 = vector.broadcast %762 : f32 to vector<8x128xf32>
      %764 = arith.mulf %763, %760 : vector<8x128xf32>
      %765 = arith.addf %761, %764 : vector<8x128xf32>
      %766 = arith.mulf %759, %710 : vector<8x128xf32>
      %c59 = arith.constant 59 : index
      %767 = memref.load %arg3[%c59] : memref<234xf32, #tpu.memory_space<smem>>
      %768 = vector.broadcast %767 : f32 to vector<8x128xf32>
      %769 = arith.mulf %768, %760 : vector<8x128xf32>
      %770 = arith.addf %766, %769 : vector<8x128xf32>
      %771 = arith.mulf %760, %712 : vector<8x128xf32>
      %772 = arith.mulf %765, %710 : vector<8x128xf32>
      %c45 = arith.constant 45 : index
      %773 = memref.load %arg3[%c45] : memref<234xf32, #tpu.memory_space<smem>>
      %774 = vector.broadcast %773 : f32 to vector<8x128xf32>
      %775 = arith.mulf %774, %771 : vector<8x128xf32>
      %776 = arith.addf %772, %775 : vector<8x128xf32>
      %777 = arith.mulf %770, %710 : vector<8x128xf32>
      %c58 = arith.constant 58 : index
      %778 = memref.load %arg3[%c58] : memref<234xf32, #tpu.memory_space<smem>>
      %779 = vector.broadcast %778 : f32 to vector<8x128xf32>
      %780 = arith.mulf %779, %771 : vector<8x128xf32>
      %781 = arith.addf %777, %780 : vector<8x128xf32>
      %782 = arith.mulf %771, %712 : vector<8x128xf32>
      %783 = arith.mulf %776, %710 : vector<8x128xf32>
      %c44 = arith.constant 44 : index
      %784 = memref.load %arg3[%c44] : memref<234xf32, #tpu.memory_space<smem>>
      %785 = vector.broadcast %784 : f32 to vector<8x128xf32>
      %786 = arith.mulf %785, %782 : vector<8x128xf32>
      %787 = arith.addf %783, %786 : vector<8x128xf32>
      %788 = arith.mulf %781, %710 : vector<8x128xf32>
      %c57 = arith.constant 57 : index
      %789 = memref.load %arg3[%c57] : memref<234xf32, #tpu.memory_space<smem>>
      %790 = vector.broadcast %789 : f32 to vector<8x128xf32>
      %791 = arith.mulf %790, %782 : vector<8x128xf32>
      %792 = arith.addf %788, %791 : vector<8x128xf32>
      %793 = arith.mulf %782, %712 : vector<8x128xf32>
      %794 = arith.mulf %787, %710 : vector<8x128xf32>
      %c43_113 = arith.constant 43 : index
      %795 = memref.load %arg3[%c43_113] : memref<234xf32, #tpu.memory_space<smem>>
      %796 = vector.broadcast %795 : f32 to vector<8x128xf32>
      %797 = arith.mulf %796, %793 : vector<8x128xf32>
      %798 = arith.addf %794, %797 : vector<8x128xf32>
      %799 = arith.mulf %792, %710 : vector<8x128xf32>
      %c56 = arith.constant 56 : index
      %800 = memref.load %arg3[%c56] : memref<234xf32, #tpu.memory_space<smem>>
      %801 = vector.broadcast %800 : f32 to vector<8x128xf32>
      %802 = arith.mulf %801, %793 : vector<8x128xf32>
      %803 = arith.addf %799, %802 : vector<8x128xf32>
      %804 = arith.mulf %793, %712 : vector<8x128xf32>
      %805 = arith.mulf %798, %710 : vector<8x128xf32>
      %c42_114 = arith.constant 42 : index
      %806 = memref.load %arg3[%c42_114] : memref<234xf32, #tpu.memory_space<smem>>
      %807 = vector.broadcast %806 : f32 to vector<8x128xf32>
      %808 = arith.mulf %807, %804 : vector<8x128xf32>
      %809 = arith.addf %805, %808 : vector<8x128xf32>
      %810 = arith.mulf %803, %710 : vector<8x128xf32>
      %c55 = arith.constant 55 : index
      %811 = memref.load %arg3[%c55] : memref<234xf32, #tpu.memory_space<smem>>
      %812 = vector.broadcast %811 : f32 to vector<8x128xf32>
      %813 = arith.mulf %812, %804 : vector<8x128xf32>
      %814 = arith.addf %810, %813 : vector<8x128xf32>
      %815 = arith.mulf %804, %712 : vector<8x128xf32>
      %816 = arith.mulf %809, %710 : vector<8x128xf32>
      %c41_115 = arith.constant 41 : index
      %817 = memref.load %arg3[%c41_115] : memref<234xf32, #tpu.memory_space<smem>>
      %818 = vector.broadcast %817 : f32 to vector<8x128xf32>
      %819 = arith.mulf %818, %815 : vector<8x128xf32>
      %820 = arith.addf %816, %819 : vector<8x128xf32>
      %821 = arith.mulf %814, %710 : vector<8x128xf32>
      %c54 = arith.constant 54 : index
      %822 = memref.load %arg3[%c54] : memref<234xf32, #tpu.memory_space<smem>>
      %823 = vector.broadcast %822 : f32 to vector<8x128xf32>
      %824 = arith.mulf %823, %815 : vector<8x128xf32>
      %825 = arith.addf %821, %824 : vector<8x128xf32>
      %826 = arith.mulf %815, %712 : vector<8x128xf32>
      %827 = arith.mulf %820, %710 : vector<8x128xf32>
      %c40_116 = arith.constant 40 : index
      %828 = memref.load %arg3[%c40_116] : memref<234xf32, #tpu.memory_space<smem>>
      %829 = vector.broadcast %828 : f32 to vector<8x128xf32>
      %830 = arith.mulf %829, %826 : vector<8x128xf32>
      %831 = arith.addf %827, %830 : vector<8x128xf32>
      %832 = arith.mulf %825, %710 : vector<8x128xf32>
      %c53 = arith.constant 53 : index
      %833 = memref.load %arg3[%c53] : memref<234xf32, #tpu.memory_space<smem>>
      %834 = vector.broadcast %833 : f32 to vector<8x128xf32>
      %835 = arith.mulf %834, %826 : vector<8x128xf32>
      %836 = arith.addf %832, %835 : vector<8x128xf32>
      %837 = arith.mulf %826, %712 : vector<8x128xf32>
      %838 = arith.mulf %831, %710 : vector<8x128xf32>
      %c39_117 = arith.constant 39 : index
      %839 = memref.load %arg3[%c39_117] : memref<234xf32, #tpu.memory_space<smem>>
      %840 = vector.broadcast %839 : f32 to vector<8x128xf32>
      %841 = arith.mulf %840, %837 : vector<8x128xf32>
      %842 = arith.addf %838, %841 : vector<8x128xf32>
      %843 = arith.mulf %836, %710 : vector<8x128xf32>
      %c52 = arith.constant 52 : index
      %844 = memref.load %arg3[%c52] : memref<234xf32, #tpu.memory_space<smem>>
      %845 = vector.broadcast %844 : f32 to vector<8x128xf32>
      %846 = arith.mulf %845, %837 : vector<8x128xf32>
      %847 = arith.addf %843, %846 : vector<8x128xf32>
      %cst_118 = arith.constant -7.1999998 : f32
      %848 = vector.broadcast %cst_118 : f32 to vector<8x128xf32>
      %849 = arith.subf %366, %848 : vector<8x128xf32>
      %cst_119 = arith.constant 0.0694444477 : f32
      %850 = vector.broadcast %cst_119 : f32 to vector<8x128xf32>
      %851 = arith.mulf %849, %850 : vector<8x128xf32>
      %cst_120 = arith.constant 0.000000e+00 : f32
      %cst_121 = arith.constant 1.000000e+00 : f32
      %852 = vector.broadcast %cst_120 : f32 to vector<8x128xf32>
      %853 = arith.maximumf %852, %851 : vector<8x128xf32>
      %854 = vector.broadcast %cst_121 : f32 to vector<8x128xf32>
      %855 = arith.minimumf %854, %853 : vector<8x128xf32>
      %cst_122 = arith.constant 1.000000e+00 : f32
      %856 = vector.broadcast %cst_122 : f32 to vector<8x128xf32>
      %857 = arith.subf %856, %855 : vector<8x128xf32>
      %c77 = arith.constant 77 : index
      %858 = memref.load %arg3[%c77] : memref<234xf32, #tpu.memory_space<smem>>
      %859 = vector.broadcast %858 : f32 to vector<8x128xf32>
      %860 = arith.mulf %859, %855 : vector<8x128xf32>
      %c76 = arith.constant 76 : index
      %861 = memref.load %arg3[%c76] : memref<234xf32, #tpu.memory_space<smem>>
      %862 = vector.broadcast %861 : f32 to vector<8x128xf32>
      %863 = arith.mulf %862, %857 : vector<8x128xf32>
      %864 = arith.addf %860, %863 : vector<8x128xf32>
      %865 = arith.mulf %857, %857 : vector<8x128xf32>
      %866 = arith.mulf %864, %855 : vector<8x128xf32>
      %c75 = arith.constant 75 : index
      %867 = memref.load %arg3[%c75] : memref<234xf32, #tpu.memory_space<smem>>
      %868 = vector.broadcast %867 : f32 to vector<8x128xf32>
      %869 = arith.mulf %868, %865 : vector<8x128xf32>
      %870 = arith.addf %866, %869 : vector<8x128xf32>
      %871 = arith.mulf %865, %857 : vector<8x128xf32>
      %872 = arith.mulf %870, %855 : vector<8x128xf32>
      %c74 = arith.constant 74 : index
      %873 = memref.load %arg3[%c74] : memref<234xf32, #tpu.memory_space<smem>>
      %874 = vector.broadcast %873 : f32 to vector<8x128xf32>
      %875 = arith.mulf %874, %871 : vector<8x128xf32>
      %876 = arith.addf %872, %875 : vector<8x128xf32>
      %877 = arith.mulf %871, %857 : vector<8x128xf32>
      %878 = arith.mulf %876, %855 : vector<8x128xf32>
      %c73 = arith.constant 73 : index
      %879 = memref.load %arg3[%c73] : memref<234xf32, #tpu.memory_space<smem>>
      %880 = vector.broadcast %879 : f32 to vector<8x128xf32>
      %881 = arith.mulf %880, %877 : vector<8x128xf32>
      %882 = arith.addf %878, %881 : vector<8x128xf32>
      %883 = arith.mulf %877, %857 : vector<8x128xf32>
      %884 = arith.mulf %882, %855 : vector<8x128xf32>
      %c72 = arith.constant 72 : index
      %885 = memref.load %arg3[%c72] : memref<234xf32, #tpu.memory_space<smem>>
      %886 = vector.broadcast %885 : f32 to vector<8x128xf32>
      %887 = arith.mulf %886, %883 : vector<8x128xf32>
      %888 = arith.addf %884, %887 : vector<8x128xf32>
      %889 = arith.mulf %883, %857 : vector<8x128xf32>
      %890 = arith.mulf %888, %855 : vector<8x128xf32>
      %c71 = arith.constant 71 : index
      %891 = memref.load %arg3[%c71] : memref<234xf32, #tpu.memory_space<smem>>
      %892 = vector.broadcast %891 : f32 to vector<8x128xf32>
      %893 = arith.mulf %892, %889 : vector<8x128xf32>
      %894 = arith.addf %890, %893 : vector<8x128xf32>
      %895 = arith.mulf %889, %857 : vector<8x128xf32>
      %896 = arith.mulf %894, %855 : vector<8x128xf32>
      %c70 = arith.constant 70 : index
      %897 = memref.load %arg3[%c70] : memref<234xf32, #tpu.memory_space<smem>>
      %898 = vector.broadcast %897 : f32 to vector<8x128xf32>
      %899 = arith.mulf %898, %895 : vector<8x128xf32>
      %900 = arith.addf %896, %899 : vector<8x128xf32>
      %901 = arith.mulf %895, %857 : vector<8x128xf32>
      %902 = arith.mulf %900, %855 : vector<8x128xf32>
      %c69 = arith.constant 69 : index
      %903 = memref.load %arg3[%c69] : memref<234xf32, #tpu.memory_space<smem>>
      %904 = vector.broadcast %903 : f32 to vector<8x128xf32>
      %905 = arith.mulf %904, %901 : vector<8x128xf32>
      %906 = arith.addf %902, %905 : vector<8x128xf32>
      %907 = arith.mulf %901, %857 : vector<8x128xf32>
      %908 = arith.mulf %906, %855 : vector<8x128xf32>
      %c68 = arith.constant 68 : index
      %909 = memref.load %arg3[%c68] : memref<234xf32, #tpu.memory_space<smem>>
      %910 = vector.broadcast %909 : f32 to vector<8x128xf32>
      %911 = arith.mulf %910, %907 : vector<8x128xf32>
      %912 = arith.addf %908, %911 : vector<8x128xf32>
      %913 = arith.mulf %907, %857 : vector<8x128xf32>
      %914 = arith.mulf %912, %855 : vector<8x128xf32>
      %c67 = arith.constant 67 : index
      %915 = memref.load %arg3[%c67] : memref<234xf32, #tpu.memory_space<smem>>
      %916 = vector.broadcast %915 : f32 to vector<8x128xf32>
      %917 = arith.mulf %916, %913 : vector<8x128xf32>
      %918 = arith.addf %914, %917 : vector<8x128xf32>
      %919 = arith.mulf %913, %857 : vector<8x128xf32>
      %920 = arith.mulf %918, %855 : vector<8x128xf32>
      %c66 = arith.constant 66 : index
      %921 = memref.load %arg3[%c66] : memref<234xf32, #tpu.memory_space<smem>>
      %922 = vector.broadcast %921 : f32 to vector<8x128xf32>
      %923 = arith.mulf %922, %919 : vector<8x128xf32>
      %924 = arith.addf %920, %923 : vector<8x128xf32>
      %925 = arith.mulf %919, %857 : vector<8x128xf32>
      %926 = arith.mulf %924, %855 : vector<8x128xf32>
      %c65 = arith.constant 65 : index
      %927 = memref.load %arg3[%c65] : memref<234xf32, #tpu.memory_space<smem>>
      %928 = vector.broadcast %927 : f32 to vector<8x128xf32>
      %929 = arith.mulf %928, %925 : vector<8x128xf32>
      %930 = arith.addf %926, %929 : vector<8x128xf32>
      %931 = arith.mulf %692, %124 : vector<8x128xf32>
      %932 = arith.addf %245, %931 : vector<8x128xf32>
      %933 = arith.mulf %697, %124 : vector<8x128xf32>
      %934 = arith.addf %366, %933 : vector<8x128xf32>
      %935 = arith.mulf %842, %245 : vector<8x128xf32>
      %936 = arith.addf %934, %935 : vector<8x128xf32>
      %937 = arith.mulf %702, %124 : vector<8x128xf32>
      %938 = arith.addf %487, %937 : vector<8x128xf32>
      %939 = arith.mulf %847, %245 : vector<8x128xf32>
      %940 = arith.addf %938, %939 : vector<8x128xf32>
      %941 = arith.mulf %930, %366 : vector<8x128xf32>
      %942 = arith.addf %940, %941 : vector<8x128xf32>
      %cst_123 = arith.constant -7.1999998 : f32
      %943 = vector.broadcast %cst_123 : f32 to vector<8x128xf32>
      %944 = arith.subf %942, %943 : vector<8x128xf32>
      %cst_124 = arith.constant 0.0694444477 : f32
      %945 = vector.broadcast %cst_124 : f32 to vector<8x128xf32>
      %946 = arith.mulf %944, %945 : vector<8x128xf32>
      %cst_125 = arith.constant 0.000000e+00 : f32
      %cst_126 = arith.constant 1.000000e+00 : f32
      %947 = vector.broadcast %cst_125 : f32 to vector<8x128xf32>
      %948 = arith.maximumf %947, %946 : vector<8x128xf32>
      %949 = vector.broadcast %cst_126 : f32 to vector<8x128xf32>
      %950 = arith.minimumf %949, %948 : vector<8x128xf32>
      %cst_127 = arith.constant 1.000000e+00 : f32
      %951 = vector.broadcast %cst_127 : f32 to vector<8x128xf32>
      %952 = arith.subf %951, %950 : vector<8x128xf32>
      %c90 = arith.constant 90 : index
      %953 = memref.load %arg3[%c90] : memref<234xf32, #tpu.memory_space<smem>>
      %954 = vector.broadcast %953 : f32 to vector<8x128xf32>
      %955 = arith.mulf %954, %950 : vector<8x128xf32>
      %c89 = arith.constant 89 : index
      %956 = memref.load %arg3[%c89] : memref<234xf32, #tpu.memory_space<smem>>
      %957 = vector.broadcast %956 : f32 to vector<8x128xf32>
      %958 = arith.mulf %957, %952 : vector<8x128xf32>
      %959 = arith.addf %955, %958 : vector<8x128xf32>
      %c103 = arith.constant 103 : index
      %960 = memref.load %arg3[%c103] : memref<234xf32, #tpu.memory_space<smem>>
      %961 = vector.broadcast %960 : f32 to vector<8x128xf32>
      %962 = arith.mulf %961, %950 : vector<8x128xf32>
      %c102 = arith.constant 102 : index
      %963 = memref.load %arg3[%c102] : memref<234xf32, #tpu.memory_space<smem>>
      %964 = vector.broadcast %963 : f32 to vector<8x128xf32>
      %965 = arith.mulf %964, %952 : vector<8x128xf32>
      %966 = arith.addf %962, %965 : vector<8x128xf32>
      %c116 = arith.constant 116 : index
      %967 = memref.load %arg3[%c116] : memref<234xf32, #tpu.memory_space<smem>>
      %968 = vector.broadcast %967 : f32 to vector<8x128xf32>
      %969 = arith.mulf %968, %950 : vector<8x128xf32>
      %c115 = arith.constant 115 : index
      %970 = memref.load %arg3[%c115] : memref<234xf32, #tpu.memory_space<smem>>
      %971 = vector.broadcast %970 : f32 to vector<8x128xf32>
      %972 = arith.mulf %971, %952 : vector<8x128xf32>
      %973 = arith.addf %969, %972 : vector<8x128xf32>
      %974 = arith.mulf %952, %952 : vector<8x128xf32>
      %975 = arith.mulf %959, %950 : vector<8x128xf32>
      %c88 = arith.constant 88 : index
      %976 = memref.load %arg3[%c88] : memref<234xf32, #tpu.memory_space<smem>>
      %977 = vector.broadcast %976 : f32 to vector<8x128xf32>
      %978 = arith.mulf %977, %974 : vector<8x128xf32>
      %979 = arith.addf %975, %978 : vector<8x128xf32>
      %980 = arith.mulf %966, %950 : vector<8x128xf32>
      %c101 = arith.constant 101 : index
      %981 = memref.load %arg3[%c101] : memref<234xf32, #tpu.memory_space<smem>>
      %982 = vector.broadcast %981 : f32 to vector<8x128xf32>
      %983 = arith.mulf %982, %974 : vector<8x128xf32>
      %984 = arith.addf %980, %983 : vector<8x128xf32>
      %985 = arith.mulf %973, %950 : vector<8x128xf32>
      %c114 = arith.constant 114 : index
      %986 = memref.load %arg3[%c114] : memref<234xf32, #tpu.memory_space<smem>>
      %987 = vector.broadcast %986 : f32 to vector<8x128xf32>
      %988 = arith.mulf %987, %974 : vector<8x128xf32>
      %989 = arith.addf %985, %988 : vector<8x128xf32>
      %990 = arith.mulf %974, %952 : vector<8x128xf32>
      %991 = arith.mulf %979, %950 : vector<8x128xf32>
      %c87 = arith.constant 87 : index
      %992 = memref.load %arg3[%c87] : memref<234xf32, #tpu.memory_space<smem>>
      %993 = vector.broadcast %992 : f32 to vector<8x128xf32>
      %994 = arith.mulf %993, %990 : vector<8x128xf32>
      %995 = arith.addf %991, %994 : vector<8x128xf32>
      %996 = arith.mulf %984, %950 : vector<8x128xf32>
      %c100 = arith.constant 100 : index
      %997 = memref.load %arg3[%c100] : memref<234xf32, #tpu.memory_space<smem>>
      %998 = vector.broadcast %997 : f32 to vector<8x128xf32>
      %999 = arith.mulf %998, %990 : vector<8x128xf32>
      %1000 = arith.addf %996, %999 : vector<8x128xf32>
      %1001 = arith.mulf %989, %950 : vector<8x128xf32>
      %c113 = arith.constant 113 : index
      %1002 = memref.load %arg3[%c113] : memref<234xf32, #tpu.memory_space<smem>>
      %1003 = vector.broadcast %1002 : f32 to vector<8x128xf32>
      %1004 = arith.mulf %1003, %990 : vector<8x128xf32>
      %1005 = arith.addf %1001, %1004 : vector<8x128xf32>
      %1006 = arith.mulf %990, %952 : vector<8x128xf32>
      %1007 = arith.mulf %995, %950 : vector<8x128xf32>
      %c86 = arith.constant 86 : index
      %1008 = memref.load %arg3[%c86] : memref<234xf32, #tpu.memory_space<smem>>
      %1009 = vector.broadcast %1008 : f32 to vector<8x128xf32>
      %1010 = arith.mulf %1009, %1006 : vector<8x128xf32>
      %1011 = arith.addf %1007, %1010 : vector<8x128xf32>
      %1012 = arith.mulf %1000, %950 : vector<8x128xf32>
      %c99 = arith.constant 99 : index
      %1013 = memref.load %arg3[%c99] : memref<234xf32, #tpu.memory_space<smem>>
      %1014 = vector.broadcast %1013 : f32 to vector<8x128xf32>
      %1015 = arith.mulf %1014, %1006 : vector<8x128xf32>
      %1016 = arith.addf %1012, %1015 : vector<8x128xf32>
      %1017 = arith.mulf %1005, %950 : vector<8x128xf32>
      %c112 = arith.constant 112 : index
      %1018 = memref.load %arg3[%c112] : memref<234xf32, #tpu.memory_space<smem>>
      %1019 = vector.broadcast %1018 : f32 to vector<8x128xf32>
      %1020 = arith.mulf %1019, %1006 : vector<8x128xf32>
      %1021 = arith.addf %1017, %1020 : vector<8x128xf32>
      %1022 = arith.mulf %1006, %952 : vector<8x128xf32>
      %1023 = arith.mulf %1011, %950 : vector<8x128xf32>
      %c85 = arith.constant 85 : index
      %1024 = memref.load %arg3[%c85] : memref<234xf32, #tpu.memory_space<smem>>
      %1025 = vector.broadcast %1024 : f32 to vector<8x128xf32>
      %1026 = arith.mulf %1025, %1022 : vector<8x128xf32>
      %1027 = arith.addf %1023, %1026 : vector<8x128xf32>
      %1028 = arith.mulf %1016, %950 : vector<8x128xf32>
      %c98 = arith.constant 98 : index
      %1029 = memref.load %arg3[%c98] : memref<234xf32, #tpu.memory_space<smem>>
      %1030 = vector.broadcast %1029 : f32 to vector<8x128xf32>
      %1031 = arith.mulf %1030, %1022 : vector<8x128xf32>
      %1032 = arith.addf %1028, %1031 : vector<8x128xf32>
      %1033 = arith.mulf %1021, %950 : vector<8x128xf32>
      %c111 = arith.constant 111 : index
      %1034 = memref.load %arg3[%c111] : memref<234xf32, #tpu.memory_space<smem>>
      %1035 = vector.broadcast %1034 : f32 to vector<8x128xf32>
      %1036 = arith.mulf %1035, %1022 : vector<8x128xf32>
      %1037 = arith.addf %1033, %1036 : vector<8x128xf32>
      %1038 = arith.mulf %1022, %952 : vector<8x128xf32>
      %1039 = arith.mulf %1027, %950 : vector<8x128xf32>
      %c84 = arith.constant 84 : index
      %1040 = memref.load %arg3[%c84] : memref<234xf32, #tpu.memory_space<smem>>
      %1041 = vector.broadcast %1040 : f32 to vector<8x128xf32>
      %1042 = arith.mulf %1041, %1038 : vector<8x128xf32>
      %1043 = arith.addf %1039, %1042 : vector<8x128xf32>
      %1044 = arith.mulf %1032, %950 : vector<8x128xf32>
      %c97 = arith.constant 97 : index
      %1045 = memref.load %arg3[%c97] : memref<234xf32, #tpu.memory_space<smem>>
      %1046 = vector.broadcast %1045 : f32 to vector<8x128xf32>
      %1047 = arith.mulf %1046, %1038 : vector<8x128xf32>
      %1048 = arith.addf %1044, %1047 : vector<8x128xf32>
      %1049 = arith.mulf %1037, %950 : vector<8x128xf32>
      %c110 = arith.constant 110 : index
      %1050 = memref.load %arg3[%c110] : memref<234xf32, #tpu.memory_space<smem>>
      %1051 = vector.broadcast %1050 : f32 to vector<8x128xf32>
      %1052 = arith.mulf %1051, %1038 : vector<8x128xf32>
      %1053 = arith.addf %1049, %1052 : vector<8x128xf32>
      %1054 = arith.mulf %1038, %952 : vector<8x128xf32>
      %1055 = arith.mulf %1043, %950 : vector<8x128xf32>
      %c83 = arith.constant 83 : index
      %1056 = memref.load %arg3[%c83] : memref<234xf32, #tpu.memory_space<smem>>
      %1057 = vector.broadcast %1056 : f32 to vector<8x128xf32>
      %1058 = arith.mulf %1057, %1054 : vector<8x128xf32>
      %1059 = arith.addf %1055, %1058 : vector<8x128xf32>
      %1060 = arith.mulf %1048, %950 : vector<8x128xf32>
      %c96 = arith.constant 96 : index
      %1061 = memref.load %arg3[%c96] : memref<234xf32, #tpu.memory_space<smem>>
      %1062 = vector.broadcast %1061 : f32 to vector<8x128xf32>
      %1063 = arith.mulf %1062, %1054 : vector<8x128xf32>
      %1064 = arith.addf %1060, %1063 : vector<8x128xf32>
      %1065 = arith.mulf %1053, %950 : vector<8x128xf32>
      %c109 = arith.constant 109 : index
      %1066 = memref.load %arg3[%c109] : memref<234xf32, #tpu.memory_space<smem>>
      %1067 = vector.broadcast %1066 : f32 to vector<8x128xf32>
      %1068 = arith.mulf %1067, %1054 : vector<8x128xf32>
      %1069 = arith.addf %1065, %1068 : vector<8x128xf32>
      %1070 = arith.mulf %1054, %952 : vector<8x128xf32>
      %1071 = arith.mulf %1059, %950 : vector<8x128xf32>
      %c82 = arith.constant 82 : index
      %1072 = memref.load %arg3[%c82] : memref<234xf32, #tpu.memory_space<smem>>
      %1073 = vector.broadcast %1072 : f32 to vector<8x128xf32>
      %1074 = arith.mulf %1073, %1070 : vector<8x128xf32>
      %1075 = arith.addf %1071, %1074 : vector<8x128xf32>
      %1076 = arith.mulf %1064, %950 : vector<8x128xf32>
      %c95 = arith.constant 95 : index
      %1077 = memref.load %arg3[%c95] : memref<234xf32, #tpu.memory_space<smem>>
      %1078 = vector.broadcast %1077 : f32 to vector<8x128xf32>
      %1079 = arith.mulf %1078, %1070 : vector<8x128xf32>
      %1080 = arith.addf %1076, %1079 : vector<8x128xf32>
      %1081 = arith.mulf %1069, %950 : vector<8x128xf32>
      %c108 = arith.constant 108 : index
      %1082 = memref.load %arg3[%c108] : memref<234xf32, #tpu.memory_space<smem>>
      %1083 = vector.broadcast %1082 : f32 to vector<8x128xf32>
      %1084 = arith.mulf %1083, %1070 : vector<8x128xf32>
      %1085 = arith.addf %1081, %1084 : vector<8x128xf32>
      %1086 = arith.mulf %1070, %952 : vector<8x128xf32>
      %1087 = arith.mulf %1075, %950 : vector<8x128xf32>
      %c81 = arith.constant 81 : index
      %1088 = memref.load %arg3[%c81] : memref<234xf32, #tpu.memory_space<smem>>
      %1089 = vector.broadcast %1088 : f32 to vector<8x128xf32>
      %1090 = arith.mulf %1089, %1086 : vector<8x128xf32>
      %1091 = arith.addf %1087, %1090 : vector<8x128xf32>
      %1092 = arith.mulf %1080, %950 : vector<8x128xf32>
      %c94 = arith.constant 94 : index
      %1093 = memref.load %arg3[%c94] : memref<234xf32, #tpu.memory_space<smem>>
      %1094 = vector.broadcast %1093 : f32 to vector<8x128xf32>
      %1095 = arith.mulf %1094, %1086 : vector<8x128xf32>
      %1096 = arith.addf %1092, %1095 : vector<8x128xf32>
      %1097 = arith.mulf %1085, %950 : vector<8x128xf32>
      %c107 = arith.constant 107 : index
      %1098 = memref.load %arg3[%c107] : memref<234xf32, #tpu.memory_space<smem>>
      %1099 = vector.broadcast %1098 : f32 to vector<8x128xf32>
      %1100 = arith.mulf %1099, %1086 : vector<8x128xf32>
      %1101 = arith.addf %1097, %1100 : vector<8x128xf32>
      %1102 = arith.mulf %1086, %952 : vector<8x128xf32>
      %1103 = arith.mulf %1091, %950 : vector<8x128xf32>
      %c80 = arith.constant 80 : index
      %1104 = memref.load %arg3[%c80] : memref<234xf32, #tpu.memory_space<smem>>
      %1105 = vector.broadcast %1104 : f32 to vector<8x128xf32>
      %1106 = arith.mulf %1105, %1102 : vector<8x128xf32>
      %1107 = arith.addf %1103, %1106 : vector<8x128xf32>
      %1108 = arith.mulf %1096, %950 : vector<8x128xf32>
      %c93 = arith.constant 93 : index
      %1109 = memref.load %arg3[%c93] : memref<234xf32, #tpu.memory_space<smem>>
      %1110 = vector.broadcast %1109 : f32 to vector<8x128xf32>
      %1111 = arith.mulf %1110, %1102 : vector<8x128xf32>
      %1112 = arith.addf %1108, %1111 : vector<8x128xf32>
      %1113 = arith.mulf %1101, %950 : vector<8x128xf32>
      %c106 = arith.constant 106 : index
      %1114 = memref.load %arg3[%c106] : memref<234xf32, #tpu.memory_space<smem>>
      %1115 = vector.broadcast %1114 : f32 to vector<8x128xf32>
      %1116 = arith.mulf %1115, %1102 : vector<8x128xf32>
      %1117 = arith.addf %1113, %1116 : vector<8x128xf32>
      %1118 = arith.mulf %1102, %952 : vector<8x128xf32>
      %1119 = arith.mulf %1107, %950 : vector<8x128xf32>
      %c79 = arith.constant 79 : index
      %1120 = memref.load %arg3[%c79] : memref<234xf32, #tpu.memory_space<smem>>
      %1121 = vector.broadcast %1120 : f32 to vector<8x128xf32>
      %1122 = arith.mulf %1121, %1118 : vector<8x128xf32>
      %1123 = arith.addf %1119, %1122 : vector<8x128xf32>
      %1124 = arith.mulf %1112, %950 : vector<8x128xf32>
      %c92 = arith.constant 92 : index
      %1125 = memref.load %arg3[%c92] : memref<234xf32, #tpu.memory_space<smem>>
      %1126 = vector.broadcast %1125 : f32 to vector<8x128xf32>
      %1127 = arith.mulf %1126, %1118 : vector<8x128xf32>
      %1128 = arith.addf %1124, %1127 : vector<8x128xf32>
      %1129 = arith.mulf %1117, %950 : vector<8x128xf32>
      %c105 = arith.constant 105 : index
      %1130 = memref.load %arg3[%c105] : memref<234xf32, #tpu.memory_space<smem>>
      %1131 = vector.broadcast %1130 : f32 to vector<8x128xf32>
      %1132 = arith.mulf %1131, %1118 : vector<8x128xf32>
      %1133 = arith.addf %1129, %1132 : vector<8x128xf32>
      %1134 = arith.mulf %1118, %952 : vector<8x128xf32>
      %1135 = arith.mulf %1123, %950 : vector<8x128xf32>
      %c78 = arith.constant 78 : index
      %1136 = memref.load %arg3[%c78] : memref<234xf32, #tpu.memory_space<smem>>
      %1137 = vector.broadcast %1136 : f32 to vector<8x128xf32>
      %1138 = arith.mulf %1137, %1134 : vector<8x128xf32>
      %1139 = arith.addf %1135, %1138 : vector<8x128xf32>
      %1140 = arith.mulf %1128, %950 : vector<8x128xf32>
      %c91 = arith.constant 91 : index
      %1141 = memref.load %arg3[%c91] : memref<234xf32, #tpu.memory_space<smem>>
      %1142 = vector.broadcast %1141 : f32 to vector<8x128xf32>
      %1143 = arith.mulf %1142, %1134 : vector<8x128xf32>
      %1144 = arith.addf %1140, %1143 : vector<8x128xf32>
      %1145 = arith.mulf %1133, %950 : vector<8x128xf32>
      %c104 = arith.constant 104 : index
      %1146 = memref.load %arg3[%c104] : memref<234xf32, #tpu.memory_space<smem>>
      %1147 = vector.broadcast %1146 : f32 to vector<8x128xf32>
      %1148 = arith.mulf %1147, %1134 : vector<8x128xf32>
      %1149 = arith.addf %1145, %1148 : vector<8x128xf32>
      %cst_128 = arith.constant -7.1999998 : f32
      %1150 = vector.broadcast %cst_128 : f32 to vector<8x128xf32>
      %1151 = arith.subf %936, %1150 : vector<8x128xf32>
      %cst_129 = arith.constant 0.0694444477 : f32
      %1152 = vector.broadcast %cst_129 : f32 to vector<8x128xf32>
      %1153 = arith.mulf %1151, %1152 : vector<8x128xf32>
      %cst_130 = arith.constant 0.000000e+00 : f32
      %cst_131 = arith.constant 1.000000e+00 : f32
      %1154 = vector.broadcast %cst_130 : f32 to vector<8x128xf32>
      %1155 = arith.maximumf %1154, %1153 : vector<8x128xf32>
      %1156 = vector.broadcast %cst_131 : f32 to vector<8x128xf32>
      %1157 = arith.minimumf %1156, %1155 : vector<8x128xf32>
      %cst_132 = arith.constant 1.000000e+00 : f32
      %1158 = vector.broadcast %cst_132 : f32 to vector<8x128xf32>
      %1159 = arith.subf %1158, %1157 : vector<8x128xf32>
      %c129 = arith.constant 129 : index
      %1160 = memref.load %arg3[%c129] : memref<234xf32, #tpu.memory_space<smem>>
      %1161 = vector.broadcast %1160 : f32 to vector<8x128xf32>
      %1162 = arith.mulf %1161, %1157 : vector<8x128xf32>
      %c128 = arith.constant 128 : index
      %1163 = memref.load %arg3[%c128] : memref<234xf32, #tpu.memory_space<smem>>
      %1164 = vector.broadcast %1163 : f32 to vector<8x128xf32>
      %1165 = arith.mulf %1164, %1159 : vector<8x128xf32>
      %1166 = arith.addf %1162, %1165 : vector<8x128xf32>
      %c142 = arith.constant 142 : index
      %1167 = memref.load %arg3[%c142] : memref<234xf32, #tpu.memory_space<smem>>
      %1168 = vector.broadcast %1167 : f32 to vector<8x128xf32>
      %1169 = arith.mulf %1168, %1157 : vector<8x128xf32>
      %c141 = arith.constant 141 : index
      %1170 = memref.load %arg3[%c141] : memref<234xf32, #tpu.memory_space<smem>>
      %1171 = vector.broadcast %1170 : f32 to vector<8x128xf32>
      %1172 = arith.mulf %1171, %1159 : vector<8x128xf32>
      %1173 = arith.addf %1169, %1172 : vector<8x128xf32>
      %1174 = arith.mulf %1159, %1159 : vector<8x128xf32>
      %1175 = arith.mulf %1166, %1157 : vector<8x128xf32>
      %c127 = arith.constant 127 : index
      %1176 = memref.load %arg3[%c127] : memref<234xf32, #tpu.memory_space<smem>>
      %1177 = vector.broadcast %1176 : f32 to vector<8x128xf32>
      %1178 = arith.mulf %1177, %1174 : vector<8x128xf32>
      %1179 = arith.addf %1175, %1178 : vector<8x128xf32>
      %1180 = arith.mulf %1173, %1157 : vector<8x128xf32>
      %c140 = arith.constant 140 : index
      %1181 = memref.load %arg3[%c140] : memref<234xf32, #tpu.memory_space<smem>>
      %1182 = vector.broadcast %1181 : f32 to vector<8x128xf32>
      %1183 = arith.mulf %1182, %1174 : vector<8x128xf32>
      %1184 = arith.addf %1180, %1183 : vector<8x128xf32>
      %1185 = arith.mulf %1174, %1159 : vector<8x128xf32>
      %1186 = arith.mulf %1179, %1157 : vector<8x128xf32>
      %c126 = arith.constant 126 : index
      %1187 = memref.load %arg3[%c126] : memref<234xf32, #tpu.memory_space<smem>>
      %1188 = vector.broadcast %1187 : f32 to vector<8x128xf32>
      %1189 = arith.mulf %1188, %1185 : vector<8x128xf32>
      %1190 = arith.addf %1186, %1189 : vector<8x128xf32>
      %1191 = arith.mulf %1184, %1157 : vector<8x128xf32>
      %c139 = arith.constant 139 : index
      %1192 = memref.load %arg3[%c139] : memref<234xf32, #tpu.memory_space<smem>>
      %1193 = vector.broadcast %1192 : f32 to vector<8x128xf32>
      %1194 = arith.mulf %1193, %1185 : vector<8x128xf32>
      %1195 = arith.addf %1191, %1194 : vector<8x128xf32>
      %1196 = arith.mulf %1185, %1159 : vector<8x128xf32>
      %1197 = arith.mulf %1190, %1157 : vector<8x128xf32>
      %c125 = arith.constant 125 : index
      %1198 = memref.load %arg3[%c125] : memref<234xf32, #tpu.memory_space<smem>>
      %1199 = vector.broadcast %1198 : f32 to vector<8x128xf32>
      %1200 = arith.mulf %1199, %1196 : vector<8x128xf32>
      %1201 = arith.addf %1197, %1200 : vector<8x128xf32>
      %1202 = arith.mulf %1195, %1157 : vector<8x128xf32>
      %c138 = arith.constant 138 : index
      %1203 = memref.load %arg3[%c138] : memref<234xf32, #tpu.memory_space<smem>>
      %1204 = vector.broadcast %1203 : f32 to vector<8x128xf32>
      %1205 = arith.mulf %1204, %1196 : vector<8x128xf32>
      %1206 = arith.addf %1202, %1205 : vector<8x128xf32>
      %1207 = arith.mulf %1196, %1159 : vector<8x128xf32>
      %1208 = arith.mulf %1201, %1157 : vector<8x128xf32>
      %c124 = arith.constant 124 : index
      %1209 = memref.load %arg3[%c124] : memref<234xf32, #tpu.memory_space<smem>>
      %1210 = vector.broadcast %1209 : f32 to vector<8x128xf32>
      %1211 = arith.mulf %1210, %1207 : vector<8x128xf32>
      %1212 = arith.addf %1208, %1211 : vector<8x128xf32>
      %1213 = arith.mulf %1206, %1157 : vector<8x128xf32>
      %c137 = arith.constant 137 : index
      %1214 = memref.load %arg3[%c137] : memref<234xf32, #tpu.memory_space<smem>>
      %1215 = vector.broadcast %1214 : f32 to vector<8x128xf32>
      %1216 = arith.mulf %1215, %1207 : vector<8x128xf32>
      %1217 = arith.addf %1213, %1216 : vector<8x128xf32>
      %1218 = arith.mulf %1207, %1159 : vector<8x128xf32>
      %1219 = arith.mulf %1212, %1157 : vector<8x128xf32>
      %c123 = arith.constant 123 : index
      %1220 = memref.load %arg3[%c123] : memref<234xf32, #tpu.memory_space<smem>>
      %1221 = vector.broadcast %1220 : f32 to vector<8x128xf32>
      %1222 = arith.mulf %1221, %1218 : vector<8x128xf32>
      %1223 = arith.addf %1219, %1222 : vector<8x128xf32>
      %1224 = arith.mulf %1217, %1157 : vector<8x128xf32>
      %c136 = arith.constant 136 : index
      %1225 = memref.load %arg3[%c136] : memref<234xf32, #tpu.memory_space<smem>>
      %1226 = vector.broadcast %1225 : f32 to vector<8x128xf32>
      %1227 = arith.mulf %1226, %1218 : vector<8x128xf32>
      %1228 = arith.addf %1224, %1227 : vector<8x128xf32>
      %1229 = arith.mulf %1218, %1159 : vector<8x128xf32>
      %1230 = arith.mulf %1223, %1157 : vector<8x128xf32>
      %c122 = arith.constant 122 : index
      %1231 = memref.load %arg3[%c122] : memref<234xf32, #tpu.memory_space<smem>>
      %1232 = vector.broadcast %1231 : f32 to vector<8x128xf32>
      %1233 = arith.mulf %1232, %1229 : vector<8x128xf32>
      %1234 = arith.addf %1230, %1233 : vector<8x128xf32>
      %1235 = arith.mulf %1228, %1157 : vector<8x128xf32>
      %c135 = arith.constant 135 : index
      %1236 = memref.load %arg3[%c135] : memref<234xf32, #tpu.memory_space<smem>>
      %1237 = vector.broadcast %1236 : f32 to vector<8x128xf32>
      %1238 = arith.mulf %1237, %1229 : vector<8x128xf32>
      %1239 = arith.addf %1235, %1238 : vector<8x128xf32>
      %1240 = arith.mulf %1229, %1159 : vector<8x128xf32>
      %1241 = arith.mulf %1234, %1157 : vector<8x128xf32>
      %c121 = arith.constant 121 : index
      %1242 = memref.load %arg3[%c121] : memref<234xf32, #tpu.memory_space<smem>>
      %1243 = vector.broadcast %1242 : f32 to vector<8x128xf32>
      %1244 = arith.mulf %1243, %1240 : vector<8x128xf32>
      %1245 = arith.addf %1241, %1244 : vector<8x128xf32>
      %1246 = arith.mulf %1239, %1157 : vector<8x128xf32>
      %c134 = arith.constant 134 : index
      %1247 = memref.load %arg3[%c134] : memref<234xf32, #tpu.memory_space<smem>>
      %1248 = vector.broadcast %1247 : f32 to vector<8x128xf32>
      %1249 = arith.mulf %1248, %1240 : vector<8x128xf32>
      %1250 = arith.addf %1246, %1249 : vector<8x128xf32>
      %1251 = arith.mulf %1240, %1159 : vector<8x128xf32>
      %1252 = arith.mulf %1245, %1157 : vector<8x128xf32>
      %c120 = arith.constant 120 : index
      %1253 = memref.load %arg3[%c120] : memref<234xf32, #tpu.memory_space<smem>>
      %1254 = vector.broadcast %1253 : f32 to vector<8x128xf32>
      %1255 = arith.mulf %1254, %1251 : vector<8x128xf32>
      %1256 = arith.addf %1252, %1255 : vector<8x128xf32>
      %1257 = arith.mulf %1250, %1157 : vector<8x128xf32>
      %c133 = arith.constant 133 : index
      %1258 = memref.load %arg3[%c133] : memref<234xf32, #tpu.memory_space<smem>>
      %1259 = vector.broadcast %1258 : f32 to vector<8x128xf32>
      %1260 = arith.mulf %1259, %1251 : vector<8x128xf32>
      %1261 = arith.addf %1257, %1260 : vector<8x128xf32>
      %1262 = arith.mulf %1251, %1159 : vector<8x128xf32>
      %1263 = arith.mulf %1256, %1157 : vector<8x128xf32>
      %c119 = arith.constant 119 : index
      %1264 = memref.load %arg3[%c119] : memref<234xf32, #tpu.memory_space<smem>>
      %1265 = vector.broadcast %1264 : f32 to vector<8x128xf32>
      %1266 = arith.mulf %1265, %1262 : vector<8x128xf32>
      %1267 = arith.addf %1263, %1266 : vector<8x128xf32>
      %1268 = arith.mulf %1261, %1157 : vector<8x128xf32>
      %c132 = arith.constant 132 : index
      %1269 = memref.load %arg3[%c132] : memref<234xf32, #tpu.memory_space<smem>>
      %1270 = vector.broadcast %1269 : f32 to vector<8x128xf32>
      %1271 = arith.mulf %1270, %1262 : vector<8x128xf32>
      %1272 = arith.addf %1268, %1271 : vector<8x128xf32>
      %1273 = arith.mulf %1262, %1159 : vector<8x128xf32>
      %1274 = arith.mulf %1267, %1157 : vector<8x128xf32>
      %c118 = arith.constant 118 : index
      %1275 = memref.load %arg3[%c118] : memref<234xf32, #tpu.memory_space<smem>>
      %1276 = vector.broadcast %1275 : f32 to vector<8x128xf32>
      %1277 = arith.mulf %1276, %1273 : vector<8x128xf32>
      %1278 = arith.addf %1274, %1277 : vector<8x128xf32>
      %1279 = arith.mulf %1272, %1157 : vector<8x128xf32>
      %c131 = arith.constant 131 : index
      %1280 = memref.load %arg3[%c131] : memref<234xf32, #tpu.memory_space<smem>>
      %1281 = vector.broadcast %1280 : f32 to vector<8x128xf32>
      %1282 = arith.mulf %1281, %1273 : vector<8x128xf32>
      %1283 = arith.addf %1279, %1282 : vector<8x128xf32>
      %1284 = arith.mulf %1273, %1159 : vector<8x128xf32>
      %1285 = arith.mulf %1278, %1157 : vector<8x128xf32>
      %c117 = arith.constant 117 : index
      %1286 = memref.load %arg3[%c117] : memref<234xf32, #tpu.memory_space<smem>>
      %1287 = vector.broadcast %1286 : f32 to vector<8x128xf32>
      %1288 = arith.mulf %1287, %1284 : vector<8x128xf32>
      %1289 = arith.addf %1285, %1288 : vector<8x128xf32>
      %1290 = arith.mulf %1283, %1157 : vector<8x128xf32>
      %c130 = arith.constant 130 : index
      %1291 = memref.load %arg3[%c130] : memref<234xf32, #tpu.memory_space<smem>>
      %1292 = vector.broadcast %1291 : f32 to vector<8x128xf32>
      %1293 = arith.mulf %1292, %1284 : vector<8x128xf32>
      %1294 = arith.addf %1290, %1293 : vector<8x128xf32>
      %cst_133 = arith.constant -7.1999998 : f32
      %1295 = vector.broadcast %cst_133 : f32 to vector<8x128xf32>
      %1296 = arith.subf %932, %1295 : vector<8x128xf32>
      %cst_134 = arith.constant 0.0694444477 : f32
      %1297 = vector.broadcast %cst_134 : f32 to vector<8x128xf32>
      %1298 = arith.mulf %1296, %1297 : vector<8x128xf32>
      %cst_135 = arith.constant 0.000000e+00 : f32
      %cst_136 = arith.constant 1.000000e+00 : f32
      %1299 = vector.broadcast %cst_135 : f32 to vector<8x128xf32>
      %1300 = arith.maximumf %1299, %1298 : vector<8x128xf32>
      %1301 = vector.broadcast %cst_136 : f32 to vector<8x128xf32>
      %1302 = arith.minimumf %1301, %1300 : vector<8x128xf32>
      %cst_137 = arith.constant 1.000000e+00 : f32
      %1303 = vector.broadcast %cst_137 : f32 to vector<8x128xf32>
      %1304 = arith.subf %1303, %1302 : vector<8x128xf32>
      %c155 = arith.constant 155 : index
      %1305 = memref.load %arg3[%c155] : memref<234xf32, #tpu.memory_space<smem>>
      %1306 = vector.broadcast %1305 : f32 to vector<8x128xf32>
      %1307 = arith.mulf %1306, %1302 : vector<8x128xf32>
      %c154 = arith.constant 154 : index
      %1308 = memref.load %arg3[%c154] : memref<234xf32, #tpu.memory_space<smem>>
      %1309 = vector.broadcast %1308 : f32 to vector<8x128xf32>
      %1310 = arith.mulf %1309, %1304 : vector<8x128xf32>
      %1311 = arith.addf %1307, %1310 : vector<8x128xf32>
      %1312 = arith.mulf %1304, %1304 : vector<8x128xf32>
      %1313 = arith.mulf %1311, %1302 : vector<8x128xf32>
      %c153 = arith.constant 153 : index
      %1314 = memref.load %arg3[%c153] : memref<234xf32, #tpu.memory_space<smem>>
      %1315 = vector.broadcast %1314 : f32 to vector<8x128xf32>
      %1316 = arith.mulf %1315, %1312 : vector<8x128xf32>
      %1317 = arith.addf %1313, %1316 : vector<8x128xf32>
      %1318 = arith.mulf %1312, %1304 : vector<8x128xf32>
      %1319 = arith.mulf %1317, %1302 : vector<8x128xf32>
      %c152 = arith.constant 152 : index
      %1320 = memref.load %arg3[%c152] : memref<234xf32, #tpu.memory_space<smem>>
      %1321 = vector.broadcast %1320 : f32 to vector<8x128xf32>
      %1322 = arith.mulf %1321, %1318 : vector<8x128xf32>
      %1323 = arith.addf %1319, %1322 : vector<8x128xf32>
      %1324 = arith.mulf %1318, %1304 : vector<8x128xf32>
      %1325 = arith.mulf %1323, %1302 : vector<8x128xf32>
      %c151 = arith.constant 151 : index
      %1326 = memref.load %arg3[%c151] : memref<234xf32, #tpu.memory_space<smem>>
      %1327 = vector.broadcast %1326 : f32 to vector<8x128xf32>
      %1328 = arith.mulf %1327, %1324 : vector<8x128xf32>
      %1329 = arith.addf %1325, %1328 : vector<8x128xf32>
      %1330 = arith.mulf %1324, %1304 : vector<8x128xf32>
      %1331 = arith.mulf %1329, %1302 : vector<8x128xf32>
      %c150 = arith.constant 150 : index
      %1332 = memref.load %arg3[%c150] : memref<234xf32, #tpu.memory_space<smem>>
      %1333 = vector.broadcast %1332 : f32 to vector<8x128xf32>
      %1334 = arith.mulf %1333, %1330 : vector<8x128xf32>
      %1335 = arith.addf %1331, %1334 : vector<8x128xf32>
      %1336 = arith.mulf %1330, %1304 : vector<8x128xf32>
      %1337 = arith.mulf %1335, %1302 : vector<8x128xf32>
      %c149 = arith.constant 149 : index
      %1338 = memref.load %arg3[%c149] : memref<234xf32, #tpu.memory_space<smem>>
      %1339 = vector.broadcast %1338 : f32 to vector<8x128xf32>
      %1340 = arith.mulf %1339, %1336 : vector<8x128xf32>
      %1341 = arith.addf %1337, %1340 : vector<8x128xf32>
      %1342 = arith.mulf %1336, %1304 : vector<8x128xf32>
      %1343 = arith.mulf %1341, %1302 : vector<8x128xf32>
      %c148 = arith.constant 148 : index
      %1344 = memref.load %arg3[%c148] : memref<234xf32, #tpu.memory_space<smem>>
      %1345 = vector.broadcast %1344 : f32 to vector<8x128xf32>
      %1346 = arith.mulf %1345, %1342 : vector<8x128xf32>
      %1347 = arith.addf %1343, %1346 : vector<8x128xf32>
      %1348 = arith.mulf %1342, %1304 : vector<8x128xf32>
      %1349 = arith.mulf %1347, %1302 : vector<8x128xf32>
      %c147 = arith.constant 147 : index
      %1350 = memref.load %arg3[%c147] : memref<234xf32, #tpu.memory_space<smem>>
      %1351 = vector.broadcast %1350 : f32 to vector<8x128xf32>
      %1352 = arith.mulf %1351, %1348 : vector<8x128xf32>
      %1353 = arith.addf %1349, %1352 : vector<8x128xf32>
      %1354 = arith.mulf %1348, %1304 : vector<8x128xf32>
      %1355 = arith.mulf %1353, %1302 : vector<8x128xf32>
      %c146 = arith.constant 146 : index
      %1356 = memref.load %arg3[%c146] : memref<234xf32, #tpu.memory_space<smem>>
      %1357 = vector.broadcast %1356 : f32 to vector<8x128xf32>
      %1358 = arith.mulf %1357, %1354 : vector<8x128xf32>
      %1359 = arith.addf %1355, %1358 : vector<8x128xf32>
      %1360 = arith.mulf %1354, %1304 : vector<8x128xf32>
      %1361 = arith.mulf %1359, %1302 : vector<8x128xf32>
      %c145 = arith.constant 145 : index
      %1362 = memref.load %arg3[%c145] : memref<234xf32, #tpu.memory_space<smem>>
      %1363 = vector.broadcast %1362 : f32 to vector<8x128xf32>
      %1364 = arith.mulf %1363, %1360 : vector<8x128xf32>
      %1365 = arith.addf %1361, %1364 : vector<8x128xf32>
      %1366 = arith.mulf %1360, %1304 : vector<8x128xf32>
      %1367 = arith.mulf %1365, %1302 : vector<8x128xf32>
      %c144 = arith.constant 144 : index
      %1368 = memref.load %arg3[%c144] : memref<234xf32, #tpu.memory_space<smem>>
      %1369 = vector.broadcast %1368 : f32 to vector<8x128xf32>
      %1370 = arith.mulf %1369, %1366 : vector<8x128xf32>
      %1371 = arith.addf %1367, %1370 : vector<8x128xf32>
      %1372 = arith.mulf %1366, %1304 : vector<8x128xf32>
      %1373 = arith.mulf %1371, %1302 : vector<8x128xf32>
      %c143 = arith.constant 143 : index
      %1374 = memref.load %arg3[%c143] : memref<234xf32, #tpu.memory_space<smem>>
      %1375 = vector.broadcast %1374 : f32 to vector<8x128xf32>
      %1376 = arith.mulf %1375, %1372 : vector<8x128xf32>
      %1377 = arith.addf %1373, %1376 : vector<8x128xf32>
      %1378 = arith.mulf %1139, %942 : vector<8x128xf32>
      %1379 = arith.addf %936, %1378 : vector<8x128xf32>
      %1380 = arith.mulf %1144, %942 : vector<8x128xf32>
      %1381 = arith.addf %932, %1380 : vector<8x128xf32>
      %1382 = arith.mulf %1289, %936 : vector<8x128xf32>
      %1383 = arith.addf %1381, %1382 : vector<8x128xf32>
      %1384 = arith.mulf %1149, %942 : vector<8x128xf32>
      %1385 = arith.addf %124, %1384 : vector<8x128xf32>
      %1386 = arith.mulf %1294, %936 : vector<8x128xf32>
      %1387 = arith.addf %1385, %1386 : vector<8x128xf32>
      %1388 = arith.mulf %1377, %932 : vector<8x128xf32>
      %1389 = arith.addf %1387, %1388 : vector<8x128xf32>
      %1390 = arith.mulf %847, %1139 : vector<8x128xf32>
      %1391 = arith.addf %702, %1390 : vector<8x128xf32>
      %1392 = arith.mulf %930, %1144 : vector<8x128xf32>
      %1393 = arith.addf %1391, %1392 : vector<8x128xf32>
      %1394 = arith.addf %1393, %1149 : vector<8x128xf32>
      %1395 = arith.mulf %930, %1289 : vector<8x128xf32>
      %1396 = arith.addf %847, %1395 : vector<8x128xf32>
      %1397 = arith.addf %1396, %1294 : vector<8x128xf32>
      %1398 = arith.addf %930, %1377 : vector<8x128xf32>
      %1399 = arith.mulf %842, %1139 : vector<8x128xf32>
      %1400 = arith.addf %697, %1399 : vector<8x128xf32>
      %1401 = arith.addf %1400, %1144 : vector<8x128xf32>
      %1402 = arith.addf %842, %1289 : vector<8x128xf32>
      %1403 = arith.addf %692, %1139 : vector<8x128xf32>
      %cst_138 = arith.constant -7.1999998 : f32
      %1404 = vector.broadcast %cst_138 : f32 to vector<8x128xf32>
      %1405 = arith.subf %1389, %1404 : vector<8x128xf32>
      %cst_139 = arith.constant 0.0694444477 : f32
      %1406 = vector.broadcast %cst_139 : f32 to vector<8x128xf32>
      %1407 = arith.mulf %1405, %1406 : vector<8x128xf32>
      %cst_140 = arith.constant 0.000000e+00 : f32
      %cst_141 = arith.constant 1.000000e+00 : f32
      %1408 = vector.broadcast %cst_140 : f32 to vector<8x128xf32>
      %1409 = arith.maximumf %1408, %1407 : vector<8x128xf32>
      %1410 = vector.broadcast %cst_141 : f32 to vector<8x128xf32>
      %1411 = arith.minimumf %1410, %1409 : vector<8x128xf32>
      %cst_142 = arith.constant 1.000000e+00 : f32
      %1412 = vector.broadcast %cst_142 : f32 to vector<8x128xf32>
      %1413 = arith.subf %1412, %1411 : vector<8x128xf32>
      %c168 = arith.constant 168 : index
      %1414 = memref.load %arg3[%c168] : memref<234xf32, #tpu.memory_space<smem>>
      %1415 = vector.broadcast %1414 : f32 to vector<8x128xf32>
      %1416 = arith.mulf %1415, %1411 : vector<8x128xf32>
      %c167 = arith.constant 167 : index
      %1417 = memref.load %arg3[%c167] : memref<234xf32, #tpu.memory_space<smem>>
      %1418 = vector.broadcast %1417 : f32 to vector<8x128xf32>
      %1419 = arith.mulf %1418, %1413 : vector<8x128xf32>
      %1420 = arith.addf %1416, %1419 : vector<8x128xf32>
      %c181 = arith.constant 181 : index
      %1421 = memref.load %arg3[%c181] : memref<234xf32, #tpu.memory_space<smem>>
      %1422 = vector.broadcast %1421 : f32 to vector<8x128xf32>
      %1423 = arith.mulf %1422, %1411 : vector<8x128xf32>
      %c180 = arith.constant 180 : index
      %1424 = memref.load %arg3[%c180] : memref<234xf32, #tpu.memory_space<smem>>
      %1425 = vector.broadcast %1424 : f32 to vector<8x128xf32>
      %1426 = arith.mulf %1425, %1413 : vector<8x128xf32>
      %1427 = arith.addf %1423, %1426 : vector<8x128xf32>
      %c194 = arith.constant 194 : index
      %1428 = memref.load %arg3[%c194] : memref<234xf32, #tpu.memory_space<smem>>
      %1429 = vector.broadcast %1428 : f32 to vector<8x128xf32>
      %1430 = arith.mulf %1429, %1411 : vector<8x128xf32>
      %c193 = arith.constant 193 : index
      %1431 = memref.load %arg3[%c193] : memref<234xf32, #tpu.memory_space<smem>>
      %1432 = vector.broadcast %1431 : f32 to vector<8x128xf32>
      %1433 = arith.mulf %1432, %1413 : vector<8x128xf32>
      %1434 = arith.addf %1430, %1433 : vector<8x128xf32>
      %1435 = arith.mulf %1413, %1413 : vector<8x128xf32>
      %1436 = arith.mulf %1420, %1411 : vector<8x128xf32>
      %c166 = arith.constant 166 : index
      %1437 = memref.load %arg3[%c166] : memref<234xf32, #tpu.memory_space<smem>>
      %1438 = vector.broadcast %1437 : f32 to vector<8x128xf32>
      %1439 = arith.mulf %1438, %1435 : vector<8x128xf32>
      %1440 = arith.addf %1436, %1439 : vector<8x128xf32>
      %1441 = arith.mulf %1427, %1411 : vector<8x128xf32>
      %c179 = arith.constant 179 : index
      %1442 = memref.load %arg3[%c179] : memref<234xf32, #tpu.memory_space<smem>>
      %1443 = vector.broadcast %1442 : f32 to vector<8x128xf32>
      %1444 = arith.mulf %1443, %1435 : vector<8x128xf32>
      %1445 = arith.addf %1441, %1444 : vector<8x128xf32>
      %1446 = arith.mulf %1434, %1411 : vector<8x128xf32>
      %c192 = arith.constant 192 : index
      %1447 = memref.load %arg3[%c192] : memref<234xf32, #tpu.memory_space<smem>>
      %1448 = vector.broadcast %1447 : f32 to vector<8x128xf32>
      %1449 = arith.mulf %1448, %1435 : vector<8x128xf32>
      %1450 = arith.addf %1446, %1449 : vector<8x128xf32>
      %1451 = arith.mulf %1435, %1413 : vector<8x128xf32>
      %1452 = arith.mulf %1440, %1411 : vector<8x128xf32>
      %c165 = arith.constant 165 : index
      %1453 = memref.load %arg3[%c165] : memref<234xf32, #tpu.memory_space<smem>>
      %1454 = vector.broadcast %1453 : f32 to vector<8x128xf32>
      %1455 = arith.mulf %1454, %1451 : vector<8x128xf32>
      %1456 = arith.addf %1452, %1455 : vector<8x128xf32>
      %1457 = arith.mulf %1445, %1411 : vector<8x128xf32>
      %c178 = arith.constant 178 : index
      %1458 = memref.load %arg3[%c178] : memref<234xf32, #tpu.memory_space<smem>>
      %1459 = vector.broadcast %1458 : f32 to vector<8x128xf32>
      %1460 = arith.mulf %1459, %1451 : vector<8x128xf32>
      %1461 = arith.addf %1457, %1460 : vector<8x128xf32>
      %1462 = arith.mulf %1450, %1411 : vector<8x128xf32>
      %c191 = arith.constant 191 : index
      %1463 = memref.load %arg3[%c191] : memref<234xf32, #tpu.memory_space<smem>>
      %1464 = vector.broadcast %1463 : f32 to vector<8x128xf32>
      %1465 = arith.mulf %1464, %1451 : vector<8x128xf32>
      %1466 = arith.addf %1462, %1465 : vector<8x128xf32>
      %1467 = arith.mulf %1451, %1413 : vector<8x128xf32>
      %1468 = arith.mulf %1456, %1411 : vector<8x128xf32>
      %c164 = arith.constant 164 : index
      %1469 = memref.load %arg3[%c164] : memref<234xf32, #tpu.memory_space<smem>>
      %1470 = vector.broadcast %1469 : f32 to vector<8x128xf32>
      %1471 = arith.mulf %1470, %1467 : vector<8x128xf32>
      %1472 = arith.addf %1468, %1471 : vector<8x128xf32>
      %1473 = arith.mulf %1461, %1411 : vector<8x128xf32>
      %c177 = arith.constant 177 : index
      %1474 = memref.load %arg3[%c177] : memref<234xf32, #tpu.memory_space<smem>>
      %1475 = vector.broadcast %1474 : f32 to vector<8x128xf32>
      %1476 = arith.mulf %1475, %1467 : vector<8x128xf32>
      %1477 = arith.addf %1473, %1476 : vector<8x128xf32>
      %1478 = arith.mulf %1466, %1411 : vector<8x128xf32>
      %c190 = arith.constant 190 : index
      %1479 = memref.load %arg3[%c190] : memref<234xf32, #tpu.memory_space<smem>>
      %1480 = vector.broadcast %1479 : f32 to vector<8x128xf32>
      %1481 = arith.mulf %1480, %1467 : vector<8x128xf32>
      %1482 = arith.addf %1478, %1481 : vector<8x128xf32>
      %1483 = arith.mulf %1467, %1413 : vector<8x128xf32>
      %1484 = arith.mulf %1472, %1411 : vector<8x128xf32>
      %c163 = arith.constant 163 : index
      %1485 = memref.load %arg3[%c163] : memref<234xf32, #tpu.memory_space<smem>>
      %1486 = vector.broadcast %1485 : f32 to vector<8x128xf32>
      %1487 = arith.mulf %1486, %1483 : vector<8x128xf32>
      %1488 = arith.addf %1484, %1487 : vector<8x128xf32>
      %1489 = arith.mulf %1477, %1411 : vector<8x128xf32>
      %c176 = arith.constant 176 : index
      %1490 = memref.load %arg3[%c176] : memref<234xf32, #tpu.memory_space<smem>>
      %1491 = vector.broadcast %1490 : f32 to vector<8x128xf32>
      %1492 = arith.mulf %1491, %1483 : vector<8x128xf32>
      %1493 = arith.addf %1489, %1492 : vector<8x128xf32>
      %1494 = arith.mulf %1482, %1411 : vector<8x128xf32>
      %c189 = arith.constant 189 : index
      %1495 = memref.load %arg3[%c189] : memref<234xf32, #tpu.memory_space<smem>>
      %1496 = vector.broadcast %1495 : f32 to vector<8x128xf32>
      %1497 = arith.mulf %1496, %1483 : vector<8x128xf32>
      %1498 = arith.addf %1494, %1497 : vector<8x128xf32>
      %1499 = arith.mulf %1483, %1413 : vector<8x128xf32>
      %1500 = arith.mulf %1488, %1411 : vector<8x128xf32>
      %c162 = arith.constant 162 : index
      %1501 = memref.load %arg3[%c162] : memref<234xf32, #tpu.memory_space<smem>>
      %1502 = vector.broadcast %1501 : f32 to vector<8x128xf32>
      %1503 = arith.mulf %1502, %1499 : vector<8x128xf32>
      %1504 = arith.addf %1500, %1503 : vector<8x128xf32>
      %1505 = arith.mulf %1493, %1411 : vector<8x128xf32>
      %c175 = arith.constant 175 : index
      %1506 = memref.load %arg3[%c175] : memref<234xf32, #tpu.memory_space<smem>>
      %1507 = vector.broadcast %1506 : f32 to vector<8x128xf32>
      %1508 = arith.mulf %1507, %1499 : vector<8x128xf32>
      %1509 = arith.addf %1505, %1508 : vector<8x128xf32>
      %1510 = arith.mulf %1498, %1411 : vector<8x128xf32>
      %c188 = arith.constant 188 : index
      %1511 = memref.load %arg3[%c188] : memref<234xf32, #tpu.memory_space<smem>>
      %1512 = vector.broadcast %1511 : f32 to vector<8x128xf32>
      %1513 = arith.mulf %1512, %1499 : vector<8x128xf32>
      %1514 = arith.addf %1510, %1513 : vector<8x128xf32>
      %1515 = arith.mulf %1499, %1413 : vector<8x128xf32>
      %1516 = arith.mulf %1504, %1411 : vector<8x128xf32>
      %c161 = arith.constant 161 : index
      %1517 = memref.load %arg3[%c161] : memref<234xf32, #tpu.memory_space<smem>>
      %1518 = vector.broadcast %1517 : f32 to vector<8x128xf32>
      %1519 = arith.mulf %1518, %1515 : vector<8x128xf32>
      %1520 = arith.addf %1516, %1519 : vector<8x128xf32>
      %1521 = arith.mulf %1509, %1411 : vector<8x128xf32>
      %c174 = arith.constant 174 : index
      %1522 = memref.load %arg3[%c174] : memref<234xf32, #tpu.memory_space<smem>>
      %1523 = vector.broadcast %1522 : f32 to vector<8x128xf32>
      %1524 = arith.mulf %1523, %1515 : vector<8x128xf32>
      %1525 = arith.addf %1521, %1524 : vector<8x128xf32>
      %1526 = arith.mulf %1514, %1411 : vector<8x128xf32>
      %c187 = arith.constant 187 : index
      %1527 = memref.load %arg3[%c187] : memref<234xf32, #tpu.memory_space<smem>>
      %1528 = vector.broadcast %1527 : f32 to vector<8x128xf32>
      %1529 = arith.mulf %1528, %1515 : vector<8x128xf32>
      %1530 = arith.addf %1526, %1529 : vector<8x128xf32>
      %1531 = arith.mulf %1515, %1413 : vector<8x128xf32>
      %1532 = arith.mulf %1520, %1411 : vector<8x128xf32>
      %c160 = arith.constant 160 : index
      %1533 = memref.load %arg3[%c160] : memref<234xf32, #tpu.memory_space<smem>>
      %1534 = vector.broadcast %1533 : f32 to vector<8x128xf32>
      %1535 = arith.mulf %1534, %1531 : vector<8x128xf32>
      %1536 = arith.addf %1532, %1535 : vector<8x128xf32>
      %1537 = arith.mulf %1525, %1411 : vector<8x128xf32>
      %c173 = arith.constant 173 : index
      %1538 = memref.load %arg3[%c173] : memref<234xf32, #tpu.memory_space<smem>>
      %1539 = vector.broadcast %1538 : f32 to vector<8x128xf32>
      %1540 = arith.mulf %1539, %1531 : vector<8x128xf32>
      %1541 = arith.addf %1537, %1540 : vector<8x128xf32>
      %1542 = arith.mulf %1530, %1411 : vector<8x128xf32>
      %c186 = arith.constant 186 : index
      %1543 = memref.load %arg3[%c186] : memref<234xf32, #tpu.memory_space<smem>>
      %1544 = vector.broadcast %1543 : f32 to vector<8x128xf32>
      %1545 = arith.mulf %1544, %1531 : vector<8x128xf32>
      %1546 = arith.addf %1542, %1545 : vector<8x128xf32>
      %1547 = arith.mulf %1531, %1413 : vector<8x128xf32>
      %1548 = arith.mulf %1536, %1411 : vector<8x128xf32>
      %c159 = arith.constant 159 : index
      %1549 = memref.load %arg3[%c159] : memref<234xf32, #tpu.memory_space<smem>>
      %1550 = vector.broadcast %1549 : f32 to vector<8x128xf32>
      %1551 = arith.mulf %1550, %1547 : vector<8x128xf32>
      %1552 = arith.addf %1548, %1551 : vector<8x128xf32>
      %1553 = arith.mulf %1541, %1411 : vector<8x128xf32>
      %c172 = arith.constant 172 : index
      %1554 = memref.load %arg3[%c172] : memref<234xf32, #tpu.memory_space<smem>>
      %1555 = vector.broadcast %1554 : f32 to vector<8x128xf32>
      %1556 = arith.mulf %1555, %1547 : vector<8x128xf32>
      %1557 = arith.addf %1553, %1556 : vector<8x128xf32>
      %1558 = arith.mulf %1546, %1411 : vector<8x128xf32>
      %c185 = arith.constant 185 : index
      %1559 = memref.load %arg3[%c185] : memref<234xf32, #tpu.memory_space<smem>>
      %1560 = vector.broadcast %1559 : f32 to vector<8x128xf32>
      %1561 = arith.mulf %1560, %1547 : vector<8x128xf32>
      %1562 = arith.addf %1558, %1561 : vector<8x128xf32>
      %1563 = arith.mulf %1547, %1413 : vector<8x128xf32>
      %1564 = arith.mulf %1552, %1411 : vector<8x128xf32>
      %c158 = arith.constant 158 : index
      %1565 = memref.load %arg3[%c158] : memref<234xf32, #tpu.memory_space<smem>>
      %1566 = vector.broadcast %1565 : f32 to vector<8x128xf32>
      %1567 = arith.mulf %1566, %1563 : vector<8x128xf32>
      %1568 = arith.addf %1564, %1567 : vector<8x128xf32>
      %1569 = arith.mulf %1557, %1411 : vector<8x128xf32>
      %c171 = arith.constant 171 : index
      %1570 = memref.load %arg3[%c171] : memref<234xf32, #tpu.memory_space<smem>>
      %1571 = vector.broadcast %1570 : f32 to vector<8x128xf32>
      %1572 = arith.mulf %1571, %1563 : vector<8x128xf32>
      %1573 = arith.addf %1569, %1572 : vector<8x128xf32>
      %1574 = arith.mulf %1562, %1411 : vector<8x128xf32>
      %c184 = arith.constant 184 : index
      %1575 = memref.load %arg3[%c184] : memref<234xf32, #tpu.memory_space<smem>>
      %1576 = vector.broadcast %1575 : f32 to vector<8x128xf32>
      %1577 = arith.mulf %1576, %1563 : vector<8x128xf32>
      %1578 = arith.addf %1574, %1577 : vector<8x128xf32>
      %1579 = arith.mulf %1563, %1413 : vector<8x128xf32>
      %1580 = arith.mulf %1568, %1411 : vector<8x128xf32>
      %c157 = arith.constant 157 : index
      %1581 = memref.load %arg3[%c157] : memref<234xf32, #tpu.memory_space<smem>>
      %1582 = vector.broadcast %1581 : f32 to vector<8x128xf32>
      %1583 = arith.mulf %1582, %1579 : vector<8x128xf32>
      %1584 = arith.addf %1580, %1583 : vector<8x128xf32>
      %1585 = arith.mulf %1573, %1411 : vector<8x128xf32>
      %c170 = arith.constant 170 : index
      %1586 = memref.load %arg3[%c170] : memref<234xf32, #tpu.memory_space<smem>>
      %1587 = vector.broadcast %1586 : f32 to vector<8x128xf32>
      %1588 = arith.mulf %1587, %1579 : vector<8x128xf32>
      %1589 = arith.addf %1585, %1588 : vector<8x128xf32>
      %1590 = arith.mulf %1578, %1411 : vector<8x128xf32>
      %c183 = arith.constant 183 : index
      %1591 = memref.load %arg3[%c183] : memref<234xf32, #tpu.memory_space<smem>>
      %1592 = vector.broadcast %1591 : f32 to vector<8x128xf32>
      %1593 = arith.mulf %1592, %1579 : vector<8x128xf32>
      %1594 = arith.addf %1590, %1593 : vector<8x128xf32>
      %1595 = arith.mulf %1579, %1413 : vector<8x128xf32>
      %1596 = arith.mulf %1584, %1411 : vector<8x128xf32>
      %c156 = arith.constant 156 : index
      %1597 = memref.load %arg3[%c156] : memref<234xf32, #tpu.memory_space<smem>>
      %1598 = vector.broadcast %1597 : f32 to vector<8x128xf32>
      %1599 = arith.mulf %1598, %1595 : vector<8x128xf32>
      %1600 = arith.addf %1596, %1599 : vector<8x128xf32>
      %1601 = arith.mulf %1589, %1411 : vector<8x128xf32>
      %c169 = arith.constant 169 : index
      %1602 = memref.load %arg3[%c169] : memref<234xf32, #tpu.memory_space<smem>>
      %1603 = vector.broadcast %1602 : f32 to vector<8x128xf32>
      %1604 = arith.mulf %1603, %1595 : vector<8x128xf32>
      %1605 = arith.addf %1601, %1604 : vector<8x128xf32>
      %1606 = arith.mulf %1594, %1411 : vector<8x128xf32>
      %c182 = arith.constant 182 : index
      %1607 = memref.load %arg3[%c182] : memref<234xf32, #tpu.memory_space<smem>>
      %1608 = vector.broadcast %1607 : f32 to vector<8x128xf32>
      %1609 = arith.mulf %1608, %1595 : vector<8x128xf32>
      %1610 = arith.addf %1606, %1609 : vector<8x128xf32>
      %cst_143 = arith.constant -7.1999998 : f32
      %1611 = vector.broadcast %cst_143 : f32 to vector<8x128xf32>
      %1612 = arith.subf %1383, %1611 : vector<8x128xf32>
      %cst_144 = arith.constant 0.0694444477 : f32
      %1613 = vector.broadcast %cst_144 : f32 to vector<8x128xf32>
      %1614 = arith.mulf %1612, %1613 : vector<8x128xf32>
      %cst_145 = arith.constant 0.000000e+00 : f32
      %cst_146 = arith.constant 1.000000e+00 : f32
      %1615 = vector.broadcast %cst_145 : f32 to vector<8x128xf32>
      %1616 = arith.maximumf %1615, %1614 : vector<8x128xf32>
      %1617 = vector.broadcast %cst_146 : f32 to vector<8x128xf32>
      %1618 = arith.minimumf %1617, %1616 : vector<8x128xf32>
      %cst_147 = arith.constant 1.000000e+00 : f32
      %1619 = vector.broadcast %cst_147 : f32 to vector<8x128xf32>
      %1620 = arith.subf %1619, %1618 : vector<8x128xf32>
      %c207 = arith.constant 207 : index
      %1621 = memref.load %arg3[%c207] : memref<234xf32, #tpu.memory_space<smem>>
      %1622 = vector.broadcast %1621 : f32 to vector<8x128xf32>
      %1623 = arith.mulf %1622, %1618 : vector<8x128xf32>
      %c206 = arith.constant 206 : index
      %1624 = memref.load %arg3[%c206] : memref<234xf32, #tpu.memory_space<smem>>
      %1625 = vector.broadcast %1624 : f32 to vector<8x128xf32>
      %1626 = arith.mulf %1625, %1620 : vector<8x128xf32>
      %1627 = arith.addf %1623, %1626 : vector<8x128xf32>
      %c220 = arith.constant 220 : index
      %1628 = memref.load %arg3[%c220] : memref<234xf32, #tpu.memory_space<smem>>
      %1629 = vector.broadcast %1628 : f32 to vector<8x128xf32>
      %1630 = arith.mulf %1629, %1618 : vector<8x128xf32>
      %c219 = arith.constant 219 : index
      %1631 = memref.load %arg3[%c219] : memref<234xf32, #tpu.memory_space<smem>>
      %1632 = vector.broadcast %1631 : f32 to vector<8x128xf32>
      %1633 = arith.mulf %1632, %1620 : vector<8x128xf32>
      %1634 = arith.addf %1630, %1633 : vector<8x128xf32>
      %1635 = arith.mulf %1620, %1620 : vector<8x128xf32>
      %1636 = arith.mulf %1627, %1618 : vector<8x128xf32>
      %c205 = arith.constant 205 : index
      %1637 = memref.load %arg3[%c205] : memref<234xf32, #tpu.memory_space<smem>>
      %1638 = vector.broadcast %1637 : f32 to vector<8x128xf32>
      %1639 = arith.mulf %1638, %1635 : vector<8x128xf32>
      %1640 = arith.addf %1636, %1639 : vector<8x128xf32>
      %1641 = arith.mulf %1634, %1618 : vector<8x128xf32>
      %c218 = arith.constant 218 : index
      %1642 = memref.load %arg3[%c218] : memref<234xf32, #tpu.memory_space<smem>>
      %1643 = vector.broadcast %1642 : f32 to vector<8x128xf32>
      %1644 = arith.mulf %1643, %1635 : vector<8x128xf32>
      %1645 = arith.addf %1641, %1644 : vector<8x128xf32>
      %1646 = arith.mulf %1635, %1620 : vector<8x128xf32>
      %1647 = arith.mulf %1640, %1618 : vector<8x128xf32>
      %c204 = arith.constant 204 : index
      %1648 = memref.load %arg3[%c204] : memref<234xf32, #tpu.memory_space<smem>>
      %1649 = vector.broadcast %1648 : f32 to vector<8x128xf32>
      %1650 = arith.mulf %1649, %1646 : vector<8x128xf32>
      %1651 = arith.addf %1647, %1650 : vector<8x128xf32>
      %1652 = arith.mulf %1645, %1618 : vector<8x128xf32>
      %c217 = arith.constant 217 : index
      %1653 = memref.load %arg3[%c217] : memref<234xf32, #tpu.memory_space<smem>>
      %1654 = vector.broadcast %1653 : f32 to vector<8x128xf32>
      %1655 = arith.mulf %1654, %1646 : vector<8x128xf32>
      %1656 = arith.addf %1652, %1655 : vector<8x128xf32>
      %1657 = arith.mulf %1646, %1620 : vector<8x128xf32>
      %1658 = arith.mulf %1651, %1618 : vector<8x128xf32>
      %c203 = arith.constant 203 : index
      %1659 = memref.load %arg3[%c203] : memref<234xf32, #tpu.memory_space<smem>>
      %1660 = vector.broadcast %1659 : f32 to vector<8x128xf32>
      %1661 = arith.mulf %1660, %1657 : vector<8x128xf32>
      %1662 = arith.addf %1658, %1661 : vector<8x128xf32>
      %1663 = arith.mulf %1656, %1618 : vector<8x128xf32>
      %c216 = arith.constant 216 : index
      %1664 = memref.load %arg3[%c216] : memref<234xf32, #tpu.memory_space<smem>>
      %1665 = vector.broadcast %1664 : f32 to vector<8x128xf32>
      %1666 = arith.mulf %1665, %1657 : vector<8x128xf32>
      %1667 = arith.addf %1663, %1666 : vector<8x128xf32>
      %1668 = arith.mulf %1657, %1620 : vector<8x128xf32>
      %1669 = arith.mulf %1662, %1618 : vector<8x128xf32>
      %c202 = arith.constant 202 : index
      %1670 = memref.load %arg3[%c202] : memref<234xf32, #tpu.memory_space<smem>>
      %1671 = vector.broadcast %1670 : f32 to vector<8x128xf32>
      %1672 = arith.mulf %1671, %1668 : vector<8x128xf32>
      %1673 = arith.addf %1669, %1672 : vector<8x128xf32>
      %1674 = arith.mulf %1667, %1618 : vector<8x128xf32>
      %c215 = arith.constant 215 : index
      %1675 = memref.load %arg3[%c215] : memref<234xf32, #tpu.memory_space<smem>>
      %1676 = vector.broadcast %1675 : f32 to vector<8x128xf32>
      %1677 = arith.mulf %1676, %1668 : vector<8x128xf32>
      %1678 = arith.addf %1674, %1677 : vector<8x128xf32>
      %1679 = arith.mulf %1668, %1620 : vector<8x128xf32>
      %1680 = arith.mulf %1673, %1618 : vector<8x128xf32>
      %c201 = arith.constant 201 : index
      %1681 = memref.load %arg3[%c201] : memref<234xf32, #tpu.memory_space<smem>>
      %1682 = vector.broadcast %1681 : f32 to vector<8x128xf32>
      %1683 = arith.mulf %1682, %1679 : vector<8x128xf32>
      %1684 = arith.addf %1680, %1683 : vector<8x128xf32>
      %1685 = arith.mulf %1678, %1618 : vector<8x128xf32>
      %c214 = arith.constant 214 : index
      %1686 = memref.load %arg3[%c214] : memref<234xf32, #tpu.memory_space<smem>>
      %1687 = vector.broadcast %1686 : f32 to vector<8x128xf32>
      %1688 = arith.mulf %1687, %1679 : vector<8x128xf32>
      %1689 = arith.addf %1685, %1688 : vector<8x128xf32>
      %1690 = arith.mulf %1679, %1620 : vector<8x128xf32>
      %1691 = arith.mulf %1684, %1618 : vector<8x128xf32>
      %c200 = arith.constant 200 : index
      %1692 = memref.load %arg3[%c200] : memref<234xf32, #tpu.memory_space<smem>>
      %1693 = vector.broadcast %1692 : f32 to vector<8x128xf32>
      %1694 = arith.mulf %1693, %1690 : vector<8x128xf32>
      %1695 = arith.addf %1691, %1694 : vector<8x128xf32>
      %1696 = arith.mulf %1689, %1618 : vector<8x128xf32>
      %c213 = arith.constant 213 : index
      %1697 = memref.load %arg3[%c213] : memref<234xf32, #tpu.memory_space<smem>>
      %1698 = vector.broadcast %1697 : f32 to vector<8x128xf32>
      %1699 = arith.mulf %1698, %1690 : vector<8x128xf32>
      %1700 = arith.addf %1696, %1699 : vector<8x128xf32>
      %1701 = arith.mulf %1690, %1620 : vector<8x128xf32>
      %1702 = arith.mulf %1695, %1618 : vector<8x128xf32>
      %c199 = arith.constant 199 : index
      %1703 = memref.load %arg3[%c199] : memref<234xf32, #tpu.memory_space<smem>>
      %1704 = vector.broadcast %1703 : f32 to vector<8x128xf32>
      %1705 = arith.mulf %1704, %1701 : vector<8x128xf32>
      %1706 = arith.addf %1702, %1705 : vector<8x128xf32>
      %1707 = arith.mulf %1700, %1618 : vector<8x128xf32>
      %c212 = arith.constant 212 : index
      %1708 = memref.load %arg3[%c212] : memref<234xf32, #tpu.memory_space<smem>>
      %1709 = vector.broadcast %1708 : f32 to vector<8x128xf32>
      %1710 = arith.mulf %1709, %1701 : vector<8x128xf32>
      %1711 = arith.addf %1707, %1710 : vector<8x128xf32>
      %1712 = arith.mulf %1701, %1620 : vector<8x128xf32>
      %1713 = arith.mulf %1706, %1618 : vector<8x128xf32>
      %c198 = arith.constant 198 : index
      %1714 = memref.load %arg3[%c198] : memref<234xf32, #tpu.memory_space<smem>>
      %1715 = vector.broadcast %1714 : f32 to vector<8x128xf32>
      %1716 = arith.mulf %1715, %1712 : vector<8x128xf32>
      %1717 = arith.addf %1713, %1716 : vector<8x128xf32>
      %1718 = arith.mulf %1711, %1618 : vector<8x128xf32>
      %c211 = arith.constant 211 : index
      %1719 = memref.load %arg3[%c211] : memref<234xf32, #tpu.memory_space<smem>>
      %1720 = vector.broadcast %1719 : f32 to vector<8x128xf32>
      %1721 = arith.mulf %1720, %1712 : vector<8x128xf32>
      %1722 = arith.addf %1718, %1721 : vector<8x128xf32>
      %1723 = arith.mulf %1712, %1620 : vector<8x128xf32>
      %1724 = arith.mulf %1717, %1618 : vector<8x128xf32>
      %c197 = arith.constant 197 : index
      %1725 = memref.load %arg3[%c197] : memref<234xf32, #tpu.memory_space<smem>>
      %1726 = vector.broadcast %1725 : f32 to vector<8x128xf32>
      %1727 = arith.mulf %1726, %1723 : vector<8x128xf32>
      %1728 = arith.addf %1724, %1727 : vector<8x128xf32>
      %1729 = arith.mulf %1722, %1618 : vector<8x128xf32>
      %c210 = arith.constant 210 : index
      %1730 = memref.load %arg3[%c210] : memref<234xf32, #tpu.memory_space<smem>>
      %1731 = vector.broadcast %1730 : f32 to vector<8x128xf32>
      %1732 = arith.mulf %1731, %1723 : vector<8x128xf32>
      %1733 = arith.addf %1729, %1732 : vector<8x128xf32>
      %1734 = arith.mulf %1723, %1620 : vector<8x128xf32>
      %1735 = arith.mulf %1728, %1618 : vector<8x128xf32>
      %c196 = arith.constant 196 : index
      %1736 = memref.load %arg3[%c196] : memref<234xf32, #tpu.memory_space<smem>>
      %1737 = vector.broadcast %1736 : f32 to vector<8x128xf32>
      %1738 = arith.mulf %1737, %1734 : vector<8x128xf32>
      %1739 = arith.addf %1735, %1738 : vector<8x128xf32>
      %1740 = arith.mulf %1733, %1618 : vector<8x128xf32>
      %c209 = arith.constant 209 : index
      %1741 = memref.load %arg3[%c209] : memref<234xf32, #tpu.memory_space<smem>>
      %1742 = vector.broadcast %1741 : f32 to vector<8x128xf32>
      %1743 = arith.mulf %1742, %1734 : vector<8x128xf32>
      %1744 = arith.addf %1740, %1743 : vector<8x128xf32>
      %1745 = arith.mulf %1734, %1620 : vector<8x128xf32>
      %1746 = arith.mulf %1739, %1618 : vector<8x128xf32>
      %c195 = arith.constant 195 : index
      %1747 = memref.load %arg3[%c195] : memref<234xf32, #tpu.memory_space<smem>>
      %1748 = vector.broadcast %1747 : f32 to vector<8x128xf32>
      %1749 = arith.mulf %1748, %1745 : vector<8x128xf32>
      %1750 = arith.addf %1746, %1749 : vector<8x128xf32>
      %1751 = arith.mulf %1744, %1618 : vector<8x128xf32>
      %c208 = arith.constant 208 : index
      %1752 = memref.load %arg3[%c208] : memref<234xf32, #tpu.memory_space<smem>>
      %1753 = vector.broadcast %1752 : f32 to vector<8x128xf32>
      %1754 = arith.mulf %1753, %1745 : vector<8x128xf32>
      %1755 = arith.addf %1751, %1754 : vector<8x128xf32>
      %cst_148 = arith.constant -7.1999998 : f32
      %1756 = vector.broadcast %cst_148 : f32 to vector<8x128xf32>
      %1757 = arith.subf %1379, %1756 : vector<8x128xf32>
      %cst_149 = arith.constant 0.0694444477 : f32
      %1758 = vector.broadcast %cst_149 : f32 to vector<8x128xf32>
      %1759 = arith.mulf %1757, %1758 : vector<8x128xf32>
      %cst_150 = arith.constant 0.000000e+00 : f32
      %cst_151 = arith.constant 1.000000e+00 : f32
      %1760 = vector.broadcast %cst_150 : f32 to vector<8x128xf32>
      %1761 = arith.maximumf %1760, %1759 : vector<8x128xf32>
      %1762 = vector.broadcast %cst_151 : f32 to vector<8x128xf32>
      %1763 = arith.minimumf %1762, %1761 : vector<8x128xf32>
      %cst_152 = arith.constant 1.000000e+00 : f32
      %1764 = vector.broadcast %cst_152 : f32 to vector<8x128xf32>
      %1765 = arith.subf %1764, %1763 : vector<8x128xf32>
      %c233 = arith.constant 233 : index
      %1766 = memref.load %arg3[%c233] : memref<234xf32, #tpu.memory_space<smem>>
      %1767 = vector.broadcast %1766 : f32 to vector<8x128xf32>
      %1768 = arith.mulf %1767, %1763 : vector<8x128xf32>
      %c232 = arith.constant 232 : index
      %1769 = memref.load %arg3[%c232] : memref<234xf32, #tpu.memory_space<smem>>
      %1770 = vector.broadcast %1769 : f32 to vector<8x128xf32>
      %1771 = arith.mulf %1770, %1765 : vector<8x128xf32>
      %1772 = arith.addf %1768, %1771 : vector<8x128xf32>
      %1773 = arith.mulf %1765, %1765 : vector<8x128xf32>
      %1774 = arith.mulf %1772, %1763 : vector<8x128xf32>
      %c231 = arith.constant 231 : index
      %1775 = memref.load %arg3[%c231] : memref<234xf32, #tpu.memory_space<smem>>
      %1776 = vector.broadcast %1775 : f32 to vector<8x128xf32>
      %1777 = arith.mulf %1776, %1773 : vector<8x128xf32>
      %1778 = arith.addf %1774, %1777 : vector<8x128xf32>
      %1779 = arith.mulf %1773, %1765 : vector<8x128xf32>
      %1780 = arith.mulf %1778, %1763 : vector<8x128xf32>
      %c230 = arith.constant 230 : index
      %1781 = memref.load %arg3[%c230] : memref<234xf32, #tpu.memory_space<smem>>
      %1782 = vector.broadcast %1781 : f32 to vector<8x128xf32>
      %1783 = arith.mulf %1782, %1779 : vector<8x128xf32>
      %1784 = arith.addf %1780, %1783 : vector<8x128xf32>
      %1785 = arith.mulf %1779, %1765 : vector<8x128xf32>
      %1786 = arith.mulf %1784, %1763 : vector<8x128xf32>
      %c229 = arith.constant 229 : index
      %1787 = memref.load %arg3[%c229] : memref<234xf32, #tpu.memory_space<smem>>
      %1788 = vector.broadcast %1787 : f32 to vector<8x128xf32>
      %1789 = arith.mulf %1788, %1785 : vector<8x128xf32>
      %1790 = arith.addf %1786, %1789 : vector<8x128xf32>
      %1791 = arith.mulf %1785, %1765 : vector<8x128xf32>
      %1792 = arith.mulf %1790, %1763 : vector<8x128xf32>
      %c228 = arith.constant 228 : index
      %1793 = memref.load %arg3[%c228] : memref<234xf32, #tpu.memory_space<smem>>
      %1794 = vector.broadcast %1793 : f32 to vector<8x128xf32>
      %1795 = arith.mulf %1794, %1791 : vector<8x128xf32>
      %1796 = arith.addf %1792, %1795 : vector<8x128xf32>
      %1797 = arith.mulf %1791, %1765 : vector<8x128xf32>
      %1798 = arith.mulf %1796, %1763 : vector<8x128xf32>
      %c227 = arith.constant 227 : index
      %1799 = memref.load %arg3[%c227] : memref<234xf32, #tpu.memory_space<smem>>
      %1800 = vector.broadcast %1799 : f32 to vector<8x128xf32>
      %1801 = arith.mulf %1800, %1797 : vector<8x128xf32>
      %1802 = arith.addf %1798, %1801 : vector<8x128xf32>
      %1803 = arith.mulf %1797, %1765 : vector<8x128xf32>
      %1804 = arith.mulf %1802, %1763 : vector<8x128xf32>
      %c226 = arith.constant 226 : index
      %1805 = memref.load %arg3[%c226] : memref<234xf32, #tpu.memory_space<smem>>
      %1806 = vector.broadcast %1805 : f32 to vector<8x128xf32>
      %1807 = arith.mulf %1806, %1803 : vector<8x128xf32>
      %1808 = arith.addf %1804, %1807 : vector<8x128xf32>
      %1809 = arith.mulf %1803, %1765 : vector<8x128xf32>
      %1810 = arith.mulf %1808, %1763 : vector<8x128xf32>
      %c225 = arith.constant 225 : index
      %1811 = memref.load %arg3[%c225] : memref<234xf32, #tpu.memory_space<smem>>
      %1812 = vector.broadcast %1811 : f32 to vector<8x128xf32>
      %1813 = arith.mulf %1812, %1809 : vector<8x128xf32>
      %1814 = arith.addf %1810, %1813 : vector<8x128xf32>
      %1815 = arith.mulf %1809, %1765 : vector<8x128xf32>
      %1816 = arith.mulf %1814, %1763 : vector<8x128xf32>
      %c224 = arith.constant 224 : index
      %1817 = memref.load %arg3[%c224] : memref<234xf32, #tpu.memory_space<smem>>
      %1818 = vector.broadcast %1817 : f32 to vector<8x128xf32>
      %1819 = arith.mulf %1818, %1815 : vector<8x128xf32>
      %1820 = arith.addf %1816, %1819 : vector<8x128xf32>
      %1821 = arith.mulf %1815, %1765 : vector<8x128xf32>
      %1822 = arith.mulf %1820, %1763 : vector<8x128xf32>
      %c223 = arith.constant 223 : index
      %1823 = memref.load %arg3[%c223] : memref<234xf32, #tpu.memory_space<smem>>
      %1824 = vector.broadcast %1823 : f32 to vector<8x128xf32>
      %1825 = arith.mulf %1824, %1821 : vector<8x128xf32>
      %1826 = arith.addf %1822, %1825 : vector<8x128xf32>
      %1827 = arith.mulf %1821, %1765 : vector<8x128xf32>
      %1828 = arith.mulf %1826, %1763 : vector<8x128xf32>
      %c222 = arith.constant 222 : index
      %1829 = memref.load %arg3[%c222] : memref<234xf32, #tpu.memory_space<smem>>
      %1830 = vector.broadcast %1829 : f32 to vector<8x128xf32>
      %1831 = arith.mulf %1830, %1827 : vector<8x128xf32>
      %1832 = arith.addf %1828, %1831 : vector<8x128xf32>
      %1833 = arith.mulf %1827, %1765 : vector<8x128xf32>
      %1834 = arith.mulf %1832, %1763 : vector<8x128xf32>
      %c221 = arith.constant 221 : index
      %1835 = memref.load %arg3[%c221] : memref<234xf32, #tpu.memory_space<smem>>
      %1836 = vector.broadcast %1835 : f32 to vector<8x128xf32>
      %1837 = arith.mulf %1836, %1833 : vector<8x128xf32>
      %1838 = arith.addf %1834, %1837 : vector<8x128xf32>
      %1839 = arith.mulf %1600, %1389 : vector<8x128xf32>
      %1840 = arith.addf %1383, %1839 : vector<8x128xf32>
      %1841 = arith.mulf %1605, %1389 : vector<8x128xf32>
      %1842 = arith.addf %1379, %1841 : vector<8x128xf32>
      %1843 = arith.mulf %1750, %1383 : vector<8x128xf32>
      %1844 = arith.addf %1842, %1843 : vector<8x128xf32>
      %1845 = arith.mulf %1610, %1389 : vector<8x128xf32>
      %1846 = arith.addf %942, %1845 : vector<8x128xf32>
      %1847 = arith.mulf %1755, %1383 : vector<8x128xf32>
      %1848 = arith.addf %1846, %1847 : vector<8x128xf32>
      %1849 = arith.mulf %1838, %1379 : vector<8x128xf32>
      %1850 = arith.addf %1848, %1849 : vector<8x128xf32>
      %1851 = arith.mulf %1394, %1610 : vector<8x128xf32>
      %1852 = arith.mulf %1397, %1605 : vector<8x128xf32>
      %1853 = arith.addf %1851, %1852 : vector<8x128xf32>
      %1854 = arith.mulf %1398, %1600 : vector<8x128xf32>
      %1855 = arith.addf %1853, %1854 : vector<8x128xf32>
      %cst_153 = arith.constant 1.000000e+00 : f32
      %1856 = vector.broadcast %cst_153 : f32 to vector<8x128xf32>
      %1857 = arith.addf %1855, %1856 : vector<8x128xf32>
      %1858 = arith.mulf %1394, %1755 : vector<8x128xf32>
      %1859 = arith.mulf %1397, %1750 : vector<8x128xf32>
      %1860 = arith.addf %1858, %1859 : vector<8x128xf32>
      %1861 = arith.addf %1860, %1398 : vector<8x128xf32>
      %1862 = arith.mulf %1394, %1838 : vector<8x128xf32>
      %1863 = arith.addf %1862, %1397 : vector<8x128xf32>
      %1864 = arith.mulf %1401, %1610 : vector<8x128xf32>
      %1865 = arith.mulf %1402, %1605 : vector<8x128xf32>
      %1866 = arith.addf %1864, %1865 : vector<8x128xf32>
      %1867 = arith.addf %1866, %1600 : vector<8x128xf32>
      %1868 = arith.mulf %1401, %1755 : vector<8x128xf32>
      %1869 = arith.mulf %1402, %1750 : vector<8x128xf32>
      %1870 = arith.addf %1868, %1869 : vector<8x128xf32>
      %cst_154 = arith.constant 1.000000e+00 : f32
      %1871 = vector.broadcast %cst_154 : f32 to vector<8x128xf32>
      %1872 = arith.addf %1870, %1871 : vector<8x128xf32>
      %1873 = arith.mulf %1401, %1838 : vector<8x128xf32>
      %1874 = arith.addf %1873, %1402 : vector<8x128xf32>
      %1875 = arith.mulf %1403, %1610 : vector<8x128xf32>
      %1876 = arith.addf %1875, %1605 : vector<8x128xf32>
      %1877 = arith.mulf %1403, %1755 : vector<8x128xf32>
      %1878 = arith.addf %1877, %1750 : vector<8x128xf32>
      %1879 = arith.mulf %1403, %1838 : vector<8x128xf32>
      %cst_155 = arith.constant 1.000000e+00 : f32
      %1880 = vector.broadcast %cst_155 : f32 to vector<8x128xf32>
      %1881 = arith.addf %1879, %1880 : vector<8x128xf32>
      %1882 = vector.shape_cast %1850 : vector<8x128xf32> to vector<1x8x128xf32>
      %1883 = vector.shape_cast %1844 : vector<8x128xf32> to vector<1x8x128xf32>
      %1884 = vector.shape_cast %1840 : vector<8x128xf32> to vector<1x8x128xf32>
      %1885 = vector.shape_cast %1389 : vector<8x128xf32> to vector<1x8x128xf32>
      %1886 = tpu.concatenate %1882, %1883, %1884, %1885 in 0 : vector<1x8x128xf32>, vector<1x8x128xf32>, vector<1x8x128xf32>, vector<1x8x128xf32> -> vector<4x8x128xf32>
      %c0_156 = arith.constant 0 : index
      %1887 = arith.index_cast %2 : i32 to index
      %c0_157 = arith.constant 0 : index
      %1888 = vector.load %arg5[%c0_156, %1887, %c0_157] : memref<4x16x128xf32, #tpu.memory_space<vmem>>, vector<4x8x128xf32>
      tpu.vector_store %arg5[%c0_156, %1887, %c0_157], %1886 {strides = array<i32>} : memref<4x16x128xf32, #tpu.memory_space<vmem>>, vector<4x8x128xf32>,
      %cst_158 = arith.constant 1.000000e+00 : f32
      %1889 = vector.broadcast %cst_158 : f32 to vector<8x128xf32>
      %1890 = vector.shape_cast %1857 : vector<8x128xf32> to vector<1x8x128xf32>
      %1891 = vector.shape_cast %1861 : vector<8x128xf32> to vector<1x8x128xf32>
      %1892 = vector.shape_cast %1863 : vector<8x128xf32> to vector<1x8x128xf32>
      %1893 = vector.shape_cast %1394 : vector<8x128xf32> to vector<1x8x128xf32>
      %1894 = vector.shape_cast %1867 : vector<8x128xf32> to vector<1x8x128xf32>
      %1895 = vector.shape_cast %1872 : vector<8x128xf32> to vector<1x8x128xf32>
      %1896 = vector.shape_cast %1874 : vector<8x128xf32> to vector<1x8x128xf32>
      %1897 = vector.shape_cast %1401 : vector<8x128xf32> to vector<1x8x128xf32>
      %1898 = vector.shape_cast %1876 : vector<8x128xf32> to vector<1x8x128xf32>
      %1899 = vector.shape_cast %1878 : vector<8x128xf32> to vector<1x8x128xf32>
      %1900 = vector.shape_cast %1881 : vector<8x128xf32> to vector<1x8x128xf32>
      %1901 = vector.shape_cast %1403 : vector<8x128xf32> to vector<1x8x128xf32>
      %1902 = vector.shape_cast %1610 : vector<8x128xf32> to vector<1x8x128xf32>
      %1903 = vector.shape_cast %1755 : vector<8x128xf32> to vector<1x8x128xf32>
      %1904 = vector.shape_cast %1838 : vector<8x128xf32> to vector<1x8x128xf32>
      %1905 = vector.shape_cast %1889 : vector<8x128xf32> to vector<1x8x128xf32>
      %1906 = tpu.concatenate %1890, %1891, %1892, %1893, %1894, %1895, %1896, %1897, %1898, %1899, %1900, %1901, %1902, %1903, %1904, %1905 in 0 : vector<1x8x128xf32>, vector<1x8x128xf32>, vector<1x8x128xf32>, vector<1x8x128xf32>, vector<1x8x128xf32>, vector<1x8x128xf32>, vector<1x8x128xf32>, vector<1x8x128xf32>, vector<1x8x128xf32>, vector<1x8x128xf32>, vector<1x8x128xf32>, vector<1x8x128xf32>, vector<1x8x128xf32>, vector<1x8x128xf32>, vector<1x8x128xf32>, vector<1x8x128xf32> -> vector<16x8x128xf32>
      %c0_159 = arith.constant 0 : index
      %1907 = arith.index_cast %2 : i32 to index
      %c0_160 = arith.constant 0 : index
      %1908 = vector.load %arg7[%c0_159, %1907, %c0_160] : memref<16x16x128xf32, #tpu.memory_space<vmem>>, vector<16x8x128xf32>
      tpu.vector_store %arg7[%c0_159, %1907, %c0_160], %1906 {strides = array<i32>} : memref<16x16x128xf32, #tpu.memory_space<vmem>>, vector<16x8x128xf32>,
    }
    %c2_i32_0 = arith.constant 2 : i32
    return
  }
  func.func @transform_0(%arg0: i32) -> i32 {
    %c0_i32 = arith.constant 0 : i32
    %c0_i32_0 = arith.constant 0 : i32
    return %c0_i32 : i32
  }
  func.func @transform_1(%arg0: i32) -> i32 {
    %c0_i32 = arith.constant 0 : i32
    %c0_i32_0 = arith.constant 0 : i32
    return %c0_i32 : i32
  }
  func.func @transform_2(%arg0: i32) -> i32 {
    %c0_i32 = arith.constant 0 : i32
    %c0_i32_0 = arith.constant 0 : i32
    return %c0_i32 : i32
  }
  func.func @transform_3(%arg0: i32) -> (i32, i32, i32) {
    %c0_i32 = arith.constant 0 : i32
    %c0_i32_0 = arith.constant 0 : i32
    %c0_i32_1 = arith.constant 0 : i32
    return %c0_i32, %arg0, %c0_i32_0 : i32, i32, i32
  }
  func.func @transform_4(%arg0: i32) -> (i32, i32, i32) {
    %c0_i32 = arith.constant 0 : i32
    %c0_i32_0 = arith.constant 0 : i32
    %c0_i32_1 = arith.constant 0 : i32
    return %c0_i32, %arg0, %c0_i32_0 : i32, i32, i32
  }
  func.func @transform_5(%arg0: i32) -> (i32, i32, i32) {
    %c0_i32 = arith.constant 0 : i32
    %c0_i32_0 = arith.constant 0 : i32
    %c0_i32_1 = arith.constant 0 : i32
    return %c0_i32, %arg0, %c0_i32_0 : i32, i32, i32
  }
  func.func @transform_6(%arg0: i32) -> (i32, i32, i32) {
    %c0_i32 = arith.constant 0 : i32
    %c0_i32_0 = arith.constant 0 : i32
    %c0_i32_1 = arith.constant 0 : i32
    return %c0_i32, %arg0, %c0_i32_0 : i32, i32, i32
  }
}

</mosaic_0001>

<llo_original>
// kernel: tpu_custom_call.1
$region0: #{tpu_custom_call.1}
  #allocation0 [shape = 'u32[]', space=smem, size = 0x4, offset = 0x4, fixed_abs, tag = 'smem constant byte address 0x4 - core index']
  #allocation1 [shape = 'u32[144,128]{1,0:T(1,128)}', space=vmem, size = 0x12000, scoped, tag = 'internal scratch']
  #allocation15 [shape = 's32[]', space=sflag, size = 0x4, offset = 0, fixed_abs, tag = 'sflag constant byte address 0x0 - dummy sync flag']
  #allocation17 [shape = 's32[]', space=sflag, size = 0x4, offset = 0, fixed_abs, tag = 'sflag constant byte address 0x0 - dummy sync flag']
  #allocation19 [shape = 's32[]', space=sflag, size = 0x4, offset = 0, fixed_abs, tag = 'sflag constant byte address 0x0 - dummy sync flag']
  #allocation21 [shape = 's32[]', space=sflag, size = 0x4, offset = 0, fixed_abs, tag = 'sflag constant byte address 0x0 - dummy sync flag']
  %s0 = inlined_call_operand.hbm [shape: f32[44], index: 0, kind: input, shape index: {}]
  %s1 = inlined_call_operand.vmem [shape: f32[40], index: 1, kind: input, shape index: {}]
  %s2 = inlined_call_operand.vmem [shape: f32[234], index: 2, kind: input, shape index: {}]
  %s3 = inlined_call_operand.hbm [shape: f32[4,64,128], index: 3, kind: input, shape index: {}]
  %s4 = inlined_call_operand.hbm [shape: f32[4,64,128], index: 4, kind: output, shape index: {0}]
  %s5 = inlined_call_operand.hbm [shape: f32[4,64,128], index: 5, kind: output, shape index: {1}]
  %s6 = inlined_call_operand.hbm [shape: f32[16,64,128], index: 6, kind: output, shape index: {2}]
  %7 = xla_tuple %s4, %s5, %s6
  %s8 = sld [smem:[#allocation0]]
  $region88: #{tpu_custom_call.1} parent=0
    _
  %s10 = ssub.s32 1, %s8
  %s11 = scalar_select 0, %s10, %s8
  $region1: #{tpu_custom_call.1} parent=0
    #allocation2 [shape = 'u8[512]{0}', space=smem, size = 0x200, scoped, tag = 'input window, operand 0, single buffered']
    #allocation3 [shape = 's32[2]{0}', space=sflag, size = 0x8, scoped, tag = 'scoped memory for tpu_custom_call.1']
    #allocation4 [shape = 's32[2]{0}', space=sflag, size = 0x8, scoped, tag = 'scoped memory for tpu_custom_call.1']
    #allocation5 [shape = 's32[2]{0}', space=sflag, size = 0x8, scoped, tag = 'scoped memory for tpu_custom_call.1']
    #allocation6 [shape = 's32[2]{0}', space=sflag, size = 0x8, scoped, tag = 'scoped memory for tpu_custom_call.1']
    #allocation7 [shape = 'u8[512]{0}', space=smem, size = 0x200, scoped, tag = 'input window, operand 1, single buffered']
    #allocation8 [shape = 'u8[1024]{0}', space=smem, size = 0x400, scoped, tag = 'input window, operand 2, single buffered']
    #allocation9 [shape = 's32[1]{0}', space=sflag, size = 0x4, scoped, tag = 'scoped memory for tpu_custom_call.1']
    #allocation10 [shape = 'u8[65536]{0}', space=vmem, size = 0x10000, scoped, tag = 'input window, operand 3']
    #allocation11 [shape = 'u8[65536]{0}', space=vmem, size = 0x10000, scoped, tag = 'output window, operand 0']
    #allocation12 [shape = 'u8[65536]{0}', space=vmem, size = 0x10000, scoped, tag = 'output window, operand 1']
    #allocation13 [shape = 's32[2]{0}', space=sflag, size = 0x8, scoped, tag = 'scoped memory for tpu_custom_call.1']
    #allocation14 [shape = 'u8[262144]{0}', space=vmem, size = 0x40000, scoped, tag = 'output window, operand 2']
    %12 = vsyncpa [#allocation5], 0
    %13 = vsyncpa [#allocation6], 0
    %14 = vsyncpa [#allocation9], 0
    %15 = vsyncpa [#allocation3], 0
    %s16 = scalar_lea.sflag [#allocation3], 1
    %17 = vsyncpa %s16, 0
    %18 = vsyncpa [#allocation4], 0
    %s19 = scalar_lea.sflag [#allocation4], 1
    %20 = vsyncpa %s19, 0
    %21 = vsyncpa [#allocation13], 0
    %s22 = scalar_lea.sflag [#allocation13], 1
    %23 = vsyncpa %s22, 0
    loop: start=0, step=1, limit=6
    $region2: #{tpu_custom_call.1} parent=1 // loop_pre_header
      _
    $region3: #{tpu_custom_call.1} parent=1 // loop_header
      %s25 = sphi 0, %s29
      %p26 = scmp.ge.s32.totalorder %s25, 6
      %s33 = sphi 0, %s33
      %s35 = sphi 0, %s33
      %s36 = sphi 0, %s35
      %s50 = sphi 0, %s36
      %s54 = sphi 0, %s54
      %s56 = sphi 0, %s54
      %s57 = sphi 0, %s56
      %s71 = sphi 0, %s57
      %s75 = sphi 0, %s75
      %s77 = sphi 0, %s75
      %s78 = sphi 0, %s77
      %s92 = sphi 0, %s78
      %s98 = sphi 0, %s100
      %s101 = sphi 0, %s98
      %s102 = sphi 0, %s101
      %s118 = sphi 0, %s102
      %s124 = sphi 0, %s126
      %s127 = sphi 0, %s124
      %s128 = sphi 0, %s127
      %s144 = sphi 0, %s128
      %s150 = sphi 0, %s152
      %s153 = sphi 0, %s150
      %s154 = sphi 0, %s153
      %s170 = sphi 0, %s154
      %s176 = sphi 0, %s178
      %s179 = sphi 0, %s176
      %s180 = sphi 0, %s179
      %s196 = sphi 0, %s180
    $region4: #{tpu_custom_call.1} parent=1 // loop_header_branch
      %28 = sbr.rel (%p26) target = $region8
    $region5: #{tpu_custom_call.1} parent=1 // loop_body
      %s30 = ssub.s32 %s25, 1
      %s31 = ssub.s32 %s25, 2
      %s32 = sadd.s32 %s25, 1
      %s34 = sadd.s32 %s33, 1
      %p37 = scmp.eq.s32.totalorder %s25, 3
      %p38 = scmp.ne.s32.totalorder %s33, %s35
      %p39 = scmp.eq.s32.totalorder %s25, 0
      %p40 = por %p38, %p39
      %p41 = scmp.ne.s32.totalorder %s33, %s35
      %p42 = scmp.eq.s32.totalorder %s30, 3
      %p43 = por %p41, %p42
      %p44 = scmp.ne.s32.totalorder %s35, %s36
      %p45 = scmp.eq.s32.totalorder %s30, 0
      %p46 = por %p44, %p45
      %p47 = scmp.ne.s32.totalorder %s35, %s36
      %p48 = scmp.eq.s32.totalorder %s31, 3
      %p49 = por %p47, %p48
      %p51 = scmp.ne.s32.totalorder %s36, %s50
      %p52 = scmp.eq.s32.totalorder %s31, 0
      %p53 = por %p51, %p52
      %s55 = sadd.s32 %s54, 1
      %p58 = scmp.eq.s32.totalorder %s25, 3
      %p59 = scmp.ne.s32.totalorder %s54, %s56
      %p60 = scmp.eq.s32.totalorder %s25, 0
      %p61 = por %p59, %p60
      %p62 = scmp.ne.s32.totalorder %s54, %s56
      %p63 = scmp.eq.s32.totalorder %s30, 3
      %p64 = por %p62, %p63
      %p65 = scmp.ne.s32.totalorder %s56, %s57
      %p66 = scmp.eq.s32.totalorder %s30, 0
      %p67 = por %p65, %p66
      %p68 = scmp.ne.s32.totalorder %s56, %s57
      %p69 = scmp.eq.s32.totalorder %s31, 3
      %p70 = por %p68, %p69
      %p72 = scmp.ne.s32.totalorder %s57, %s71
      %p73 = scmp.eq.s32.totalorder %s31, 0
      %p74 = por %p72, %p73
      %s76 = sadd.s32 %s75, 1
      %p79 = scmp.eq.s32.totalorder %s25, 3
      %p80 = scmp.ne.s32.totalorder %s75, %s77
      %p81 = scmp.eq.s32.totalorder %s25, 0
      %p82 = por %p80, %p81
      %p83 = scmp.ne.s32.totalorder %s75, %s77
      %p84 = scmp.eq.s32.totalorder %s30, 3
      %p85 = por %p83, %p84
      %p86 = scmp.ne.s32.totalorder %s77, %s78
      %p87 = scmp.eq.s32.totalorder %s30, 0
      %p88 = por %p86, %p87
      %p89 = scmp.ne.s32.totalorder %s77, %s78
      %p90 = scmp.eq.s32.totalorder %s31, 3
      %p91 = por %p89, %p90
      %p93 = scmp.ne.s32.totalorder %s78, %s92
      %p94 = scmp.eq.s32.totalorder %s31, 0
      %p95 = por %p93, %p94
      %s96 = ssub.s32 %s25, %s32
      %p97 = scmp.eq.s32.totalorder %s96, 0
      %s99 = sadd.s32 %s98, 1
      %s100 = scalar_select %p97, %s98, %s99
      %p103 = pneg %p97
      %p104 = scmp.eq.s32.totalorder %s25, 3
      %p105 = por %p103, %p104
      %p106 = scmp.ne.s32.totalorder %s98, %s101
      %p107 = scmp.eq.s32.totalorder %s25, 0
      %p108 = por %p106, %p107
      %p109 = scmp.ne.s32.totalorder %s98, %s101
      %p110 = scmp.eq.s32.totalorder %s30, 3
      %p111 = por %p109, %p110
      %p112 = scmp.ne.s32.totalorder %s101, %s102
      %p113 = scmp.eq.s32.totalorder %s30, 0
      %p114 = por %p112, %p113
      %p115 = scmp.ne.s32.totalorder %s101, %s102
      %p116 = scmp.eq.s32.totalorder %s31, 3
      %p117 = por %p115, %p116
      %p119 = scmp.ne.s32.totalorder %s102, %s118
      %p120 = scmp.eq.s32.totalorder %s31, 0
      %p121 = por %p119, %p120
      %s122 = ssub.s32 %s25, %s32
      %p123 = scmp.eq.s32.totalorder %s122, 0
      %s125 = sadd.s32 %s124, 1
      %s126 = scalar_select %p123, %s124, %s125
      %p129 = pneg %p123
      %p130 = scmp.eq.s32.totalorder %s25, 3
      %p131 = por %p129, %p130
      %p132 = scmp.ne.s32.totalorder %s124, %s127
      %p133 = scmp.eq.s32.totalorder %s25, 0
      %p134 = por %p132, %p133
      %p135 = scmp.ne.s32.totalorder %s124, %s127
      %p136 = scmp.eq.s32.totalorder %s30, 3
      %p137 = por %p135, %p136
      %p138 = scmp.ne.s32.totalorder %s127, %s128
      %p139 = scmp.eq.s32.totalorder %s30, 0
      %p140 = por %p138, %p139
      %p141 = scmp.ne.s32.totalorder %s127, %s128
      %p142 = scmp.eq.s32.totalorder %s31, 3
      %p143 = por %p141, %p142
      %p145 = scmp.ne.s32.totalorder %s128, %s144
      %p146 = scmp.eq.s32.totalorder %s31, 0
      %p147 = por %p145, %p146
      %s148 = ssub.s32 %s25, %s32
      %p149 = scmp.eq.s32.totalorder %s148, 0
      %s151 = sadd.s32 %s150, 1
      %s152 = scalar_select %p149, %s150, %s151
      %p155 = pneg %p149
      %p156 = scmp.eq.s32.totalorder %s25, 3
      %p157 = por %p155, %p156
      %p158 = scmp.ne.s32.totalorder %s150, %s153
      %p159 = scmp.eq.s32.totalorder %s25, 0
      %p160 = por %p158, %p159
      %p161 = scmp.ne.s32.totalorder %s150, %s153
      %p162 = scmp.eq.s32.totalorder %s30, 3
      %p163 = por %p161, %p162
      %p164 = scmp.ne.s32.totalorder %s153, %s154
      %p165 = scmp.eq.s32.totalorder %s30, 0
      %p166 = por %p164, %p165
      %p167 = scmp.ne.s32.totalorder %s153, %s154
      %p168 = scmp.eq.s32.totalorder %s31, 3
      %p169 = por %p167, %p168
      %p171 = scmp.ne.s32.totalorder %s154, %s170
      %p172 = scmp.eq.s32.totalorder %s31, 0
      %p173 = por %p171, %p172
      %s174 = ssub.s32 %s25, %s32
      %p175 = scmp.eq.s32.totalorder %s174, 0
      %s177 = sadd.s32 %s176, 1
      %s178 = scalar_select %p175, %s176, %s177
      %p181 = pneg %p175
      %p182 = scmp.eq.s32.totalorder %s25, 3
      %p183 = por %p181, %p182
      %p184 = scmp.ne.s32.totalorder %s176, %s179
      %p185 = scmp.eq.s32.totalorder %s25, 0
      %p186 = por %p184, %p185
      %p187 = scmp.ne.s32.totalorder %s176, %s179
      %p188 = scmp.eq.s32.totalorder %s30, 3
      %p189 = por %p187, %p188
      %p190 = scmp.ne.s32.totalorder %s179, %s180
      %p191 = scmp.eq.s32.totalorder %s30, 0
      %p192 = por %p190, %p191
      %p193 = scmp.ne.s32.totalorder %s179, %s180
      %p194 = scmp.eq.s32.totalorder %s31, 3
      %p195 = por %p193, %p194
      %p197 = scmp.ne.s32.totalorder %s180, %s196
      %p198 = scmp.eq.s32.totalorder %s31, 0
      %p199 = por %p197, %p198
      %p200 = scmp.le.s32.totalorder 1, %s25
      %p201 = scmp.lt.s32.totalorder %s25, 5
      %p202 = pnand %p200, %p201
      %p203 = pneg %p202
      // Predicated region
      $region9: #{tpu_custom_call.1} parent=5 // pred_check
        _
      $region10: #{tpu_custom_call.1} parent=5 // pred_check_branch
        %205 = sbr.rel (%p202) target = $region12
      $region11: #{tpu_custom_call.1} parent=5 // pred_region
        %s206 = ssub.s32 %s25, 1
        // Predicated region
        $region13: #{tpu_custom_call.1} parent=11 // pred_check
          %p207 = pneg %p46
        $region14: #{tpu_custom_call.1} parent=11 // pred_check_branch
          %209 = sbr.rel (%p207) target = $region16
        $region15: #{tpu_custom_call.1} parent=11 // pred_region
          %s211 = ssub.s32 16, 16
          %212 = vsyncadd [#allocation5], %s211
          %215 = dma.hbm_to_smem %s0, 16, [#allocation2], [#allocation5]
        $region16: #{tpu_custom_call.1} parent=11 // pred_fallthru
          _
        // Predicated region
        $region17: #{tpu_custom_call.1} parent=11 // pred_check
          %p216 = pneg %p67
        $region18: #{tpu_custom_call.1} parent=11 // pred_check_branch
          %218 = sbr.rel (%p216) target = $region20
        $region19: #{tpu_custom_call.1} parent=11 // pred_region
          %s220 = ssub.s32 16, 16
          %221 = vsyncadd [#allocation6], %s220
          %s223 = sshll.u32 %s1, 4
          %s224 = int_to_ptr.vmem [resolvable:$true] %s223
          %226 = dma.vmem_to_smem %s224, 16, [#allocation7], [#allocation6]
        $region20: #{tpu_custom_call.1} parent=11 // pred_fallthru
          _
        // Predicated region
        $region21: #{tpu_custom_call.1} parent=11 // pred_check
          %p227 = pneg %p88
        $region22: #{tpu_custom_call.1} parent=11 // pred_check_branch
          %229 = sbr.rel (%p227) target = $region24
        $region23: #{tpu_custom_call.1} parent=11 // pred_region
          %s231 = ssub.s32 32, 32
          %232 = vsyncadd [#allocation9], %s231
          %s234 = sshll.u32 %s2, 4
          %s235 = int_to_ptr.vmem [resolvable:$true] %s234
          %237 = dma.vmem_to_smem %s235, 32, [#allocation8], [#allocation9]
        $region24: #{tpu_custom_call.1} parent=11 // pred_fallthru
          _
      $region12: #{tpu_custom_call.1} parent=5 // pred_fallthru
        _
      %p238 = scmp.lt.s32.totalorder %s25, 4
      // Predicated region
      $region25: #{tpu_custom_call.1} parent=5 // pred_check
        %p239 = pneg %p238
      $region26: #{tpu_custom_call.1} parent=5 // pred_check_branch
        %241 = sbr.rel (%p239) target = $region28
      $region27: #{tpu_custom_call.1} parent=5 // pred_region
        // Predicated region
        $region29: #{tpu_custom_call.1} parent=27 // pred_check
          %p242 = pneg %p108
        $region30: #{tpu_custom_call.1} parent=27 // pred_check_branch
          %244 = sbr.rel (%p242) target = $region32
        $region31: #{tpu_custom_call.1} parent=27 // pred_region
          #allocation16 [shape = 'u32[6]{0}', space=smem, size = 0x18, scoped, tag = 'DMA stride descriptor']
          %s245 = sand.u32 %s98, 1
          %s246 = scalar_lea.sflag [#allocation3], %s245
          %s247 = sand.u32 %s98, 1
          %s248 = smul.addr %s247, 64
          %s249 = scalar_lea.vmem [#allocation10], %s248
          %s250 = smul.u32 2, %s25
          %s252 = ssub.s32 1024, 1024
          %253 = vsyncadd %s246, %s252
          %s254 = smul.addr %s250, 128
          %s255 = scalar_lea.hbm %s3, %s254
          %s257 = sshll.u32 1, 14
          %s258 = sxor.u32 4294967295, %s257
          %s260 = sld [smem:[#allocation0]]
          %s261 = sadd.s32 2, %s260
          %s263 = sshll.u32 7, 26
          %s264 = sxor.u32 4294967295, %s263
          %s265 = sand.u32 0, %s264
          %s266 = sshll.u32 %s261, 26
          %s267 = sor.u32 %s265, %s266
          %s268 = sshll.u32 %s249, 4
          %s269 = int_to_ptr.vmem [resolvable:$true] %s268
          %275 = sst [smem:[#allocation16]] 1024
          %s276 = scalar_lea.smem [#allocation16], 1
          %277 = sst [smem:[%s276]] 256
          %s278 = scalar_lea.smem [#allocation16], 2
          %279 = sst [smem:[%s278]] 2
          %s280 = scalar_lea.smem [#allocation16], 3
          %281 = sst [smem:[%s280]] 128
          %s282 = scalar_lea.smem [#allocation16], 4
          %283 = sst [smem:[%s282]] 128
          %s284 = scalar_lea.smem [#allocation16], 5
          %285 = sst [smem:[%s284]] 8
          %287 = dma.general %s255, 1024, %s269, %s246, [#allocation15], [#allocation16], %s267, 0
        $region32: #{tpu_custom_call.1} parent=27 // pred_fallthru
          _
      $region28: #{tpu_custom_call.1} parent=5 // pred_fallthru
        _
      %p288 = scmp.le.s32.totalorder 1, %s25
      %p289 = scmp.lt.s32.totalorder %s25, 5
      %p290 = pnand %p288, %p289
      %p291 = pneg %p290
      // Predicated region
      $region33: #{tpu_custom_call.1} parent=5 // pred_check
        _
      $region34: #{tpu_custom_call.1} parent=5 // pred_check_branch
        %293 = sbr.rel (%p290) target = $region36
      $region35: #{tpu_custom_call.1} parent=5 // pred_region
        %s294 = ssub.s32 %s25, 1
        // Predicated region
        $region37: #{tpu_custom_call.1} parent=35 // pred_check
          %p295 = pneg %p46
        $region38: #{tpu_custom_call.1} parent=35 // pred_check_branch
          %297 = sbr.rel (%p295) target = $region40
        $region39: #{tpu_custom_call.1} parent=35 // pred_region
          %298 = dma.done [#allocation5], 16
        $region40: #{tpu_custom_call.1} parent=35 // pred_fallthru
          _
        // Predicated region
        $region41: #{tpu_custom_call.1} parent=35 // pred_check
          %p299 = pneg %p67
        $region42: #{tpu_custom_call.1} parent=35 // pred_check_branch
          %301 = sbr.rel (%p299) target = $region44
        $region43: #{tpu_custom_call.1} parent=35 // pred_region
          %302 = dma.done [#allocation6], 16
        $region44: #{tpu_custom_call.1} parent=35 // pred_fallthru
          _
        // Predicated region
        $region45: #{tpu_custom_call.1} parent=35 // pred_check
          %p303 = pneg %p88
        $region46: #{tpu_custom_call.1} parent=35 // pred_check_branch
          %305 = sbr.rel (%p303) target = $region48
        $region47: #{tpu_custom_call.1} parent=35 // pred_region
          %306 = dma.done [#allocation9], 32
        $region48: #{tpu_custom_call.1} parent=35 // pred_fallthru
          _
        %s307 = sand.u32 %s101, 1
        %s308 = scalar_lea.sflag [#allocation3], %s307
        %s309 = sand.u32 %s101, 1
        %s310 = smul.addr %s309, 64
        %s311 = scalar_lea.vmem [#allocation10], %s310
        // Predicated region
        $region49: #{tpu_custom_call.1} parent=35 // pred_check
          %p312 = pneg %p114
        $region50: #{tpu_custom_call.1} parent=35 // pred_check_branch
          %314 = sbr.rel (%p312) target = $region52
        $region51: #{tpu_custom_call.1} parent=35 // pred_region
          %315 = dma.done %s308, 1024
        $region52: #{tpu_custom_call.1} parent=35 // pred_fallthru
          _
        %316 = sfence
        %p317 = pneg %p46
        %p318 = pneg %p43
        %p319 = pneg %p67
        %p320 = pneg %p64
        %p321 = pneg %p88
        %p322 = pneg %p85
        %s323 = sand.u32 %s101, 1
        %s324 = scalar_lea.sflag [#allocation3], %s323
        %s325 = sand.u32 %s101, 1
        %s326 = smul.addr %s325, 64
        %s327 = scalar_lea.vmem [#allocation10], %s326
        %p328 = pneg %p114
        %p329 = pneg %p111
        %p330 = pneg %p140
        %p331 = pneg %p137
        %s332 = sand.u32 %s127, 1
        %s333 = scalar_lea.sflag [#allocation4], %s332
        %s334 = sand.u32 %s127, 1
        %s335 = smul.addr %s334, 64
        %s336 = scalar_lea.vmem [#allocation11], %s335
        %p337 = pneg %p166
        %p338 = pneg %p163
        %s339 = sand.u32 %s30, 1
        %s340 = scalar_lea.sflag [#allocation13], %s339
        %s341 = sand.u32 %s153, 1
        %s342 = smul.addr %s341, 64
        %s343 = scalar_lea.vmem [#allocation12], %s342
        %p344 = pneg %p192
        %p345 = pneg %p189
        %s346 = sand.u32 %s30, 1
        %s347 = scalar_lea.sflag [#allocation13], %s346
        %s348 = sand.u32 %s179, 1
        %s349 = smul.addr %s348, 256
        %s350 = scalar_lea.vmem [#allocation14], %s349
        %s351 = smul.u32 2, %s30
        %s352 = smul.u32 2, %s30
        %s353 = smul.u32 2, %s30
        %s354 = smul.u32 2, %s30
        loop: start=0, step=1, limit=2
        $region53: #{tpu_custom_call.1} parent=35 // loop_pre_header
          _
        $region54: #{tpu_custom_call.1} parent=35 // loop_header
          %s356 = sphi 0, %s360
          %p357 = scmp.ge.s32.totalorder %s356, 2
        $region55: #{tpu_custom_call.1} parent=35 // loop_header_branch
          %359 = sbr.rel (%p357) target = $region59
        $region56: #{tpu_custom_call.1} parent=35 // loop_body
          %s361 = smul.u32 %s356, 8
          %s362 = scalar_lea.vmem %s311, %s361 [#allocation10]
          %v363 = vld [vmem:[%s362] sm:$0xff]
          %v364 = vld [vmem:[%s362 + $0x10] sm:$0xff]
          %v365 = vld [vmem:[%s362 + $0x20] sm:$0xff]
          %v366 = vld [vmem:[%s362 + $0x30] sm:$0xff]
          %v367 = vsub.f32 %v363, -7.2
          %v368 = vmul.f32 %v367, 0.06944445
          %v369 = vmax.f32 %v368, 0.0
          %v370 = vmin.f32 %v369, 1.0
          %v371 = vsub.f32 1.0, %v370
          %s372 = sld [smem:[#allocation2 + $0xa]]
          %v373 = vstv %s372
          %v374 = vmul.f32 %v373, %v370
          %s375 = sld [smem:[#allocation2 + $0x9]]
          %v376 = vstv %s375
          %v377 = vmul.f32 %v376, %v371
          %v378 = vadd.f32 %v374, %v377
          %s379 = sld [smem:[#allocation7 + $0x9]]
          %v380 = vstv %s379
          %v381 = vmul.f32 %v380, %v370
          %s382 = sld [smem:[#allocation7 + $0x8]]
          %v383 = vstv %s382
          %v384 = vmul.f32 %v383, %v371
          %v385 = vadd.f32 %v381, %v384
          %v386 = vmul.f32 %v371, %v371
          %v387 = vmul.f32 %v378, %v370
          %s388 = sld [smem:[#allocation2 + $0x8]]
          %v389 = vstv %s388
          %v390 = vmul.f32 %v389, %v386
          %v391 = vadd.f32 %v387, %v390
          %v392 = vmul.f32 %v385, %v370
          %s393 = sld [smem:[#allocation7 + $0x7]]
          %v394 = vstv %s393
          %v395 = vmul.f32 %v394, %v386
          %v396 = vadd.f32 %v392, %v395
          %v397 = vmul.f32 %v386, %v371
          %v398 = vmul.f32 %v391, %v370
          %s399 = sld [smem:[#allocation2 + $0x7]]
          %v400 = vstv %s399
          %v401 = vmul.f32 %v400, %v397
          %v402 = vadd.f32 %v398, %v401
          %v403 = vmul.f32 %v396, %v370
          %s404 = sld [smem:[#allocation7 + $0x6]]
          %v405 = vstv %s404
          %v406 = vmul.f32 %v405, %v397
          %v407 = vadd.f32 %v403, %v406
          %v408 = vmul.f32 %v397, %v371
          %v409 = vmul.f32 %v402, %v370
          %s410 = sld [smem:[#allocation2 + $0x6]]
          %v411 = vstv %s410
          %v412 = vmul.f32 %v411, %v408
          %v413 = vadd.f32 %v409, %v412
          %v414 = vmul.f32 %v407, %v370
          %s415 = sld [smem:[#allocation7 + $0x5]]
          %v416 = vstv %s415
          %v417 = vmul.f32 %v416, %v408
          %v418 = vadd.f32 %v414, %v417
          %v419 = vmul.f32 %v408, %v371
          %v420 = vmul.f32 %v413, %v370
          %s421 = sld [smem:[#allocation2 + $0x5]]
          %v422 = vstv %s421
          %v423 = vmul.f32 %v422, %v419
          %v424 = vadd.f32 %v420, %v423
          %v425 = vmul.f32 %v418, %v370
          %s426 = sld [smem:[#allocation7 + $0x4]]
          %v427 = vstv %s426
          %v428 = vmul.f32 %v427, %v419
          %v429 = vadd.f32 %v425, %v428
          %v430 = vmul.f32 %v419, %v371
          %v431 = vmul.f32 %v424, %v370
          %s432 = sld [smem:[#allocation2 + $0x4]]
          %v433 = vstv %s432
          %v434 = vmul.f32 %v433, %v430
          %v435 = vadd.f32 %v431, %v434
          %v436 = vmul.f32 %v429, %v370
          %s437 = sld [smem:[#allocation7 + $0x3]]
          %v438 = vstv %s437
          %v439 = vmul.f32 %v438, %v430
          %v440 = vadd.f32 %v436, %v439
          %v441 = vmul.f32 %v430, %v371
          %v442 = vmul.f32 %v435, %v370
          %s443 = sld [smem:[#allocation2 + $0x3]]
          %v444 = vstv %s443
          %v445 = vmul.f32 %v444, %v441
          %v446 = vadd.f32 %v442, %v445
          %v447 = vmul.f32 %v440, %v370
          %s448 = sld [smem:[#allocation7 + $0x2]]
          %v449 = vstv %s448
          %v450 = vmul.f32 %v449, %v441
          %v451 = vadd.f32 %v447, %v450
          %v452 = vmul.f32 %v441, %v371
          %v453 = vmul.f32 %v446, %v370
          %s454 = sld [smem:[#allocation2 + $0x2]]
          %v455 = vstv %s454
          %v456 = vmul.f32 %v455, %v452
          %v457 = vadd.f32 %v453, %v456
          %v458 = vmul.f32 %v451, %v370
          %s459 = sld [smem:[#allocation7 + $0x1]]
          %v460 = vstv %s459
          %v461 = vmul.f32 %v460, %v452
          %v462 = vadd.f32 %v458, %v461
          %v463 = vmul.f32 %v452, %v371
          %v464 = vmul.f32 %v457, %v370
          %s465 = sld [smem:[#allocation2 + $0x1]]
          %v466 = vstv %s465
          %v467 = vmul.f32 %v466, %v463
          %v468 = vadd.f32 %v464, %v467
          %v469 = vmul.f32 %v462, %v370
          %s470 = sld [smem:[#allocation7]]
          %v471 = vstv %s470
          %v472 = vmul.f32 %v471, %v463
          %v473 = vadd.f32 %v469, %v472
          %v474 = vmul.f32 %v463, %v371
          %v475 = vmul.f32 %v468, %v370
          %s476 = sld [smem:[#allocation2]]
          %v477 = vstv %s476
          %v478 = vmul.f32 %v477, %v474
          %v479 = vadd.f32 %v475, %v478
          %v480 = vlog2.pop %v473
          %v481 = vmul.f32 %v480, 0.6931472
          %v482 = vsub.f32 %v364, -7.2
          %v483 = vmul.f32 %v482, 0.06944445
          %v484 = vmax.f32 %v483, 0.0
          %v485 = vmin.f32 %v484, 1.0
          %v486 = vsub.f32 1.0, %v485
          %s487 = sld [smem:[#allocation2 + $0x15]]
          %v488 = vstv %s487
          %v489 = vmul.f32 %v488, %v485
          %s490 = sld [smem:[#allocation2 + $0x14]]
          %v491 = vstv %s490
          %v492 = vmul.f32 %v491, %v486
          %v493 = vadd.f32 %v489, %v492
          %s494 = sld [smem:[#allocation7 + $0x13]]
          %v495 = vstv %s494
          %v496 = vmul.f32 %v495, %v485
          %s497 = sld [smem:[#allocation7 + $0x12]]
          %v498 = vstv %s497
          %v499 = vmul.f32 %v498, %v486
          %v500 = vadd.f32 %v496, %v499
          %v501 = vmul.f32 %v486, %v486
          %v502 = vmul.f32 %v493, %v485
          %s503 = sld [smem:[#allocation2 + $0x13]]
          %v504 = vstv %s503
          %v505 = vmul.f32 %v504, %v501
          %v506 = vadd.f32 %v502, %v505
          %v507 = vmul.f32 %v500, %v485
          %s508 = sld [smem:[#allocation7 + $0x11]]
          %v509 = vstv %s508
          %v510 = vmul.f32 %v509, %v501
          %v511 = vadd.f32 %v507, %v510
          %v512 = vmul.f32 %v501, %v486
          %v513 = vmul.f32 %v506, %v485
          %s514 = sld [smem:[#allocation2 + $0x12]]
          %v515 = vstv %s514
          %v516 = vmul.f32 %v515, %v512
          %v517 = vadd.f32 %v513, %v516
          %v518 = vmul.f32 %v511, %v485
          %s519 = sld [smem:[#allocation7 + $0x10]]
          %v520 = vstv %s519
          %v521 = vmul.f32 %v520, %v512
          %v522 = vadd.f32 %v518, %v521
          %v523 = vmul.f32 %v512, %v486
          %v524 = vmul.f32 %v517, %v485
          %s525 = sld [smem:[#allocation2 + $0x11]]
          %v526 = vstv %s525
          %v527 = vmul.f32 %v526, %v523
          %v528 = vadd.f32 %v524, %v527
          %v529 = vmul.f32 %v522, %v485
          %s530 = sld [smem:[#allocation7 + $0xf]]
          %v531 = vstv %s530
          %v532 = vmul.f32 %v531, %v523
          %v533 = vadd.f32 %v529, %v532
          %v534 = vmul.f32 %v523, %v486
          %v535 = vmul.f32 %v528, %v485
          %s536 = sld [smem:[#allocation2 + $0x10]]
          %v537 = vstv %s536
          %v538 = vmul.f32 %v537, %v534
          %v539 = vadd.f32 %v535, %v538
          %v540 = vmul.f32 %v533, %v485
          %s541 = sld [smem:[#allocation7 + $0xe]]
          %v542 = vstv %s541
          %v543 = vmul.f32 %v542, %v534
          %v544 = vadd.f32 %v540, %v543
          %v545 = vmul.f32 %v534, %v486
          %v546 = vmul.f32 %v539, %v485
          %s547 = sld [smem:[#allocation2 + $0xf]]
          %v548 = vstv %s547
          %v549 = vmul.f32 %v548, %v545
          %v550 = vadd.f32 %v546, %v549
          %v551 = vmul.f32 %v544, %v485
          %s552 = sld [smem:[#allocation7 + $0xd]]
          %v553 = vstv %s552
          %v554 = vmul.f32 %v553, %v545
          %v555 = vadd.f32 %v551, %v554
          %v556 = vmul.f32 %v545, %v486
          %v557 = vmul.f32 %v550, %v485
          %s558 = sld [smem:[#allocation2 + $0xe]]
          %v559 = vstv %s558
          %v560 = vmul.f32 %v559, %v556
          %v561 = vadd.f32 %v557, %v560
          %v562 = vmul.f32 %v555, %v485
          %s563 = sld [smem:[#allocation7 + $0xc]]
          %v564 = vstv %s563
          %v565 = vmul.f32 %v564, %v556
          %v566 = vadd.f32 %v562, %v565
          %v567 = vmul.f32 %v556, %v486
          %v568 = vmul.f32 %v561, %v485
          %s569 = sld [smem:[#allocation2 + $0xd]]
          %v570 = vstv %s569
          %v571 = vmul.f32 %v570, %v567
          %v572 = vadd.f32 %v568, %v571
          %v573 = vmul.f32 %v566, %v485
          %s574 = sld [smem:[#allocation7 + $0xb]]
          %v575 = vstv %s574
          %v576 = vmul.f32 %v575, %v567
          %v577 = vadd.f32 %v573, %v576
          %v578 = vmul.f32 %v567, %v486
          %v579 = vmul.f32 %v572, %v485
          %s580 = sld [smem:[#allocation2 + $0xc]]
          %v581 = vstv %s580
          %v582 = vmul.f32 %v581, %v578
          %v583 = vadd.f32 %v579, %v582
          %v584 = vmul.f32 %v577, %v485
          %s585 = sld [smem:[#allocation7 + $0xa]]
          %v586 = vstv %s585
          %v587 = vmul.f32 %v586, %v578
          %v588 = vadd.f32 %v584, %v587
          %v589 = vmul.f32 %v578, %v486
          %v590 = vmul.f32 %v583, %v485
          %s591 = sld [smem:[#allocation2 + $0xb]]
          %v592 = vstv %s591
          %v593 = vmul.f32 %v592, %v589
          %v594 = vadd.f32 %v590, %v593
          %v595 = vlog2.pop %v588
          %v596 = vmul.f32 %v595, 0.6931472
          %v597 = vsub.f32 %v365, -7.2
          %v598 = vmul.f32 %v597, 0.06944445
          %v599 = vmax.f32 %v598, 0.0
          %v600 = vmin.f32 %v599, 1.0
          %v601 = vsub.f32 1.0, %v600
          %s602 = sld [smem:[#allocation2 + $0x20]]
          %v603 = vstv %s602
          %v604 = vmul.f32 %v603, %v600
          %s605 = sld [smem:[#allocation2 + $0x1f]]
          %v606 = vstv %s605
          %v607 = vmul.f32 %v606, %v601
          %v608 = vadd.f32 %v604, %v607
          %s609 = sld [smem:[#allocation7 + $0x1d]]
          %v610 = vstv %s609
          %v611 = vmul.f32 %v610, %v600
          %s612 = sld [smem:[#allocation7 + $0x1c]]
          %v613 = vstv %s612
          %v614 = vmul.f32 %v613, %v601
          %v615 = vadd.f32 %v611, %v614
          %v616 = vmul.f32 %v601, %v601
          %v617 = vmul.f32 %v608, %v600
          %s618 = sld [smem:[#allocation2 + $0x1e]]
          %v619 = vstv %s618
          %v620 = vmul.f32 %v619, %v616
          %v621 = vadd.f32 %v617, %v620
          %v622 = vmul.f32 %v615, %v600
          %s623 = sld [smem:[#allocation7 + $0x1b]]
          %v624 = vstv %s623
          %v625 = vmul.f32 %v624, %v616
          %v626 = vadd.f32 %v622, %v625
          %v627 = vmul.f32 %v616, %v601
          %v628 = vmul.f32 %v621, %v600
          %s629 = sld [smem:[#allocation2 + $0x1d]]
          %v630 = vstv %s629
          %v631 = vmul.f32 %v630, %v627
          %v632 = vadd.f32 %v628, %v631
          %v633 = vmul.f32 %v626, %v600
          %s634 = sld [smem:[#allocation7 + $0x1a]]
          %v635 = vstv %s634
          %v636 = vmul.f32 %v635, %v627
          %v637 = vadd.f32 %v633, %v636
          %v638 = vmul.f32 %v627, %v601
          %v639 = vmul.f32 %v632, %v600
          %s640 = sld [smem:[#allocation2 + $0x1c]]
          %v641 = vstv %s640
          %v642 = vmul.f32 %v641, %v638
          %v643 = vadd.f32 %v639, %v642
          %v644 = vmul.f32 %v637, %v600
          %s645 = sld [smem:[#allocation7 + $0x19]]
          %v646 = vstv %s645
          %v647 = vmul.f32 %v646, %v638
          %v648 = vadd.f32 %v644, %v647
          %v649 = vmul.f32 %v638, %v601
          %v650 = vmul.f32 %v643, %v600
          %s651 = sld [smem:[#allocation2 + $0x1b]]
          %v652 = vstv %s651
          %v653 = vmul.f32 %v652, %v649
          %v654 = vadd.f32 %v650, %v653
          %v655 = vmul.f32 %v648, %v600
          %s656 = sld [smem:[#allocation7 + $0x18]]
          %v657 = vstv %s656
          %v658 = vmul.f32 %v657, %v649
          %v659 = vadd.f32 %v655, %v658
          %v660 = vmul.f32 %v649, %v601
          %v661 = vmul.f32 %v654, %v600
          %s662 = sld [smem:[#allocation2 + $0x1a]]
          %v663 = vstv %s662
          %v664 = vmul.f32 %v663, %v660
          %v665 = vadd.f32 %v661, %v664
          %v666 = vmul.f32 %v659, %v600
          %s667 = sld [smem:[#allocation7 + $0x17]]
          %v668 = vstv %s667
          %v669 = vmul.f32 %v668, %v660
          %v670 = vadd.f32 %v666, %v669
          %v671 = vmul.f32 %v660, %v601
          %v672 = vmul.f32 %v665, %v600
          %s673 = sld [smem:[#allocation2 + $0x19]]
          %v674 = vstv %s673
          %v675 = vmul.f32 %v674, %v671
          %v676 = vadd.f32 %v672, %v675
          %v677 = vmul.f32 %v670, %v600
          %s678 = sld [smem:[#allocation7 + $0x16]]
          %v679 = vstv %s678
          %v680 = vmul.f32 %v679, %v671
          %v681 = vadd.f32 %v677, %v680
          %v682 = vmul.f32 %v671, %v601
          %v683 = vmul.f32 %v676, %v600
          %s684 = sld [smem:[#allocation2 + $0x18]]
          %v685 = vstv %s684
          %v686 = vmul.f32 %v685, %v682
          %v687 = vadd.f32 %v683, %v686
          %v688 = vmul.f32 %v681, %v600
          %s689 = sld [smem:[#allocation7 + $0x15]]
          %v690 = vstv %s689
          %v691 = vmul.f32 %v690, %v682
          %v692 = vadd.f32 %v688, %v691
          %v693 = vmul.f32 %v682, %v601
          %v694 = vmul.f32 %v687, %v600
          %s695 = sld [smem:[#allocation2 + $0x17]]
          %v696 = vstv %s695
          %v697 = vmul.f32 %v696, %v693
          %v698 = vadd.f32 %v694, %v697
          %v699 = vmul.f32 %v692, %v600
          %s700 = sld [smem:[#allocation7 + $0x14]]
          %v701 = vstv %s700
          %v702 = vmul.f32 %v701, %v693
          %v703 = vadd.f32 %v699, %v702
          %v704 = vmul.f32 %v693, %v601
          %v705 = vmul.f32 %v698, %v600
          %s706 = sld [smem:[#allocation2 + $0x16]]
          %v707 = vstv %s706
          %v708 = vmul.f32 %v707, %v704
          %v709 = vadd.f32 %v705, %v708
          %v710 = vlog2.pop %v703
          %v711 = vmul.f32 %v710, 0.6931472
          %v712 = vsub.f32 %v366, -7.2
          %v713 = vmul.f32 %v712, 0.06944445
          %v714 = vmax.f32 %v713, 0.0
          %v715 = vmin.f32 %v714, 1.0
          %v716 = vsub.f32 1.0, %v715
          %s717 = sld [smem:[#allocation2 + $0x2b]]
          %v718 = vstv %s717
          %v719 = vmul.f32 %v718, %v715
          %s720 = sld [smem:[#allocation2 + $0x2a]]
          %v721 = vstv %s720
          %v722 = vmul.f32 %v721, %v716
          %v723 = vadd.f32 %v719, %v722
          %s724 = sld [smem:[#allocation7 + $0x27]]
          %v725 = vstv %s724
          %v726 = vmul.f32 %v725, %v715
          %s727 = sld [smem:[#allocation7 + $0x26]]
          %v728 = vstv %s727
          %v729 = vmul.f32 %v728, %v716
          %v730 = vadd.f32 %v726, %v729
          %v731 = vmul.f32 %v716, %v716
          %v732 = vmul.f32 %v723, %v715
          %s733 = sld [smem:[#allocation2 + $0x29]]
          %v734 = vstv %s733
          %v735 = vmul.f32 %v734, %v731
          %v736 = vadd.f32 %v732, %v735
          %v737 = vmul.f32 %v730, %v715
          %s738 = sld [smem:[#allocation7 + $0x25]]
          %v739 = vstv %s738
          %v740 = vmul.f32 %v739, %v731
          %v741 = vadd.f32 %v737, %v740
          %v742 = vmul.f32 %v731, %v716
          %v743 = vmul.f32 %v736, %v715
          %s744 = sld [smem:[#allocation2 + $0x28]]
          %v745 = vstv %s744
          %v746 = vmul.f32 %v745, %v742
          %v747 = vadd.f32 %v743, %v746
          %v748 = vmul.f32 %v741, %v715
          %s749 = sld [smem:[#allocation7 + $0x24]]
          %v750 = vstv %s749
          %v751 = vmul.f32 %v750, %v742
          %v752 = vadd.f32 %v748, %v751
          %v753 = vmul.f32 %v742, %v716
          %v754 = vmul.f32 %v747, %v715
          %s755 = sld [smem:[#allocation2 + $0x27]]
          %v756 = vstv %s755
          %v757 = vmul.f32 %v756, %v753
          %v758 = vadd.f32 %v754, %v757
          %v759 = vmul.f32 %v752, %v715
          %s760 = sld [smem:[#allocation7 + $0x23]]
          %v761 = vstv %s760
          %v762 = vmul.f32 %v761, %v753
          %v763 = vadd.f32 %v759, %v762
          %v764 = vmul.f32 %v753, %v716
          %v765 = vmul.f32 %v758, %v715
          %s766 = sld [smem:[#allocation2 + $0x26]]
          %v767 = vstv %s766
          %v768 = vmul.f32 %v767, %v764
          %v769 = vadd.f32 %v765, %v768
          %v770 = vmul.f32 %v763, %v715
          %s771 = sld [smem:[#allocation7 + $0x22]]
          %v772 = vstv %s771
          %v773 = vmul.f32 %v772, %v764
          %v774 = vadd.f32 %v770, %v773
          %v775 = vmul.f32 %v764, %v716
          %v776 = vmul.f32 %v769, %v715
          %s777 = sld [smem:[#allocation2 + $0x25]]
          %v778 = vstv %s777
          %v779 = vmul.f32 %v778, %v775
          %v780 = vadd.f32 %v776, %v779
          %v781 = vmul.f32 %v774, %v715
          %s782 = sld [smem:[#allocation7 + $0x21]]
          %v783 = vstv %s782
          %v784 = vmul.f32 %v783, %v775
          %v785 = vadd.f32 %v781, %v784
          %v786 = vmul.f32 %v775, %v716
          %v787 = vmul.f32 %v780, %v715
          %s788 = sld [smem:[#allocation2 + $0x24]]
          %v789 = vstv %s788
          %v790 = vmul.f32 %v789, %v786
          %v791 = vadd.f32 %v787, %v790
          %v792 = vmul.f32 %v785, %v715
          %s793 = sld [smem:[#allocation7 + $0x20]]
          %v794 = vstv %s793
          %v795 = vmul.f32 %v794, %v786
          %v796 = vadd.f32 %v792, %v795
          %v797 = vmul.f32 %v786, %v716
          %v798 = vmul.f32 %v791, %v715
          %s799 = sld [smem:[#allocation2 + $0x23]]
          %v800 = vstv %s799
          %v801 = vmul.f32 %v800, %v797
          %v802 = vadd.f32 %v798, %v801
          %v803 = vmul.f32 %v796, %v715
          %s804 = sld [smem:[#allocation7 + $0x1f]]
          %v805 = vstv %s804
          %v806 = vmul.f32 %v805, %v797
          %v807 = vadd.f32 %v803, %v806
          %v808 = vmul.f32 %v797, %v716
          %v809 = vmul.f32 %v802, %v715
          %s810 = sld [smem:[#allocation2 + $0x22]]
          %v811 = vstv %s810
          %v812 = vmul.f32 %v811, %v808
          %v813 = vadd.f32 %v809, %v812
          %v814 = vmul.f32 %v807, %v715
          %s815 = sld [smem:[#allocation7 + $0x1e]]
          %v816 = vstv %s815
          %v817 = vmul.f32 %v816, %v808
          %v818 = vadd.f32 %v814, %v817
          %v819 = vmul.f32 %v808, %v716
          %v820 = vmul.f32 %v813, %v715
          %s821 = sld [smem:[#allocation2 + $0x21]]
          %v822 = vstv %s821
          %v823 = vmul.f32 %v822, %v819
          %v824 = vadd.f32 %v820, %v823
          %v825 = vlog2.pop %v818
          %v826 = vmul.f32 %v825, 0.6931472
          %s827 = scalar_lea.vmem %s343, %s361 [#allocation12]
          %828 = vst [vmem:[%s827] sm:$0xff] %v481
          %829 = vst [vmem:[%s827 + $0x10] sm:$0xff] %v596
          %830 = vst [vmem:[%s827 + $0x20] sm:$0xff] %v711
          %831 = vst [vmem:[%s827 + $0x30] sm:$0xff] %v826
          %v832 = vsub.f32 %v479, -7.2
          %v833 = vmul.f32 %v832, 0.06944445
          %v834 = vmax.f32 %v833, 0.0
          %v835 = vmin.f32 %v834, 1.0
          %v836 = vsub.f32 1.0, %v835
          %s837 = sld [smem:[#allocation8 + $0xc]]
          %v838 = vstv %s837
          %v839 = vmul.f32 %v838, %v835
          %s840 = sld [smem:[#allocation8 + $0xb]]
          %v841 = vstv %s840
          %v842 = vmul.f32 %v841, %v836
          %v843 = vadd.f32 %v839, %v842
          %s844 = sld [smem:[#allocation8 + $0x19]]
          %v845 = vstv %s844
          %v846 = vmul.f32 %v845, %v835
          %s847 = sld [smem:[#allocation8 + $0x18]]
          %v848 = vstv %s847
          %v849 = vmul.f32 %v848, %v836
          %v850 = vadd.f32 %v846, %v849
          %s851 = sld [smem:[#allocation8 + $0x26]]
          %v852 = vstv %s851
          %v853 = vmul.f32 %v852, %v835
          %s854 = sld [smem:[#allocation8 + $0x25]]
          %v855 = vstv %s854
          %v856 = vmul.f32 %v855, %v836
          %v857 = vadd.f32 %v853, %v856
          %v858 = vmul.f32 %v836, %v836
          %v859 = vmul.f32 %v843, %v835
          %s860 = sld [smem:[#allocation8 + $0xa]]
          %v861 = vstv %s860
          %v862 = vmul.f32 %v861, %v858
          %v863 = vadd.f32 %v859, %v862
          %v864 = vmul.f32 %v850, %v835
          %s865 = sld [smem:[#allocation8 + $0x17]]
          %v866 = vstv %s865
          %v867 = vmul.f32 %v866, %v858
          %v868 = vadd.f32 %v864, %v867
          %v869 = vmul.f32 %v857, %v835
          %s870 = sld [smem:[#allocation8 + $0x24]]
          %v871 = vstv %s870
          %v872 = vmul.f32 %v871, %v858
          %v873 = vadd.f32 %v869, %v872
          %v874 = vmul.f32 %v858, %v836
          %v875 = vmul.f32 %v863, %v835
          %s876 = sld [smem:[#allocation8 + $0x9]]
          %v877 = vstv %s876
          %v878 = vmul.f32 %v877, %v874
          %v879 = vadd.f32 %v875, %v878
          %v880 = vmul.f32 %v868, %v835
          %s881 = sld [smem:[#allocation8 + $0x16]]
          %v882 = vstv %s881
          %v883 = vmul.f32 %v882, %v874
          %v884 = vadd.f32 %v880, %v883
          %v885 = vmul.f32 %v873, %v835
          %s886 = sld [smem:[#allocation8 + $0x23]]
          %v887 = vstv %s886
          %v888 = vmul.f32 %v887, %v874
          %v889 = vadd.f32 %v885, %v888
          %v890 = vmul.f32 %v874, %v836
          %v891 = vmul.f32 %v879, %v835
          %s892 = sld [smem:[#allocation8 + $0x8]]
          %v893 = vstv %s892
          %v894 = vmul.f32 %v893, %v890
          %v895 = vadd.f32 %v891, %v894
          %v896 = vmul.f32 %v884, %v835
          %s897 = sld [smem:[#allocation8 + $0x15]]
          %v898 = vstv %s897
          %v899 = vmul.f32 %v898, %v890
          %v900 = vadd.f32 %v896, %v899
          %v901 = vmul.f32 %v889, %v835
          %s902 = sld [smem:[#allocation8 + $0x22]]
          %v903 = vstv %s902
          %v904 = vmul.f32 %v903, %v890
          %v905 = vadd.f32 %v901, %v904
          %v906 = vmul.f32 %v890, %v836
          %v907 = vmul.f32 %v895, %v835
          %s908 = sld [smem:[#allocation8 + $0x7]]
          %v909 = vstv %s908
          %v910 = vmul.f32 %v909, %v906
          %v911 = vadd.f32 %v907, %v910
          %v912 = vmul.f32 %v900, %v835
          %s913 = sld [smem:[#allocation8 + $0x14]]
          %v914 = vstv %s913
          %v915 = vmul.f32 %v914, %v906
          %v916 = vadd.f32 %v912, %v915
          %v917 = vmul.f32 %v905, %v835
          %s918 = sld [smem:[#allocation8 + $0x21]]
          %v919 = vstv %s918
          %v920 = vmul.f32 %v919, %v906
          %v921 = vadd.f32 %v917, %v920
          %v922 = vmul.f32 %v906, %v836
          %v923 = vmul.f32 %v911, %v835
          %s924 = sld [smem:[#allocation8 + $0x6]]
          %v925 = vstv %s924
          %v926 = vmul.f32 %v925, %v922
          %v927 = vadd.f32 %v923, %v926
          %v928 = vmul.f32 %v916, %v835
          %s929 = sld [smem:[#allocation8 + $0x13]]
          %v930 = vstv %s929
          %v931 = vmul.f32 %v930, %v922
          %v932 = vadd.f32 %v928, %v931
          %v933 = vmul.f32 %v921, %v835
          %s934 = sld [smem:[#allocation8 + $0x20]]
          %v935 = vstv %s934
          %v936 = vmul.f32 %v935, %v922
          %v937 = vadd.f32 %v933, %v936
          %v938 = vmul.f32 %v922, %v836
          %v939 = vmul.f32 %v927, %v835
          %s940 = sld [smem:[#allocation8 + $0x5]]
          %v941 = vstv %s940
          %v942 = vmul.f32 %v941, %v938
          %v943 = vadd.f32 %v939, %v942
          %v944 = vmul.f32 %v932, %v835
          %s945 = sld [smem:[#allocation8 + $0x12]]
          %v946 = vstv %s945
          %v947 = vmul.f32 %v946, %v938
          %v948 = vadd.f32 %v944, %v947
          %v949 = vmul.f32 %v937, %v835
          %s950 = sld [smem:[#allocation8 + $0x1f]]
          %v951 = vstv %s950
          %v952 = vmul.f32 %v951, %v938
          %v953 = vadd.f32 %v949, %v952
          %v954 = vmul.f32 %v938, %v836
          %v955 = vmul.f32 %v943, %v835
          %s956 = sld [smem:[#allocation8 + $0x4]]
          %v957 = vstv %s956
          %v958 = vmul.f32 %v957, %v954
          %v959 = vadd.f32 %v955, %v958
          %v960 = vmul.f32 %v948, %v835
          %s961 = sld [smem:[#allocation8 + $0x11]]
          %v962 = vstv %s961
          %v963 = vmul.f32 %v962, %v954
          %v964 = vadd.f32 %v960, %v963
          %v965 = vmul.f32 %v953, %v835
          %s966 = sld [smem:[#allocation8 + $0x1e]]
          %v967 = vstv %s966
          %v968 = vmul.f32 %v967, %v954
          %v969 = vadd.f32 %v965, %v968
          %v970 = vmul.f32 %v954, %v836
          %v971 = vmul.f32 %v959, %v835
          %s972 = sld [smem:[#allocation8 + $0x3]]
          %v973 = vstv %s972
          %v974 = vmul.f32 %v973, %v970
          %v975 = vadd.f32 %v971, %v974
          %v976 = vmul.f32 %v964, %v835
          %s977 = sld [smem:[#allocation8 + $0x10]]
          %v978 = vstv %s977
          %v979 = vmul.f32 %v978, %v970
          %v980 = vadd.f32 %v976, %v979
          %v981 = vmul.f32 %v969, %v835
          %s982 = sld [smem:[#allocation8 + $0x1d]]
          %v983 = vstv %s982
          %v984 = vmul.f32 %v983, %v970
          %v985 = vadd.f32 %v981, %v984
          %v986 = vmul.f32 %v970, %v836
          %v987 = vmul.f32 %v975, %v835
          %s988 = sld [smem:[#allocation8 + $0x2]]
          %v989 = vstv %s988
          %v990 = vmul.f32 %v989, %v986
          %v991 = vadd.f32 %v987, %v990
          %v992 = vmul.f32 %v980, %v835
          %s993 = sld [smem:[#allocation8 + $0xf]]
          %v994 = vstv %s993
          %v995 = vmul.f32 %v994, %v986
          %v996 = vadd.f32 %v992, %v995
          %v997 = vmul.f32 %v985, %v835
          %s998 = sld [smem:[#allocation8 + $0x1c]]
          %v999 = vstv %s998
          %v1000 = vmul.f32 %v999, %v986
          %v1001 = vadd.f32 %v997, %v1000
          %v1002 = vmul.f32 %v986, %v836
          %v1003 = vmul.f32 %v991, %v835
          %s1004 = sld [smem:[#allocation8 + $0x1]]
          %v1005 = vstv %s1004
          %v1006 = vmul.f32 %v1005, %v1002
          %v1007 = vadd.f32 %v1003, %v1006
          %v1008 = vmul.f32 %v996, %v835
          %s1009 = sld [smem:[#allocation8 + $0xe]]
          %v1010 = vstv %s1009
          %v1011 = vmul.f32 %v1010, %v1002
          %v1012 = vadd.f32 %v1008, %v1011
          %v1013 = vmul.f32 %v1001, %v835
          %s1014 = sld [smem:[#allocation8 + $0x1b]]
          %v1015 = vstv %s1014
          %v1016 = vmul.f32 %v1015, %v1002
          %v1017 = vadd.f32 %v1013, %v1016
          %v1018 = vmul.f32 %v1002, %v836
          %v1019 = vmul.f32 %v1007, %v835
          %s1020 = sld [smem:[#allocation8]]
          %v1021 = vstv %s1020
          %v1022 = vmul.f32 %v1021, %v1018
          %v1023 = vadd.f32 %v1019, %v1022
          %v1024 = vmul.f32 %v1012, %v835
          %s1025 = sld [smem:[#allocation8 + $0xd]]
          %v1026 = vstv %s1025
          %v1027 = vmul.f32 %v1026, %v1018
          %v1028 = vadd.f32 %v1024, %v1027
          %v1029 = vmul.f32 %v1017, %v835
          %s1030 = sld [smem:[#allocation8 + $0x1a]]
          %v1031 = vstv %s1030
          %v1032 = vmul.f32 %v1031, %v1018
          %v1033 = vadd.f32 %v1029, %v1032
          %v1034 = vsub.f32 %v594, -7.2
          %v1035 = vmul.f32 %v1034, 0.06944445
          %v1036 = vmax.f32 %v1035, 0.0
          %v1037 = vmin.f32 %v1036, 1.0
          %v1038 = vsub.f32 1.0, %v1037
          %s1039 = sld [smem:[#allocation8 + $0x33]]
          %v1040 = vstv %s1039
          %v1041 = vmul.f32 %v1040, %v1037
          %s1042 = sld [smem:[#allocation8 + $0x32]]
          %v1043 = vstv %s1042
          %v1044 = vmul.f32 %v1043, %v1038
          %v1045 = vadd.f32 %v1041, %v1044
          %s1046 = sld [smem:[#allocation8 + $0x40]]
          %v1047 = vstv %s1046
          %v1048 = vmul.f32 %v1047, %v1037
          %s1049 = sld [smem:[#allocation8 + $0x3f]]
          %v1050 = vstv %s1049
          %v1051 = vmul.f32 %v1050, %v1038
          %v1052 = vadd.f32 %v1048, %v1051
          %v1053 = vmul.f32 %v1038, %v1038
          %v1054 = vmul.f32 %v1045, %v1037
          %s1055 = sld [smem:[#allocation8 + $0x31]]
          %v1056 = vstv %s1055
          %v1057 = vmul.f32 %v1056, %v1053
          %v1058 = vadd.f32 %v1054, %v1057
          %v1059 = vmul.f32 %v1052, %v1037
          %s1060 = sld [smem:[#allocation8 + $0x3e]]
          %v1061 = vstv %s1060
          %v1062 = vmul.f32 %v1061, %v1053
          %v1063 = vadd.f32 %v1059, %v1062
          %v1064 = vmul.f32 %v1053, %v1038
          %v1065 = vmul.f32 %v1058, %v1037
          %s1066 = sld [smem:[#allocation8 + $0x30]]
          %v1067 = vstv %s1066
          %v1068 = vmul.f32 %v1067, %v1064
          %v1069 = vadd.f32 %v1065, %v1068
          %v1070 = vmul.f32 %v1063, %v1037
          %s1071 = sld [smem:[#allocation8 + $0x3d]]
          %v1072 = vstv %s1071
          %v1073 = vmul.f32 %v1072, %v1064
          %v1074 = vadd.f32 %v1070, %v1073
          %v1075 = vmul.f32 %v1064, %v1038
          %v1076 = vmul.f32 %v1069, %v1037
          %s1077 = sld [smem:[#allocation8 + $0x2f]]
          %v1078 = vstv %s1077
          %v1079 = vmul.f32 %v1078, %v1075
          %v1080 = vadd.f32 %v1076, %v1079
          %v1081 = vmul.f32 %v1074, %v1037
          %s1082 = sld [smem:[#allocation8 + $0x3c]]
          %v1083 = vstv %s1082
          %v1084 = vmul.f32 %v1083, %v1075
          %v1085 = vadd.f32 %v1081, %v1084
          %v1086 = vmul.f32 %v1075, %v1038
          %v1087 = vmul.f32 %v1080, %v1037
          %s1088 = sld [smem:[#allocation8 + $0x2e]]
          %v1089 = vstv %s1088
          %v1090 = vmul.f32 %v1089, %v1086
          %v1091 = vadd.f32 %v1087, %v1090
          %v1092 = vmul.f32 %v1085, %v1037
          %s1093 = sld [smem:[#allocation8 + $0x3b]]
          %v1094 = vstv %s1093
          %v1095 = vmul.f32 %v1094, %v1086
          %v1096 = vadd.f32 %v1092, %v1095
          %v1097 = vmul.f32 %v1086, %v1038
          %v1098 = vmul.f32 %v1091, %v1037
          %s1099 = sld [smem:[#allocation8 + $0x2d]]
          %v1100 = vstv %s1099
          %v1101 = vmul.f32 %v1100, %v1097
          %v1102 = vadd.f32 %v1098, %v1101
          %v1103 = vmul.f32 %v1096, %v1037
          %s1104 = sld [smem:[#allocation8 + $0x3a]]
          %v1105 = vstv %s1104
          %v1106 = vmul.f32 %v1105, %v1097
          %v1107 = vadd.f32 %v1103, %v1106
          %v1108 = vmul.f32 %v1097, %v1038
          %v1109 = vmul.f32 %v1102, %v1037
          %s1110 = sld [smem:[#allocation8 + $0x2c]]
          %v1111 = vstv %s1110
          %v1112 = vmul.f32 %v1111, %v1108
          %v1113 = vadd.f32 %v1109, %v1112
          %v1114 = vmul.f32 %v1107, %v1037
          %s1115 = sld [smem:[#allocation8 + $0x39]]
          %v1116 = vstv %s1115
          %v1117 = vmul.f32 %v1116, %v1108
          %v1118 = vadd.f32 %v1114, %v1117
          %v1119 = vmul.f32 %v1108, %v1038
          %v1120 = vmul.f32 %v1113, %v1037
          %s1121 = sld [smem:[#allocation8 + $0x2b]]
          %v1122 = vstv %s1121
          %v1123 = vmul.f32 %v1122, %v1119
          %v1124 = vadd.f32 %v1120, %v1123
          %v1125 = vmul.f32 %v1118, %v1037
          %s1126 = sld [smem:[#allocation8 + $0x38]]
          %v1127 = vstv %s1126
          %v1128 = vmul.f32 %v1127, %v1119
          %v1129 = vadd.f32 %v1125, %v1128
          %v1130 = vmul.f32 %v1119, %v1038
          %v1131 = vmul.f32 %v1124, %v1037
          %s1132 = sld [smem:[#allocation8 + $0x2a]]
          %v1133 = vstv %s1132
          %v1134 = vmul.f32 %v1133, %v1130
          %v1135 = vadd.f32 %v1131, %v1134
          %v1136 = vmul.f32 %v1129, %v1037
          %s1137 = sld [smem:[#allocation8 + $0x37]]
          %v1138 = vstv %s1137
          %v1139 = vmul.f32 %v1138, %v1130
          %v1140 = vadd.f32 %v1136, %v1139
          %v1141 = vmul.f32 %v1130, %v1038
          %v1142 = vmul.f32 %v1135, %v1037
          %s1143 = sld [smem:[#allocation8 + $0x29]]
          %v1144 = vstv %s1143
          %v1145 = vmul.f32 %v1144, %v1141
          %v1146 = vadd.f32 %v1142, %v1145
          %v1147 = vmul.f32 %v1140, %v1037
          %s1148 = sld [smem:[#allocation8 + $0x36]]
          %v1149 = vstv %s1148
          %v1150 = vmul.f32 %v1149, %v1141
          %v1151 = vadd.f32 %v1147, %v1150
          %v1152 = vmul.f32 %v1141, %v1038
          %v1153 = vmul.f32 %v1146, %v1037
          %s1154 = sld [smem:[#allocation8 + $0x28]]
          %v1155 = vstv %s1154
          %v1156 = vmul.f32 %v1155, %v1152
          %v1157 = vadd.f32 %v1153, %v1156
          %v1158 = vmul.f32 %v1151, %v1037
          %s1159 = sld [smem:[#allocation8 + $0x35]]
          %v1160 = vstv %s1159
          %v1161 = vmul.f32 %v1160, %v1152
          %v1162 = vadd.f32 %v1158, %v1161
          %v1163 = vmul.f32 %v1152, %v1038
          %v1164 = vmul.f32 %v1157, %v1037
          %s1165 = sld [smem:[#allocation8 + $0x27]]
          %v1166 = vstv %s1165
          %v1167 = vmul.f32 %v1166, %v1163
          %v1168 = vadd.f32 %v1164, %v1167
          %v1169 = vmul.f32 %v1162, %v1037
          %s1170 = sld [smem:[#allocation8 + $0x34]]
          %v1171 = vstv %s1170
          %v1172 = vmul.f32 %v1171, %v1163
          %v1173 = vadd.f32 %v1169, %v1172
          %v1174 = vsub.f32 %v709, -7.2
          %v1175 = vmul.f32 %v1174, 0.06944445
          %v1176 = vmax.f32 %v1175, 0.0
          %v1177 = vmin.f32 %v1176, 1.0
          %v1178 = vsub.f32 1.0, %v1177
          %s1179 = sld [smem:[#allocation8 + $0x4d]]
          %v1180 = vstv %s1179
          %v1181 = vmul.f32 %v1180, %v1177
          %s1182 = sld [smem:[#allocation8 + $0x4c]]
          %v1183 = vstv %s1182
          %v1184 = vmul.f32 %v1183, %v1178
          %v1185 = vadd.f32 %v1181, %v1184
          %v1186 = vmul.f32 %v1178, %v1178
          %v1187 = vmul.f32 %v1185, %v1177
          %s1188 = sld [smem:[#allocation8 + $0x4b]]
          %v1189 = vstv %s1188
          %v1190 = vmul.f32 %v1189, %v1186
          %v1191 = vadd.f32 %v1187, %v1190
          %v1192 = vmul.f32 %v1186, %v1178
          %v1193 = vmul.f32 %v1191, %v1177
          %s1194 = sld [smem:[#allocation8 + $0x4a]]
          %v1195 = vstv %s1194
          %v1196 = vmul.f32 %v1195, %v1192
          %v1197 = vadd.f32 %v1193, %v1196
          %v1198 = vmul.f32 %v1192, %v1178
          %v1199 = vmul.f32 %v1197, %v1177
          %s1200 = sld [smem:[#allocation8 + $0x49]]
          %v1201 = vstv %s1200
          %v1202 = vmul.f32 %v1201, %v1198
          %v1203 = vadd.f32 %v1199, %v1202
          %v1204 = vmul.f32 %v1198, %v1178
          %v1205 = vmul.f32 %v1203, %v1177
          %s1206 = sld [smem:[#allocation8 + $0x48]]
          %v1207 = vstv %s1206
          %v1208 = vmul.f32 %v1207, %v1204
          %v1209 = vadd.f32 %v1205, %v1208
          %v1210 = vmul.f32 %v1204, %v1178
          %v1211 = vmul.f32 %v1209, %v1177
          %s1212 = sld [smem:[#allocation8 + $0x47]]
          %v1213 = vstv %s1212
          %v1214 = vmul.f32 %v1213, %v1210
          %v1215 = vadd.f32 %v1211, %v1214
          %v1216 = vmul.f32 %v1210, %v1178
          %v1217 = vmul.f32 %v1215, %v1177
          %s1218 = sld [smem:[#allocation8 + $0x46]]
          %v1219 = vstv %s1218
          %v1220 = vmul.f32 %v1219, %v1216
          %v1221 = vadd.f32 %v1217, %v1220
          %v1222 = vmul.f32 %v1216, %v1178
          %v1223 = vmul.f32 %v1221, %v1177
          %s1224 = sld [smem:[#allocation8 + $0x45]]
          %v1225 = vstv %s1224
          %v1226 = vmul.f32 %v1225, %v1222
          %v1227 = vadd.f32 %v1223, %v1226
          %v1228 = vmul.f32 %v1222, %v1178
          %v1229 = vmul.f32 %v1227, %v1177
          %s1230 = sld [smem:[#allocation8 + $0x44]]
          %v1231 = vstv %s1230
          %v1232 = vmul.f32 %v1231, %v1228
          %v1233 = vadd.f32 %v1229, %v1232
          %v1234 = vmul.f32 %v1228, %v1178
          %v1235 = vmul.f32 %v1233, %v1177
          %s1236 = sld [smem:[#allocation8 + $0x43]]
          %v1237 = vstv %s1236
          %v1238 = vmul.f32 %v1237, %v1234
          %v1239 = vadd.f32 %v1235, %v1238
          %v1240 = vmul.f32 %v1234, %v1178
          %v1241 = vmul.f32 %v1239, %v1177
          %s1242 = sld [smem:[#allocation8 + $0x42]]
          %v1243 = vstv %s1242
          %v1244 = vmul.f32 %v1243, %v1240
          %v1245 = vadd.f32 %v1241, %v1244
          %v1246 = vmul.f32 %v1240, %v1178
          %v1247 = vmul.f32 %v1245, %v1177
          %s1248 = sld [smem:[#allocation8 + $0x41]]
          %v1249 = vstv %s1248
          %v1250 = vmul.f32 %v1249, %v1246
          %v1251 = vadd.f32 %v1247, %v1250
          %v1252 = vmul.f32 %v1023, %v479
          %v1253 = vadd.f32 %v594, %v1252
          %v1254 = vmul.f32 %v1028, %v479
          %v1255 = vadd.f32 %v709, %v1254
          %v1256 = vmul.f32 %v1168, %v594
          %v1257 = vadd.f32 %v1255, %v1256
          %v1258 = vmul.f32 %v1033, %v479
          %v1259 = vadd.f32 %v824, %v1258
          %v1260 = vmul.f32 %v1173, %v594
          %v1261 = vadd.f32 %v1259, %v1260
          %v1262 = vmul.f32 %v1251, %v709
          %v1263 = vadd.f32 %v1261, %v1262
          %v1264 = vsub.f32 %v1263, -7.2
          %v1265 = vmul.f32 %v1264, 0.06944445
          %v1266 = vmax.f32 %v1265, 0.0
          %v1267 = vmin.f32 %v1266, 1.0
          %v1268 = vsub.f32 1.0, %v1267
          %s1269 = sld [smem:[#allocation8 + $0x5a]]
          %v1270 = vstv %s1269
          %v1271 = vmul.f32 %v1270, %v1267
          %s1272 = sld [smem:[#allocation8 + $0x59]]
          %v1273 = vstv %s1272
          %v1274 = vmul.f32 %v1273, %v1268
          %v1275 = vadd.f32 %v1271, %v1274
          %s1276 = sld [smem:[#allocation8 + $0x67]]
          %v1277 = vstv %s1276
          %v1278 = vmul.f32 %v1277, %v1267
          %s1279 = sld [smem:[#allocation8 + $0x66]]
          %v1280 = vstv %s1279
          %v1281 = vmul.f32 %v1280, %v1268
          %v1282 = vadd.f32 %v1278, %v1281
          %s1283 = sld [smem:[#allocation8 + $0x74]]
          %v1284 = vstv %s1283
          %v1285 = vmul.f32 %v1284, %v1267
          %s1286 = sld [smem:[#allocation8 + $0x73]]
          %v1287 = vstv %s1286
          %v1288 = vmul.f32 %v1287, %v1268
          %v1289 = vadd.f32 %v1285, %v1288
          %v1290 = vmul.f32 %v1268, %v1268
          %v1291 = vmul.f32 %v1275, %v1267
          %s1292 = sld [smem:[#allocation8 + $0x58]]
          %v1293 = vstv %s1292
          %v1294 = vmul.f32 %v1293, %v1290
          %v1295 = vadd.f32 %v1291, %v1294
          %v1296 = vmul.f32 %v1282, %v1267
          %s1297 = sld [smem:[#allocation8 + $0x65]]
          %v1298 = vstv %s1297
          %v1299 = vmul.f32 %v1298, %v1290
          %v1300 = vadd.f32 %v1296, %v1299
          %v1301 = vmul.f32 %v1289, %v1267
          %s1302 = sld [smem:[#allocation8 + $0x72]]
          %v1303 = vstv %s1302
          %v1304 = vmul.f32 %v1303, %v1290
          %v1305 = vadd.f32 %v1301, %v1304
          %v1306 = vmul.f32 %v1290, %v1268
          %v1307 = vmul.f32 %v1295, %v1267
          %s1308 = sld [smem:[#allocation8 + $0x57]]
          %v1309 = vstv %s1308
          %v1310 = vmul.f32 %v1309, %v1306
          %v1311 = vadd.f32 %v1307, %v1310
          %v1312 = vmul.f32 %v1300, %v1267
          %s1313 = sld [smem:[#allocation8 + $0x64]]
          %v1314 = vstv %s1313
          %v1315 = vmul.f32 %v1314, %v1306
          %v1316 = vadd.f32 %v1312, %v1315
          %v1317 = vmul.f32 %v1305, %v1267
          %s1318 = sld [smem:[#allocation8 + $0x71]]
          %v1319 = vstv %s1318
          %v1320 = vmul.f32 %v1319, %v1306
          %v1321 = vadd.f32 %v1317, %v1320
          %v1322 = vmul.f32 %v1306, %v1268
          %v1323 = vmul.f32 %v1311, %v1267
          %s1324 = sld [smem:[#allocation8 + $0x56]]
          %v1325 = vstv %s1324
          %v1326 = vmul.f32 %v1325, %v1322
          %v1327 = vadd.f32 %v1323, %v1326
          %v1328 = vmul.f32 %v1316, %v1267
          %s1329 = sld [smem:[#allocation8 + $0x63]]
          %v1330 = vstv %s1329
          %v1331 = vmul.f32 %v1330, %v1322
          %v1332 = vadd.f32 %v1328, %v1331
          %v1333 = vmul.f32 %v1321, %v1267
          %s1334 = sld [smem:[#allocation8 + $0x70]]
          %v1335 = vstv %s1334
          %v1336 = vmul.f32 %v1335, %v1322
          %v1337 = vadd.f32 %v1333, %v1336
          %v1338 = vmul.f32 %v1322, %v1268
          %v1339 = vmul.f32 %v1327, %v1267
          %s1340 = sld [smem:[#allocation8 + $0x55]]
          %v1341 = vstv %s1340
          %v1342 = vmul.f32 %v1341, %v1338
          %v1343 = vadd.f32 %v1339, %v1342
          %v1344 = vmul.f32 %v1332, %v1267
          %s1345 = sld [smem:[#allocation8 + $0x62]]
          %v1346 = vstv %s1345
          %v1347 = vmul.f32 %v1346, %v1338
          %v1348 = vadd.f32 %v1344, %v1347
          %v1349 = vmul.f32 %v1337, %v1267
          %s1350 = sld [smem:[#allocation8 + $0x6f]]
          %v1351 = vstv %s1350
          %v1352 = vmul.f32 %v1351, %v1338
          %v1353 = vadd.f32 %v1349, %v1352
          %v1354 = vmul.f32 %v1338, %v1268
          %v1355 = vmul.f32 %v1343, %v1267
          %s1356 = sld [smem:[#allocation8 + $0x54]]
          %v1357 = vstv %s1356
          %v1358 = vmul.f32 %v1357, %v1354
          %v1359 = vadd.f32 %v1355, %v1358
          %v1360 = vmul.f32 %v1348, %v1267
          %s1361 = sld [smem:[#allocation8 + $0x61]]
          %v1362 = vstv %s1361
          %v1363 = vmul.f32 %v1362, %v1354
          %v1364 = vadd.f32 %v1360, %v1363
          %v1365 = vmul.f32 %v1353, %v1267
          %s1366 = sld [smem:[#allocation8 + $0x6e]]
          %v1367 = vstv %s1366
          %v1368 = vmul.f32 %v1367, %v1354
          %v1369 = vadd.f32 %v1365, %v1368
          %v1370 = vmul.f32 %v1354, %v1268
          %v1371 = vmul.f32 %v1359, %v1267
          %s1372 = sld [smem:[#allocation8 + $0x53]]
          %v1373 = vstv %s1372
          %v1374 = vmul.f32 %v1373, %v1370
          %v1375 = vadd.f32 %v1371, %v1374
          %v1376 = vmul.f32 %v1364, %v1267
          %s1377 = sld [smem:[#allocation8 + $0x60]]
          %v1378 = vstv %s1377
          %v1379 = vmul.f32 %v1378, %v1370
          %v1380 = vadd.f32 %v1376, %v1379
          %v1381 = vmul.f32 %v1369, %v1267
          %s1382 = sld [smem:[#allocation8 + $0x6d]]
          %v1383 = vstv %s1382
          %v1384 = vmul.f32 %v1383, %v1370
          %v1385 = vadd.f32 %v1381, %v1384
          %v1386 = vmul.f32 %v1370, %v1268
          %v1387 = vmul.f32 %v1375, %v1267
          %s1388 = sld [smem:[#allocation8 + $0x52]]
          %v1389 = vstv %s1388
          %v1390 = vmul.f32 %v1389, %v1386
          %v1391 = vadd.f32 %v1387, %v1390
          %v1392 = vmul.f32 %v1380, %v1267
          %s1393 = sld [smem:[#allocation8 + $0x5f]]
          %v1394 = vstv %s1393
          %v1395 = vmul.f32 %v1394, %v1386
          %v1396 = vadd.f32 %v1392, %v1395
          %v1397 = vmul.f32 %v1385, %v1267
          %s1398 = sld [smem:[#allocation8 + $0x6c]]
          %v1399 = vstv %s1398
          %v1400 = vmul.f32 %v1399, %v1386
          %v1401 = vadd.f32 %v1397, %v1400
          %v1402 = vmul.f32 %v1386, %v1268
          %v1403 = vmul.f32 %v1391, %v1267
          %s1404 = sld [smem:[#allocation8 + $0x51]]
          %v1405 = vstv %s1404
          %v1406 = vmul.f32 %v1405, %v1402
          %v1407 = vadd.f32 %v1403, %v1406
          %v1408 = vmul.f32 %v1396, %v1267
          %s1409 = sld [smem:[#allocation8 + $0x5e]]
          %v1410 = vstv %s1409
          %v1411 = vmul.f32 %v1410, %v1402
          %v1412 = vadd.f32 %v1408, %v1411
          %v1413 = vmul.f32 %v1401, %v1267
          %s1414 = sld [smem:[#allocation8 + $0x6b]]
          %v1415 = vstv %s1414
          %v1416 = vmul.f32 %v1415, %v1402
          %v1417 = vadd.f32 %v1413, %v1416
          %v1418 = vmul.f32 %v1402, %v1268
          %v1419 = vmul.f32 %v1407, %v1267
          %s1420 = sld [smem:[#allocation8 + $0x50]]
          %v1421 = vstv %s1420
          %v1422 = vmul.f32 %v1421, %v1418
          %v1423 = vadd.f32 %v1419, %v1422
          %v1424 = vmul.f32 %v1412, %v1267
          %s1425 = sld [smem:[#allocation8 + $0x5d]]
          %v1426 = vstv %s1425
          %v1427 = vmul.f32 %v1426, %v1418
          %v1428 = vadd.f32 %v1424, %v1427
          %v1429 = vmul.f32 %v1417, %v1267
          %s1430 = sld [smem:[#allocation8 + $0x6a]]
          %v1431 = vstv %s1430
          %v1432 = vmul.f32 %v1431, %v1418
          %v1433 = vadd.f32 %v1429, %v1432
          %v1434 = vmul.f32 %v1418, %v1268
          %v1435 = vmul.f32 %v1423, %v1267
          %s1436 = sld [smem:[#allocation8 + $0x4f]]
          %v1437 = vstv %s1436
          %v1438 = vmul.f32 %v1437, %v1434
          %v1439 = vadd.f32 %v1435, %v1438
          %v1440 = vmul.f32 %v1428, %v1267
          %s1441 = sld [smem:[#allocation8 + $0x5c]]
          %v1442 = vstv %s1441
          %v1443 = vmul.f32 %v1442, %v1434
          %v1444 = vadd.f32 %v1440, %v1443
          %v1445 = vmul.f32 %v1433, %v1267
          %s1446 = sld [smem:[#allocation8 + $0x69]]
          %v1447 = vstv %s1446
          %v1448 = vmul.f32 %v1447, %v1434
          %v1449 = vadd.f32 %v1445, %v1448
          %v1450 = vmul.f32 %v1434, %v1268
          %v1451 = vmul.f32 %v1439, %v1267
          %s1452 = sld [smem:[#allocation8 + $0x4e]]
          %v1453 = vstv %s1452
          %v1454 = vmul.f32 %v1453, %v1450
          %v1455 = vadd.f32 %v1451, %v1454
          %v1456 = vmul.f32 %v1444, %v1267
          %s1457 = sld [smem:[#allocation8 + $0x5b]]
          %v1458 = vstv %s1457
          %v1459 = vmul.f32 %v1458, %v1450
          %v1460 = vadd.f32 %v1456, %v1459
          %v1461 = vmul.f32 %v1449, %v1267
          %s1462 = sld [smem:[#allocation8 + $0x68]]
          %v1463 = vstv %s1462
          %v1464 = vmul.f32 %v1463, %v1450
          %v1465 = vadd.f32 %v1461, %v1464
          %v1466 = vsub.f32 %v1257, -7.2
          %v1467 = vmul.f32 %v1466, 0.06944445
          %v1468 = vmax.f32 %v1467, 0.0
          %v1469 = vmin.f32 %v1468, 1.0
          %v1470 = vsub.f32 1.0, %v1469
          %s1471 = sld [smem:[#allocation8 + $0x81]]
          %v1472 = vstv %s1471
          %v1473 = vmul.f32 %v1472, %v1469
          %s1474 = sld [smem:[#allocation8 + $0x80]]
          %v1475 = vstv %s1474
          %v1476 = vmul.f32 %v1475, %v1470
          %v1477 = vadd.f32 %v1473, %v1476
          %s1478 = sld [smem:[#allocation8 + $0x8e]]
          %v1479 = vstv %s1478
          %v1480 = vmul.f32 %v1479, %v1469
          %s1481 = sld [smem:[#allocation8 + $0x8d]]
          %v1482 = vstv %s1481
          %v1483 = vmul.f32 %v1482, %v1470
          %v1484 = vadd.f32 %v1480, %v1483
          %v1485 = vmul.f32 %v1470, %v1470
          %v1486 = vmul.f32 %v1477, %v1469
          %s1487 = sld [smem:[#allocation8 + $0x7f]]
          %v1488 = vstv %s1487
          %v1489 = vmul.f32 %v1488, %v1485
          %v1490 = vadd.f32 %v1486, %v1489
          %v1491 = vmul.f32 %v1484, %v1469
          %s1492 = sld [smem:[#allocation8 + $0x8c]]
          %v1493 = vstv %s1492
          %v1494 = vmul.f32 %v1493, %v1485
          %v1495 = vadd.f32 %v1491, %v1494
          %v1496 = vmul.f32 %v1485, %v1470
          %v1497 = vmul.f32 %v1490, %v1469
          %s1498 = sld [smem:[#allocation8 + $0x7e]]
          %v1499 = vstv %s1498
          %v1500 = vmul.f32 %v1499, %v1496
          %v1501 = vadd.f32 %v1497, %v1500
          %v1502 = vmul.f32 %v1495, %v1469
          %s1503 = sld [smem:[#allocation8 + $0x8b]]
          %v1504 = vstv %s1503
          %v1505 = vmul.f32 %v1504, %v1496
          %v1506 = vadd.f32 %v1502, %v1505
          %v1507 = vmul.f32 %v1496, %v1470
          %v1508 = vmul.f32 %v1501, %v1469
          %s1509 = sld [smem:[#allocation8 + $0x7d]]
          %v1510 = vstv %s1509
          %v1511 = vmul.f32 %v1510, %v1507
          %v1512 = vadd.f32 %v1508, %v1511
          %v1513 = vmul.f32 %v1506, %v1469
          %s1514 = sld [smem:[#allocation8 + $0x8a]]
          %v1515 = vstv %s1514
          %v1516 = vmul.f32 %v1515, %v1507
          %v1517 = vadd.f32 %v1513, %v1516
          %v1518 = vmul.f32 %v1507, %v1470
          %v1519 = vmul.f32 %v1512, %v1469
          %s1520 = sld [smem:[#allocation8 + $0x7c]]
          %v1521 = vstv %s1520
          %v1522 = vmul.f32 %v1521, %v1518
          %v1523 = vadd.f32 %v1519, %v1522
          %v1524 = vmul.f32 %v1517, %v1469
          %s1525 = sld [smem:[#allocation8 + $0x89]]
          %v1526 = vstv %s1525
          %v1527 = vmul.f32 %v1526, %v1518
          %v1528 = vadd.f32 %v1524, %v1527
          %v1529 = vmul.f32 %v1518, %v1470
          %v1530 = vmul.f32 %v1523, %v1469
          %s1531 = sld [smem:[#allocation8 + $0x7b]]
          %v1532 = vstv %s1531
          %v1533 = vmul.f32 %v1532, %v1529
          %v1534 = vadd.f32 %v1530, %v1533
          %v1535 = vmul.f32 %v1528, %v1469
          %s1536 = sld [smem:[#allocation8 + $0x88]]
          %v1537 = vstv %s1536
          %v1538 = vmul.f32 %v1537, %v1529
          %v1539 = vadd.f32 %v1535, %v1538
          %v1540 = vmul.f32 %v1529, %v1470
          %v1541 = vmul.f32 %v1534, %v1469
          %s1542 = sld [smem:[#allocation8 + $0x7a]]
          %v1543 = vstv %s1542
          %v1544 = vmul.f32 %v1543, %v1540
          %v1545 = vadd.f32 %v1541, %v1544
          %v1546 = vmul.f32 %v1539, %v1469
          %s1547 = sld [smem:[#allocation8 + $0x87]]
          %v1548 = vstv %s1547
          %v1549 = vmul.f32 %v1548, %v1540
          %v1550 = vadd.f32 %v1546, %v1549
          %v1551 = vmul.f32 %v1540, %v1470
          %v1552 = vmul.f32 %v1545, %v1469
          %s1553 = sld [smem:[#allocation8 + $0x79]]
          %v1554 = vstv %s1553
          %v1555 = vmul.f32 %v1554, %v1551
          %v1556 = vadd.f32 %v1552, %v1555
          %v1557 = vmul.f32 %v1550, %v1469
          %s1558 = sld [smem:[#allocation8 + $0x86]]
          %v1559 = vstv %s1558
          %v1560 = vmul.f32 %v1559, %v1551
          %v1561 = vadd.f32 %v1557, %v1560
          %v1562 = vmul.f32 %v1551, %v1470
          %v1563 = vmul.f32 %v1556, %v1469
          %s1564 = sld [smem:[#allocation8 + $0x78]]
          %v1565 = vstv %s1564
          %v1566 = vmul.f32 %v1565, %v1562
          %v1567 = vadd.f32 %v1563, %v1566
          %v1568 = vmul.f32 %v1561, %v1469
          %s1569 = sld [smem:[#allocation8 + $0x85]]
          %v1570 = vstv %s1569
          %v1571 = vmul.f32 %v1570, %v1562
          %v1572 = vadd.f32 %v1568, %v1571
          %v1573 = vmul.f32 %v1562, %v1470
          %v1574 = vmul.f32 %v1567, %v1469
          %s1575 = sld [smem:[#allocation8 + $0x77]]
          %v1576 = vstv %s1575
          %v1577 = vmul.f32 %v1576, %v1573
          %v1578 = vadd.f32 %v1574, %v1577
          %v1579 = vmul.f32 %v1572, %v1469
          %s1580 = sld [smem:[#allocation8 + $0x84]]
          %v1581 = vstv %s1580
          %v1582 = vmul.f32 %v1581, %v1573
          %v1583 = vadd.f32 %v1579, %v1582
          %v1584 = vmul.f32 %v1573, %v1470
          %v1585 = vmul.f32 %v1578, %v1469
          %s1586 = sld [smem:[#allocation8 + $0x76]]
          %v1587 = vstv %s1586
          %v1588 = vmul.f32 %v1587, %v1584
          %v1589 = vadd.f32 %v1585, %v1588
          %v1590 = vmul.f32 %v1583, %v1469
          %s1591 = sld [smem:[#allocation8 + $0x83]]
          %v1592 = vstv %s1591
          %v1593 = vmul.f32 %v1592, %v1584
          %v1594 = vadd.f32 %v1590, %v1593
          %v1595 = vmul.f32 %v1584, %v1470
          %v1596 = vmul.f32 %v1589, %v1469
          %s1597 = sld [smem:[#allocation8 + $0x75]]
          %v1598 = vstv %s1597
          %v1599 = vmul.f32 %v1598, %v1595
          %v1600 = vadd.f32 %v1596, %v1599
          %v1601 = vmul.f32 %v1594, %v1469
          %s1602 = sld [smem:[#allocation8 + $0x82]]
          %v1603 = vstv %s1602
          %v1604 = vmul.f32 %v1603, %v1595
          %v1605 = vadd.f32 %v1601, %v1604
          %v1606 = vsub.f32 %v1253, -7.2
          %v1607 = vmul.f32 %v1606, 0.06944445
          %v1608 = vmax.f32 %v1607, 0.0
          %v1609 = vmin.f32 %v1608, 1.0
          %v1610 = vsub.f32 1.0, %v1609
          %s1611 = sld [smem:[#allocation8 + $0x9b]]
          %v1612 = vstv %s1611
          %v1613 = vmul.f32 %v1612, %v1609
          %s1614 = sld [smem:[#allocation8 + $0x9a]]
          %v1615 = vstv %s1614
          %v1616 = vmul.f32 %v1615, %v1610
          %v1617 = vadd.f32 %v1613, %v1616
          %v1618 = vmul.f32 %v1610, %v1610
          %v1619 = vmul.f32 %v1617, %v1609
          %s1620 = sld [smem:[#allocation8 + $0x99]]
          %v1621 = vstv %s1620
          %v1622 = vmul.f32 %v1621, %v1618
          %v1623 = vadd.f32 %v1619, %v1622
          %v1624 = vmul.f32 %v1618, %v1610
          %v1625 = vmul.f32 %v1623, %v1609
          %s1626 = sld [smem:[#allocation8 + $0x98]]
          %v1627 = vstv %s1626
          %v1628 = vmul.f32 %v1627, %v1624
          %v1629 = vadd.f32 %v1625, %v1628
          %v1630 = vmul.f32 %v1624, %v1610
          %v1631 = vmul.f32 %v1629, %v1609
          %s1632 = sld [smem:[#allocation8 + $0x97]]
          %v1633 = vstv %s1632
          %v1634 = vmul.f32 %v1633, %v1630
          %v1635 = vadd.f32 %v1631, %v1634
          %v1636 = vmul.f32 %v1630, %v1610
          %v1637 = vmul.f32 %v1635, %v1609
          %s1638 = sld [smem:[#allocation8 + $0x96]]
          %v1639 = vstv %s1638
          %v1640 = vmul.f32 %v1639, %v1636
          %v1641 = vadd.f32 %v1637, %v1640
          %v1642 = vmul.f32 %v1636, %v1610
          %v1643 = vmul.f32 %v1641, %v1609
          %s1644 = sld [smem:[#allocation8 + $0x95]]
          %v1645 = vstv %s1644
          %v1646 = vmul.f32 %v1645, %v1642
          %v1647 = vadd.f32 %v1643, %v1646
          %v1648 = vmul.f32 %v1642, %v1610
          %v1649 = vmul.f32 %v1647, %v1609
          %s1650 = sld [smem:[#allocation8 + $0x94]]
          %v1651 = vstv %s1650
          %v1652 = vmul.f32 %v1651, %v1648
          %v1653 = vadd.f32 %v1649, %v1652
          %v1654 = vmul.f32 %v1648, %v1610
          %v1655 = vmul.f32 %v1653, %v1609
          %s1656 = sld [smem:[#allocation8 + $0x93]]
          %v1657 = vstv %s1656
          %v1658 = vmul.f32 %v1657, %v1654
          %v1659 = vadd.f32 %v1655, %v1658
          %v1660 = vmul.f32 %v1654, %v1610
          %v1661 = vmul.f32 %v1659, %v1609
          %s1662 = sld [smem:[#allocation8 + $0x92]]
          %v1663 = vstv %s1662
          %v1664 = vmul.f32 %v1663, %v1660
          %v1665 = vadd.f32 %v1661, %v1664
          %v1666 = vmul.f32 %v1660, %v1610
          %v1667 = vmul.f32 %v1665, %v1609
          %s1668 = sld [smem:[#allocation8 + $0x91]]
          %v1669 = vstv %s1668
          %v1670 = vmul.f32 %v1669, %v1666
          %v1671 = vadd.f32 %v1667, %v1670
          %v1672 = vmul.f32 %v1666, %v1610
          %v1673 = vmul.f32 %v1671, %v1609
          %s1674 = sld [smem:[#allocation8 + $0x90]]
          %v1675 = vstv %s1674
          %v1676 = vmul.f32 %v1675, %v1672
          %v1677 = vadd.f32 %v1673, %v1676
          %v1678 = vmul.f32 %v1672, %v1610
          %v1679 = vmul.f32 %v1677, %v1609
          %s1680 = sld [smem:[#allocation8 + $0x8f]]
          %v1681 = vstv %s1680
          %v1682 = vmul.f32 %v1681, %v1678
          %v1683 = vadd.f32 %v1679, %v1682
          %v1684 = vmul.f32 %v1455, %v1263
          %v1685 = vadd.f32 %v1257, %v1684
          %v1686 = vmul.f32 %v1460, %v1263
          %v1687 = vadd.f32 %v1253, %v1686
          %v1688 = vmul.f32 %v1600, %v1257
          %v1689 = vadd.f32 %v1687, %v1688
          %v1690 = vmul.f32 %v1465, %v1263
          %v1691 = vadd.f32 %v479, %v1690
          %v1692 = vmul.f32 %v1605, %v1257
          %v1693 = vadd.f32 %v1691, %v1692
          %v1694 = vmul.f32 %v1683, %v1253
          %v1695 = vadd.f32 %v1693, %v1694
          %v1696 = vmul.f32 %v1173, %v1455
          %v1697 = vadd.f32 %v1033, %v1696
          %v1698 = vmul.f32 %v1251, %v1460
          %v1699 = vadd.f32 %v1697, %v1698
          %v1700 = vadd.f32 %v1699, %v1465
          %v1701 = vmul.f32 %v1251, %v1600
          %v1702 = vadd.f32 %v1173, %v1701
          %v1703 = vadd.f32 %v1702, %v1605
          %v1704 = vadd.f32 %v1251, %v1683
          %v1705 = vmul.f32 %v1168, %v1455
          %v1706 = vadd.f32 %v1028, %v1705
          %v1707 = vadd.f32 %v1706, %v1460
          %v1708 = vadd.f32 %v1168, %v1600
          %v1709 = vadd.f32 %v1023, %v1455
          %v1710 = vsub.f32 %v1695, -7.2
          %v1711 = vmul.f32 %v1710, 0.06944445
          %v1712 = vmax.f32 %v1711, 0.0
          %v1713 = vmin.f32 %v1712, 1.0
          %v1714 = vsub.f32 1.0, %v1713
          %s1715 = sld [smem:[#allocation8 + $0xa8]]
          %v1716 = vstv %s1715
          %v1717 = vmul.f32 %v1716, %v1713
          %s1718 = sld [smem:[#allocation8 + $0xa7]]
          %v1719 = vstv %s1718
          %v1720 = vmul.f32 %v1719, %v1714
          %v1721 = vadd.f32 %v1717, %v1720
          %s1722 = sld [smem:[#allocation8 + $0xb5]]
          %v1723 = vstv %s1722
          %v1724 = vmul.f32 %v1723, %v1713
          %s1725 = sld [smem:[#allocation8 + $0xb4]]
          %v1726 = vstv %s1725
          %v1727 = vmul.f32 %v1726, %v1714
          %v1728 = vadd.f32 %v1724, %v1727
          %s1729 = sld [smem:[#allocation8 + $0xc2]]
          %v1730 = vstv %s1729
          %v1731 = vmul.f32 %v1730, %v1713
          %s1732 = sld [smem:[#allocation8 + $0xc1]]
          %v1733 = vstv %s1732
          %v1734 = vmul.f32 %v1733, %v1714
          %v1735 = vadd.f32 %v1731, %v1734
          %v1736 = vmul.f32 %v1714, %v1714
          %v1737 = vmul.f32 %v1721, %v1713
          %s1738 = sld [smem:[#allocation8 + $0xa6]]
          %v1739 = vstv %s1738
          %v1740 = vmul.f32 %v1739, %v1736
          %v1741 = vadd.f32 %v1737, %v1740
          %v1742 = vmul.f32 %v1728, %v1713
          %s1743 = sld [smem:[#allocation8 + $0xb3]]
          %v1744 = vstv %s1743
          %v1745 = vmul.f32 %v1744, %v1736
          %v1746 = vadd.f32 %v1742, %v1745
          %v1747 = vmul.f32 %v1735, %v1713
          %s1748 = sld [smem:[#allocation8 + $0xc0]]
          %v1749 = vstv %s1748
          %v1750 = vmul.f32 %v1749, %v1736
          %v1751 = vadd.f32 %v1747, %v1750
          %v1752 = vmul.f32 %v1736, %v1714
          %v1753 = vmul.f32 %v1741, %v1713
          %s1754 = sld [smem:[#allocation8 + $0xa5]]
          %v1755 = vstv %s1754
          %v1756 = vmul.f32 %v1755, %v1752
          %v1757 = vadd.f32 %v1753, %v1756
          %v1758 = vmul.f32 %v1746, %v1713
          %s1759 = sld [smem:[#allocation8 + $0xb2]]
          %v1760 = vstv %s1759
          %v1761 = vmul.f32 %v1760, %v1752
          %v1762 = vadd.f32 %v1758, %v1761
          %v1763 = vmul.f32 %v1751, %v1713
          %s1764 = sld [smem:[#allocation8 + $0xbf]]
          %v1765 = vstv %s1764
          %v1766 = vmul.f32 %v1765, %v1752
          %v1767 = vadd.f32 %v1763, %v1766
          %v1768 = vmul.f32 %v1752, %v1714
          %v1769 = vmul.f32 %v1757, %v1713
          %s1770 = sld [smem:[#allocation8 + $0xa4]]
          %v1771 = vstv %s1770
          %v1772 = vmul.f32 %v1771, %v1768
          %v1773 = vadd.f32 %v1769, %v1772
          %v1774 = vmul.f32 %v1762, %v1713
          %s1775 = sld [smem:[#allocation8 + $0xb1]]
          %v1776 = vstv %s1775
          %v1777 = vmul.f32 %v1776, %v1768
          %v1778 = vadd.f32 %v1774, %v1777
          %v1779 = vmul.f32 %v1767, %v1713
          %s1780 = sld [smem:[#allocation8 + $0xbe]]
          %v1781 = vstv %s1780
          %v1782 = vmul.f32 %v1781, %v1768
          %v1783 = vadd.f32 %v1779, %v1782
          %v1784 = vmul.f32 %v1768, %v1714
          %v1785 = vmul.f32 %v1773, %v1713
          %s1786 = sld [smem:[#allocation8 + $0xa3]]
          %v1787 = vstv %s1786
          %v1788 = vmul.f32 %v1787, %v1784
          %v1789 = vadd.f32 %v1785, %v1788
          %v1790 = vmul.f32 %v1778, %v1713
          %s1791 = sld [smem:[#allocation8 + $0xb0]]
          %v1792 = vstv %s1791
          %v1793 = vmul.f32 %v1792, %v1784
          %v1794 = vadd.f32 %v1790, %v1793
          %v1795 = vmul.f32 %v1783, %v1713
          %s1796 = sld [smem:[#allocation8 + $0xbd]]
          %v1797 = vstv %s1796
          %v1798 = vmul.f32 %v1797, %v1784
          %v1799 = vadd.f32 %v1795, %v1798
          %v1800 = vmul.f32 %v1784, %v1714
          %v1801 = vmul.f32 %v1789, %v1713
          %s1802 = sld [smem:[#allocation8 + $0xa2]]
          %v1803 = vstv %s1802
          %v1804 = vmul.f32 %v1803, %v1800
          %v1805 = vadd.f32 %v1801, %v1804
          %v1806 = vmul.f32 %v1794, %v1713
          %s1807 = sld [smem:[#allocation8 + $0xaf]]
          %v1808 = vstv %s1807
          %v1809 = vmul.f32 %v1808, %v1800
          %v1810 = vadd.f32 %v1806, %v1809
          %v1811 = vmul.f32 %v1799, %v1713
          %s1812 = sld [smem:[#allocation8 + $0xbc]]
          %v1813 = vstv %s1812
          %v1814 = vmul.f32 %v1813, %v1800
          %v1815 = vadd.f32 %v1811, %v1814
          %v1816 = vmul.f32 %v1800, %v1714
          %v1817 = vmul.f32 %v1805, %v1713
          %s1818 = sld [smem:[#allocation8 + $0xa1]]
          %v1819 = vstv %s1818
          %v1820 = vmul.f32 %v1819, %v1816
          %v1821 = vadd.f32 %v1817, %v1820
          %v1822 = vmul.f32 %v1810, %v1713
          %s1823 = sld [smem:[#allocation8 + $0xae]]
          %v1824 = vstv %s1823
          %v1825 = vmul.f32 %v1824, %v1816
          %v1826 = vadd.f32 %v1822, %v1825
          %v1827 = vmul.f32 %v1815, %v1713
          %s1828 = sld [smem:[#allocation8 + $0xbb]]
          %v1829 = vstv %s1828
          %v1830 = vmul.f32 %v1829, %v1816
          %v1831 = vadd.f32 %v1827, %v1830
          %v1832 = vmul.f32 %v1816, %v1714
          %v1833 = vmul.f32 %v1821, %v1713
          %s1834 = sld [smem:[#allocation8 + $0xa0]]
          %v1835 = vstv %s1834
          %v1836 = vmul.f32 %v1835, %v1832
          %v1837 = vadd.f32 %v1833, %v1836
          %v1838 = vmul.f32 %v1826, %v1713
          %s1839 = sld [smem:[#allocation8 + $0xad]]
          %v1840 = vstv %s1839
          %v1841 = vmul.f32 %v1840, %v1832
          %v1842 = vadd.f32 %v1838, %v1841
          %v1843 = vmul.f32 %v1831, %v1713
          %s1844 = sld [smem:[#allocation8 + $0xba]]
          %v1845 = vstv %s1844
          %v1846 = vmul.f32 %v1845, %v1832
          %v1847 = vadd.f32 %v1843, %v1846
          %v1848 = vmul.f32 %v1832, %v1714
          %v1849 = vmul.f32 %v1837, %v1713
          %s1850 = sld [smem:[#allocation8 + $0x9f]]
          %v1851 = vstv %s1850
          %v1852 = vmul.f32 %v1851, %v1848
          %v1853 = vadd.f32 %v1849, %v1852
          %v1854 = vmul.f32 %v1842, %v1713
          %s1855 = sld [smem:[#allocation8 + $0xac]]
          %v1856 = vstv %s1855
          %v1857 = vmul.f32 %v1856, %v1848
          %v1858 = vadd.f32 %v1854, %v1857
          %v1859 = vmul.f32 %v1847, %v1713
          %s1860 = sld [smem:[#allocation8 + $0xb9]]
          %v1861 = vstv %s1860
          %v1862 = vmul.f32 %v1861, %v1848
          %v1863 = vadd.f32 %v1859, %v1862
          %v1864 = vmul.f32 %v1848, %v1714
          %v1865 = vmul.f32 %v1853, %v1713
          %s1866 = sld [smem:[#allocation8 + $0x9e]]
          %v1867 = vstv %s1866
          %v1868 = vmul.f32 %v1867, %v1864
          %v1869 = vadd.f32 %v1865, %v1868
          %v1870 = vmul.f32 %v1858, %v1713
          %s1871 = sld [smem:[#allocation8 + $0xab]]
          %v1872 = vstv %s1871
          %v1873 = vmul.f32 %v1872, %v1864
          %v1874 = vadd.f32 %v1870, %v1873
          %v1875 = vmul.f32 %v1863, %v1713
          %s1876 = sld [smem:[#allocation8 + $0xb8]]
          %v1877 = vstv %s1876
          %v1878 = vmul.f32 %v1877, %v1864
          %v1879 = vadd.f32 %v1875, %v1878
          %v1880 = vmul.f32 %v1864, %v1714
          %v1881 = vmul.f32 %v1869, %v1713
          %s1882 = sld [smem:[#allocation8 + $0x9d]]
          %v1883 = vstv %s1882
          %v1884 = vmul.f32 %v1883, %v1880
          %v1885 = vadd.f32 %v1881, %v1884
          %v1886 = vmul.f32 %v1874, %v1713
          %s1887 = sld [smem:[#allocation8 + $0xaa]]
          %v1888 = vstv %s1887
          %v1889 = vmul.f32 %v1888, %v1880
          %v1890 = vadd.f32 %v1886, %v1889
          %v1891 = vmul.f32 %v1879, %v1713
          %s1892 = sld [smem:[#allocation8 + $0xb7]]
          %v1893 = vstv %s1892
          %v1894 = vmul.f32 %v1893, %v1880
          %v1895 = vadd.f32 %v1891, %v1894
          %v1896 = vmul.f32 %v1880, %v1714
          %v1897 = vmul.f32 %v1885, %v1713
          %s1898 = sld [smem:[#allocation8 + $0x9c]]
          %v1899 = vstv %s1898
          %v1900 = vmul.f32 %v1899, %v1896
          %v1901 = vadd.f32 %v1897, %v1900
          %v1902 = vmul.f32 %v1890, %v1713
          %s1903 = sld [smem:[#allocation8 + $0xa9]]
          %v1904 = vstv %s1903
          %v1905 = vmul.f32 %v1904, %v1896
          %v1906 = vadd.f32 %v1902, %v1905
          %v1907 = vmul.f32 %v1895, %v1713
          %s1908 = sld [smem:[#allocation8 + $0xb6]]
          %v1909 = vstv %s1908
          %v1910 = vmul.f32 %v1909, %v1896
          %v1911 = vadd.f32 %v1907, %v1910
          %v1912 = vsub.f32 %v1689, -7.2
          %v1913 = vmul.f32 %v1912, 0.06944445
          %v1914 = vmax.f32 %v1913, 0.0
          %v1915 = vmin.f32 %v1914, 1.0
          %v1916 = vsub.f32 1.0, %v1915
          %s1917 = sld [smem:[#allocation8 + $0xcf]]
          %v1918 = vstv %s1917
          %v1919 = vmul.f32 %v1918, %v1915
          %s1920 = sld [smem:[#allocation8 + $0xce]]
          %v1921 = vstv %s1920
          %v1922 = vmul.f32 %v1921, %v1916
          %v1923 = vadd.f32 %v1919, %v1922
          %s1924 = sld [smem:[#allocation8 + $0xdc]]
          %v1925 = vstv %s1924
          %v1926 = vmul.f32 %v1925, %v1915
          %s1927 = sld [smem:[#allocation8 + $0xdb]]
          %v1928 = vstv %s1927
          %v1929 = vmul.f32 %v1928, %v1916
          %v1930 = vadd.f32 %v1926, %v1929
          %v1931 = vmul.f32 %v1916, %v1916
          %v1932 = vmul.f32 %v1923, %v1915
          %s1933 = sld [smem:[#allocation8 + $0xcd]]
          %v1934 = vstv %s1933
          %v1935 = vmul.f32 %v1934, %v1931
          %v1936 = vadd.f32 %v1932, %v1935
          %v1937 = vmul.f32 %v1930, %v1915
          %s1938 = sld [smem:[#allocation8 + $0xda]]
          %v1939 = vstv %s1938
          %v1940 = vmul.f32 %v1939, %v1931
          %v1941 = vadd.f32 %v1937, %v1940
          %v1942 = vmul.f32 %v1931, %v1916
          %v1943 = vmul.f32 %v1936, %v1915
          %s1944 = sld [smem:[#allocation8 + $0xcc]]
          %v1945 = vstv %s1944
          %v1946 = vmul.f32 %v1945, %v1942
          %v1947 = vadd.f32 %v1943, %v1946
          %v1948 = vmul.f32 %v1941, %v1915
          %s1949 = sld [smem:[#allocation8 + $0xd9]]
          %v1950 = vstv %s1949
          %v1951 = vmul.f32 %v1950, %v1942
          %v1952 = vadd.f32 %v1948, %v1951
          %v1953 = vmul.f32 %v1942, %v1916
          %v1954 = vmul.f32 %v1947, %v1915
          %s1955 = sld [smem:[#allocation8 + $0xcb]]
          %v1956 = vstv %s1955
          %v1957 = vmul.f32 %v1956, %v1953
          %v1958 = vadd.f32 %v1954, %v1957
          %v1959 = vmul.f32 %v1952, %v1915
          %s1960 = sld [smem:[#allocation8 + $0xd8]]
          %v1961 = vstv %s1960
          %v1962 = vmul.f32 %v1961, %v1953
          %v1963 = vadd.f32 %v1959, %v1962
          %v1964 = vmul.f32 %v1953, %v1916
          %v1965 = vmul.f32 %v1958, %v1915
          %s1966 = sld [smem:[#allocation8 + $0xca]]
          %v1967 = vstv %s1966
          %v1968 = vmul.f32 %v1967, %v1964
          %v1969 = vadd.f32 %v1965, %v1968
          %v1970 = vmul.f32 %v1963, %v1915
          %s1971 = sld [smem:[#allocation8 + $0xd7]]
          %v1972 = vstv %s1971
          %v1973 = vmul.f32 %v1972, %v1964
          %v1974 = vadd.f32 %v1970, %v1973
          %v1975 = vmul.f32 %v1964, %v1916
          %v1976 = vmul.f32 %v1969, %v1915
          %s1977 = sld [smem:[#allocation8 + $0xc9]]
          %v1978 = vstv %s1977
          %v1979 = vmul.f32 %v1978, %v1975
          %v1980 = vadd.f32 %v1976, %v1979
          %v1981 = vmul.f32 %v1974, %v1915
          %s1982 = sld [smem:[#allocation8 + $0xd6]]
          %v1983 = vstv %s1982
          %v1984 = vmul.f32 %v1983, %v1975
          %v1985 = vadd.f32 %v1981, %v1984
          %v1986 = vmul.f32 %v1975, %v1916
          %v1987 = vmul.f32 %v1980, %v1915
          %s1988 = sld [smem:[#allocation8 + $0xc8]]
          %v1989 = vstv %s1988
          %v1990 = vmul.f32 %v1989, %v1986
          %v1991 = vadd.f32 %v1987, %v1990
          %v1992 = vmul.f32 %v1985, %v1915
          %s1993 = sld [smem:[#allocation8 + $0xd5]]
          %v1994 = vstv %s1993
          %v1995 = vmul.f32 %v1994, %v1986
          %v1996 = vadd.f32 %v1992, %v1995
          %v1997 = vmul.f32 %v1986, %v1916
          %v1998 = vmul.f32 %v1991, %v1915
          %s1999 = sld [smem:[#allocation8 + $0xc7]]
          %v2000 = vstv %s1999
          %v2001 = vmul.f32 %v2000, %v1997
          %v2002 = vadd.f32 %v1998, %v2001
          %v2003 = vmul.f32 %v1996, %v1915
          %s2004 = sld [smem:[#allocation8 + $0xd4]]
          %v2005 = vstv %s2004
          %v2006 = vmul.f32 %v2005, %v1997
          %v2007 = vadd.f32 %v2003, %v2006
          %v2008 = vmul.f32 %v1997, %v1916
          %v2009 = vmul.f32 %v2002, %v1915
          %s2010 = sld [smem:[#allocation8 + $0xc6]]
          %v2011 = vstv %s2010
          %v2012 = vmul.f32 %v2011, %v2008
          %v2013 = vadd.f32 %v2009, %v2012
          %v2014 = vmul.f32 %v2007, %v1915
          %s2015 = sld [smem:[#allocation8 + $0xd3]]
          %v2016 = vstv %s2015
          %v2017 = vmul.f32 %v2016, %v2008
          %v2018 = vadd.f32 %v2014, %v2017
          %v2019 = vmul.f32 %v2008, %v1916
          %v2020 = vmul.f32 %v2013, %v1915
          %s2021 = sld [smem:[#allocation8 + $0xc5]]
          %v2022 = vstv %s2021
          %v2023 = vmul.f32 %v2022, %v2019
          %v2024 = vadd.f32 %v2020, %v2023
          %v2025 = vmul.f32 %v2018, %v1915
          %s2026 = sld [smem:[#allocation8 + $0xd2]]
          %v2027 = vstv %s2026
          %v2028 = vmul.f32 %v2027, %v2019
          %v2029 = vadd.f32 %v2025, %v2028
          %v2030 = vmul.f32 %v2019, %v1916
          %v2031 = vmul.f32 %v2024, %v1915
          %s2032 = sld [smem:[#allocation8 + $0xc4]]
          %v2033 = vstv %s2032
          %v2034 = vmul.f32 %v2033, %v2030
          %v2035 = vadd.f32 %v2031, %v2034
          %v2036 = vmul.f32 %v2029, %v1915
          %s2037 = sld [smem:[#allocation8 + $0xd1]]
          %v2038 = vstv %s2037
          %v2039 = vmul.f32 %v2038, %v2030
          %v2040 = vadd.f32 %v2036, %v2039
          %v2041 = vmul.f32 %v2030, %v1916
          %v2042 = vmul.f32 %v2035, %v1915
          %s2043 = sld [smem:[#allocation8 + $0xc3]]
          %v2044 = vstv %s2043
          %v2045 = vmul.f32 %v2044, %v2041
          %v2046 = vadd.f32 %v2042, %v2045
          %v2047 = vmul.f32 %v2040, %v1915
          %s2048 = sld [smem:[#allocation8 + $0xd0]]
          %v2049 = vstv %s2048
          %v2050 = vmul.f32 %v2049, %v2041
          %v2051 = vadd.f32 %v2047, %v2050
          %v2052 = vsub.f32 %v1685, -7.2
          %v2053 = vmul.f32 %v2052, 0.06944445
          %v2054 = vmax.f32 %v2053, 0.0
          %v2055 = vmin.f32 %v2054, 1.0
          %v2056 = vsub.f32 1.0, %v2055
          %s2057 = sld [smem:[#allocation8 + $0xe9]]
          %v2058 = vstv %s2057
          %v2059 = vmul.f32 %v2058, %v2055
          %s2060 = sld [smem:[#allocation8 + $0xe8]]
          %v2061 = vstv %s2060
          %v2062 = vmul.f32 %v2061, %v2056
          %v2063 = vadd.f32 %v2059, %v2062
          %v2064 = vmul.f32 %v2056, %v2056
          %v2065 = vmul.f32 %v2063, %v2055
          %s2066 = sld [smem:[#allocation8 + $0xe7]]
          %v2067 = vstv %s2066
          %v2068 = vmul.f32 %v2067, %v2064
          %v2069 = vadd.f32 %v2065, %v2068
          %v2070 = vmul.f32 %v2064, %v2056
          %v2071 = vmul.f32 %v2069, %v2055
          %s2072 = sld [smem:[#allocation8 + $0xe6]]
          %v2073 = vstv %s2072
          %v2074 = vmul.f32 %v2073, %v2070
          %v2075 = vadd.f32 %v2071, %v2074
          %v2076 = vmul.f32 %v2070, %v2056
          %v2077 = vmul.f32 %v2075, %v2055
          %s2078 = sld [smem:[#allocation8 + $0xe5]]
          %v2079 = vstv %s2078
          %v2080 = vmul.f32 %v2079, %v2076
          %v2081 = vadd.f32 %v2077, %v2080
          %v2082 = vmul.f32 %v2076, %v2056
          %v2083 = vmul.f32 %v2081, %v2055
          %s2084 = sld [smem:[#allocation8 + $0xe4]]
          %v2085 = vstv %s2084
          %v2086 = vmul.f32 %v2085, %v2082
          %v2087 = vadd.f32 %v2083, %v2086
          %v2088 = vmul.f32 %v2082, %v2056
          %v2089 = vmul.f32 %v2087, %v2055
          %s2090 = sld [smem:[#allocation8 + $0xe3]]
          %v2091 = vstv %s2090
          %v2092 = vmul.f32 %v2091, %v2088
          %v2093 = vadd.f32 %v2089, %v2092
          %v2094 = vmul.f32 %v2088, %v2056
          %v2095 = vmul.f32 %v2093, %v2055
          %s2096 = sld [smem:[#allocation8 + $0xe2]]
          %v2097 = vstv %s2096
          %v2098 = vmul.f32 %v2097, %v2094
          %v2099 = vadd.f32 %v2095, %v2098
          %v2100 = vmul.f32 %v2094, %v2056
          %v2101 = vmul.f32 %v2099, %v2055
          %s2102 = sld [smem:[#allocation8 + $0xe1]]
          %v2103 = vstv %s2102
          %v2104 = vmul.f32 %v2103, %v2100
          %v2105 = vadd.f32 %v2101, %v2104
          %v2106 = vmul.f32 %v2100, %v2056
          %v2107 = vmul.f32 %v2105, %v2055
          %s2108 = sld [smem:[#allocation8 + $0xe0]]
          %v2109 = vstv %s2108
          %v2110 = vmul.f32 %v2109, %v2106
          %v2111 = vadd.f32 %v2107, %v2110
          %v2112 = vmul.f32 %v2106, %v2056
          %v2113 = vmul.f32 %v2111, %v2055
          %s2114 = sld [smem:[#allocation8 + $0xdf]]
          %v2115 = vstv %s2114
          %v2116 = vmul.f32 %v2115, %v2112
          %v2117 = vadd.f32 %v2113, %v2116
          %v2118 = vmul.f32 %v2112, %v2056
          %v2119 = vmul.f32 %v2117, %v2055
          %s2120 = sld [smem:[#allocation8 + $0xde]]
          %v2121 = vstv %s2120
          %v2122 = vmul.f32 %v2121, %v2118
          %v2123 = vadd.f32 %v2119, %v2122
          %v2124 = vmul.f32 %v2118, %v2056
          %v2125 = vmul.f32 %v2123, %v2055
          %s2126 = sld [smem:[#allocation8 + $0xdd]]
          %v2127 = vstv %s2126
          %v2128 = vmul.f32 %v2127, %v2124
          %v2129 = vadd.f32 %v2125, %v2128
          %v2130 = vmul.f32 %v1901, %v1695
          %v2131 = vadd.f32 %v1689, %v2130
          %v2132 = vmul.f32 %v1906, %v1695
          %v2133 = vadd.f32 %v1685, %v2132
          %v2134 = vmul.f32 %v2046, %v1689
          %v2135 = vadd.f32 %v2133, %v2134
          %v2136 = vmul.f32 %v1911, %v1695
          %v2137 = vadd.f32 %v1263, %v2136
          %v2138 = vmul.f32 %v2051, %v1689
          %v2139 = vadd.f32 %v2137, %v2138
          %v2140 = vmul.f32 %v2129, %v1685
          %v2141 = vadd.f32 %v2139, %v2140
          %v2142 = vmul.f32 %v1700, %v1911
          %v2143 = vmul.f32 %v1703, %v1906
          %v2144 = vadd.f32 %v2142, %v2143
          %v2145 = vmul.f32 %v1704, %v1901
          %v2146 = vadd.f32 %v2144, %v2145
          %v2147 = vadd.f32 %v2146, 1.0
          %v2148 = vmul.f32 %v1700, %v2051
          %v2149 = vmul.f32 %v1703, %v2046
          %v2150 = vadd.f32 %v2148, %v2149
          %v2151 = vadd.f32 %v2150, %v1704
          %v2152 = vmul.f32 %v1700, %v2129
          %v2153 = vadd.f32 %v2152, %v1703
          %v2154 = vmul.f32 %v1707, %v1911
          %v2155 = vmul.f32 %v1708, %v1906
          %v2156 = vadd.f32 %v2154, %v2155
          %v2157 = vadd.f32 %v2156, %v1901
          %v2158 = vmul.f32 %v1707, %v2051
          %v2159 = vmul.f32 %v1708, %v2046
          %v2160 = vadd.f32 %v2158, %v2159
          %v2161 = vadd.f32 %v2160, 1.0
          %v2162 = vmul.f32 %v1707, %v2129
          %v2163 = vadd.f32 %v2162, %v1708
          %v2164 = vmul.f32 %v1709, %v1911
          %v2165 = vadd.f32 %v2164, %v1906
          %v2166 = vmul.f32 %v1709, %v2051
          %v2167 = vadd.f32 %v2166, %v2046
          %v2168 = vmul.f32 %v1709, %v2129
          %v2169 = vadd.f32 %v2168, 1.0
          %s2170 = scalar_lea.vmem %s336, %s361 [#allocation11]
          %2171 = vst [vmem:[%s2170] sm:$0xff] %v2141
          %2172 = vst [vmem:[%s2170 + $0x10] sm:$0xff] %v2135
          %2173 = vst [vmem:[%s2170 + $0x20] sm:$0xff] %v2131
          %2174 = vst [vmem:[%s2170 + $0x30] sm:$0xff] %v1695
          %s2175 = scalar_lea.vmem %s350, %s361 [#allocation14]
          %2176 = vst [vmem:[%s2175] sm:$0xff] %v2147
          %2177 = vst [vmem:[%s2175 + $0x10] sm:$0xff] %v2151
          %2178 = vst [vmem:[%s2175 + $0x20] sm:$0xff] %v2153
          %2179 = vst [vmem:[%s2175 + $0x30] sm:$0xff] %v1700
          %2180 = vst [vmem:[%s2175 + $0x40] sm:$0xff] %v2157
          %2181 = vst [vmem:[%s2175 + $0x50] sm:$0xff] %v2161
          %2182 = vst [vmem:[%s2175 + $0x60] sm:$0xff] %v2163
          %2183 = vst [vmem:[%s2175 + $0x70] sm:$0xff] %v1707
          %2184 = vst [vmem:[%s2175 + $0x80] sm:$0xff] %v2165
          %2185 = vst [vmem:[%s2175 + $0x90] sm:$0xff] %v2167
          %2186 = vst [vmem:[%s2175 + $0xa0] sm:$0xff] %v2169
          %2187 = vst [vmem:[%s2175 + $0xb0] sm:$0xff] %v1709
          %2188 = vst [vmem:[%s2175 + $0xc0] sm:$0xff] %v1911
          %2189 = vst [vmem:[%s2175 + $0xd0] sm:$0xff] %v2051
          %2190 = vst [vmem:[%s2175 + $0xe0] sm:$0xff] %v2129
          %2191 = vst [vmem:[%s2175 + $0xf0] sm:$0xff] 1.0
        $region57: #{tpu_custom_call.1} parent=35 // loop_footer
          %s360 = sadd.s32 1, %s356
        $region58: #{tpu_custom_call.1} parent=35 // loop_footer_branch
          %355 = sbr.rel target = $region54
        $region59: #{tpu_custom_call.1} parent=35 // loop_exit
          _
        %s2192 = sand.u32 %s127, 1
        %s2193 = scalar_lea.sflag [#allocation4], %s2192
        %s2194 = sand.u32 %s127, 1
        %s2195 = smul.addr %s2194, 64
        %s2196 = scalar_lea.vmem [#allocation11], %s2195
        %s2197 = sand.u32 %s30, 1
        %s2198 = scalar_lea.sflag [#allocation13], %s2197
        %s2199 = sand.u32 %s153, 1
        %s2200 = smul.addr %s2199, 64
        %s2201 = scalar_lea.vmem [#allocation12], %s2200
        %s2202 = sand.u32 %s30, 1
        %s2203 = scalar_lea.sflag [#allocation13], %s2202
        %s2204 = sand.u32 %s179, 1
        %s2205 = smul.addr %s2204, 256
        %s2206 = scalar_lea.vmem [#allocation14], %s2205
        // Predicated region
        $region60: #{tpu_custom_call.1} parent=35 // pred_check
          %p2207 = pneg %p137
        $region61: #{tpu_custom_call.1} parent=35 // pred_check_branch
          %2209 = sbr.rel (%p2207) target = $region63
        $region62: #{tpu_custom_call.1} parent=35 // pred_region
          #allocation18 [shape = 'u32[6]{0}', space=smem, size = 0x18, scoped, tag = 'DMA stride descriptor']
          %s2210 = smul.u32 2, %s30
          %s2212 = ssub.s32 1024, 1024
          %2213 = vsyncadd %s2193, %s2212
          %s2214 = smul.addr %s2210, 128
          %s2215 = scalar_lea.hbm %s4, %s2214
          %s2217 = sshll.u32 1, 14
          %s2218 = sxor.u32 4294967295, %s2217
          %s2221 = sshll.u32 7, 18
          %s2222 = sxor.u32 4294967295, %s2221
          %s2223 = sand.u32 0, %s2222
          %s2225 = sor.u32 %s2223, 0
          %s2227 = sshll.u32 3, 24
          %s2228 = sxor.u32 4294967295, %s2227
          %s2229 = sand.u32 %s2225, %s2228
          %s2231 = sor.u32 %s2229, 0
          %s2232 = sshll.u32 %s2196, 4
          %s2233 = int_to_ptr.vmem [resolvable:$true] %s2232
          %2239 = sst [smem:[#allocation18]] 256
          %s2240 = scalar_lea.smem [#allocation18], 1
          %2241 = sst [smem:[%s2240]] 1024
          %s2242 = scalar_lea.smem [#allocation18], 2
          %2243 = sst [smem:[%s2242]] 2
          %s2244 = scalar_lea.smem [#allocation18], 3
          %2245 = sst [smem:[%s2244]] 128
          %s2246 = scalar_lea.smem [#allocation18], 4
          %2247 = sst [smem:[%s2246]] 128
          %s2248 = scalar_lea.smem [#allocation18], 5
          %2249 = sst [smem:[%s2248]] 8
          %2251 = dma.general %s2233, 1024, %s2215, %s2193, [#allocation17], [#allocation18], %s2231, 0
        $region63: #{tpu_custom_call.1} parent=35 // pred_fallthru
          _
        // Predicated region
        $region64: #{tpu_custom_call.1} parent=35 // pred_check
          %p2252 = pneg %p163
        $region65: #{tpu_custom_call.1} parent=35 // pred_check_branch
          %2254 = sbr.rel (%p2252) target = $region67
        $region66: #{tpu_custom_call.1} parent=35 // pred_region
          #allocation20 [shape = 'u32[6]{0}', space=smem, size = 0x18, scoped, tag = 'DMA stride descriptor']
          %s2255 = smul.u32 2, %s30
          %s2257 = ssub.s32 1024, 1024
          %2258 = vsyncadd %s2198, %s2257
          %s2259 = smul.addr %s2255, 128
          %s2260 = scalar_lea.hbm %s5, %s2259
          %s2262 = sshll.u32 1, 14
          %s2263 = sxor.u32 4294967295, %s2262
          %s2266 = sshll.u32 7, 18
          %s2267 = sxor.u32 4294967295, %s2266
          %s2268 = sand.u32 0, %s2267
          %s2270 = sor.u32 %s2268, 0
          %s2272 = sshll.u32 3, 24
          %s2273 = sxor.u32 4294967295, %s2272
          %s2274 = sand.u32 %s2270, %s2273
          %s2276 = sor.u32 %s2274, 0
          %s2277 = sshll.u32 %s2201, 4
          %s2278 = int_to_ptr.vmem [resolvable:$true] %s2277
          %2284 = sst [smem:[#allocation20]] 256
          %s2285 = scalar_lea.smem [#allocation20], 1
          %2286 = sst [smem:[%s2285]] 1024
          %s2287 = scalar_lea.smem [#allocation20], 2
          %2288 = sst [smem:[%s2287]] 2
          %s2289 = scalar_lea.smem [#allocation20], 3
          %2290 = sst [smem:[%s2289]] 128
          %s2291 = scalar_lea.smem [#allocation20], 4
          %2292 = sst [smem:[%s2291]] 128
          %s2293 = scalar_lea.smem [#allocation20], 5
          %2294 = sst [smem:[%s2293]] 8
          %2296 = dma.general %s2278, 1024, %s2260, %s2198, [#allocation19], [#allocation20], %s2276, 0
        $region67: #{tpu_custom_call.1} parent=35 // pred_fallthru
          _
        // Predicated region
        $region68: #{tpu_custom_call.1} parent=35 // pred_check
          %p2297 = pneg %p189
        $region69: #{tpu_custom_call.1} parent=35 // pred_check_branch
          %2299 = sbr.rel (%p2297) target = $region71
        $region70: #{tpu_custom_call.1} parent=35 // pred_region
          #allocation22 [shape = 'u32[6]{0}', space=smem, size = 0x18, scoped, tag = 'DMA stride descriptor']
          %s2300 = smul.u32 2, %s30
          %s2302 = ssub.s32 4096, 4096
          %2303 = vsyncadd %s2203, %s2302
          %s2304 = smul.addr %s2300, 128
          %s2305 = scalar_lea.hbm %s6, %s2304
          %s2307 = sshll.u32 1, 14
          %s2308 = sxor.u32 4294967295, %s2307
          %s2311 = sshll.u32 7, 18
          %s2312 = sxor.u32 4294967295, %s2311
          %s2313 = sand.u32 0, %s2312
          %s2315 = sor.u32 %s2313, 0
          %s2317 = sshll.u32 3, 24
          %s2318 = sxor.u32 4294967295, %s2317
          %s2319 = sand.u32 %s2315, %s2318
          %s2321 = sor.u32 %s2319, 0
          %s2322 = sshll.u32 %s2206, 4
          %s2323 = int_to_ptr.vmem [resolvable:$true] %s2322
          %2329 = sst [smem:[#allocation22]] 256
          %s2330 = scalar_lea.smem [#allocation22], 1
          %2331 = sst [smem:[%s2330]] 1024
          %s2332 = scalar_lea.smem [#allocation22], 2
          %2333 = sst [smem:[%s2332]] 2
          %s2334 = scalar_lea.smem [#allocation22], 3
          %2335 = sst [smem:[%s2334]] 128
          %s2336 = scalar_lea.smem [#allocation22], 4
          %2337 = sst [smem:[%s2336]] 128
          %s2338 = scalar_lea.smem [#allocation22], 5
          %2339 = sst [smem:[%s2338]] 8
          %2341 = dma.general %s2323, 4096, %s2305, %s2203, [#allocation21], [#allocation22], %s2321, 0
        $region71: #{tpu_custom_call.1} parent=35 // pred_fallthru
          _
      $region36: #{tpu_custom_call.1} parent=5 // pred_fallthru
        _
      %p2342 = scmp.le.s32.totalorder 2, %s25
      // Predicated region
      $region72: #{tpu_custom_call.1} parent=5 // pred_check
        %p2343 = pneg %p2342
      $region73: #{tpu_custom_call.1} parent=5 // pred_check_branch
        %2345 = sbr.rel (%p2343) target = $region75
      $region74: #{tpu_custom_call.1} parent=5 // pred_region
        %s2346 = ssub.s32 %s25, 2
        // Predicated region
        $region76: #{tpu_custom_call.1} parent=74 // pred_check
          %p2347 = pneg %p143
        $region77: #{tpu_custom_call.1} parent=74 // pred_check_branch
          %2349 = sbr.rel (%p2347) target = $region79
        $region78: #{tpu_custom_call.1} parent=74 // pred_region
          %s2350 = sand.u32 %s128, 1
          %s2351 = scalar_lea.sflag [#allocation4], %s2350
          %s2352 = sand.u32 %s128, 1
          %s2353 = smul.addr %s2352, 64
          %s2354 = scalar_lea.vmem [#allocation11], %s2353
          %2355 = dma.done %s2351, 1024
        $region79: #{tpu_custom_call.1} parent=74 // pred_fallthru
          _
        // Predicated region
        $region80: #{tpu_custom_call.1} parent=74 // pred_check
          %p2356 = pneg %p169
        $region81: #{tpu_custom_call.1} parent=74 // pred_check_branch
          %2358 = sbr.rel (%p2356) target = $region83
        $region82: #{tpu_custom_call.1} parent=74 // pred_region
          %s2359 = sand.u32 %s31, 1
          %s2360 = scalar_lea.sflag [#allocation13], %s2359
          %s2361 = sand.u32 %s154, 1
          %s2362 = smul.addr %s2361, 64
          %s2363 = scalar_lea.vmem [#allocation12], %s2362
          %2364 = dma.done %s2360, 1024
        $region83: #{tpu_custom_call.1} parent=74 // pred_fallthru
          _
        // Predicated region
        $region84: #{tpu_custom_call.1} parent=74 // pred_check
          %p2365 = pneg %p195
        $region85: #{tpu_custom_call.1} parent=74 // pred_check_branch
          %2367 = sbr.rel (%p2365) target = $region87
        $region86: #{tpu_custom_call.1} parent=74 // pred_region
          %s2368 = sand.u32 %s31, 1
          %s2369 = scalar_lea.sflag [#allocation13], %s2368
          %s2370 = sand.u32 %s180, 1
          %s2371 = smul.addr %s2370, 256
          %s2372 = scalar_lea.vmem [#allocation14], %s2371
          %2373 = dma.done %s2369, 4096
        $region87: #{tpu_custom_call.1} parent=74 // pred_fallthru
          _
      $region75: #{tpu_custom_call.1} parent=5 // pred_fallthru
        _
    $region6: #{tpu_custom_call.1} parent=1 // loop_footer
      %s29 = sadd.s32 1, %s25
    $region7: #{tpu_custom_call.1} parent=1 // loop_footer_branch
      %24 = sbr.rel target = $region3
    $region8: #{tpu_custom_call.1} parent=1 // loop_exit
      _
    %2374 = vsyncpa [#allocation3], 1
    %s2375 = scalar_lea.sflag [#allocation3], 1
    %2376 = vsyncpa %s2375, 1
    %2377 = vsyncpa [#allocation4], 1
    %s2378 = scalar_lea.sflag [#allocation4], 1
    %2379 = vsyncpa %s2378, 1
    %2380 = vsyncpa [#allocation13], 1
    %s2381 = scalar_lea.sflag [#allocation13], 1
    %2382 = vsyncpa %s2381, 1
    %2383 = vsyncpa [#allocation5], 1
    %s2384 = scalar_lea.sflag [#allocation5], 1
    %2385 = vsyncpa %s2384, 1
    %2386 = vsyncpa [#allocation6], 1
    %s2387 = scalar_lea.sflag [#allocation6], 1
    %2388 = vsyncpa %s2387, 1
    %2389 = vsyncpa [#allocation9], 1

</llo_original>
